<compile_context>
chip_gen: v6e
topology: v6e:2x2x1
jax: 0.10.0
libtpu: 0.0.40
codegen_flags: <defaults>
</compile_context>

<pallas_src>
import functools

import jax
import jax.numpy as jnp
from jax import lax
from jax.experimental import pallas as pl
from jax.experimental.pallas import tpu as pltpu


# ---------------------------------------------------------------------------
# Fused kernel: conv1(1x1)+bn1+relu -> conv2(3x3)+bn2+relu
#               -> conv3(1x1)+bn3 + residual + relu
# ---------------------------------------------------------------------------
def _bottleneck_kernel(xp_ref, xr_ref, m_ref, w1_ref, b1_ref, w2_ref, b2_ref,
                       w3_ref, b3_ref, o_ref, h1_ref, *, Wp, Mc):
    # xp_ref: (Mp, Cin) bf16  -- spatially zero-padded input, flattened
    # xr_ref: (Mc, Cin) f32   -- residual, flattened with 2 junk cols per row
    # m_ref : (Mp, 1)  f32    -- 1 inside the image, 0 on the padding halo
    # w*_ref: bf16 weights with BN scale folded in; b*_ref: (1, C) f32 biases
    # o_ref : (Mc, Cout)
    # h1_ref: VMEM scratch (Mp, P) f32
    P = w1_ref.shape[1]

    # ---- conv1 (1x1, BN1 folded) + ReLU over the padded, flattened plane ----
    h1 = jnp.dot(xp_ref[...], w1_ref[...], preferred_element_type=jnp.float32)
    h1 = jnp.maximum(h1 + b1_ref[...], 0.0)
    # Re-zero the halo ring: folded BN bias + ReLU would otherwise leak a
    # nonzero constant into conv2's zero padding.
    h1_ref[...] = h1 * m_ref[...]

    # ---- conv2 (3x3, pad=1, BN2 folded): 9 row-offset taps, f32 accumulate --
    acc = jnp.zeros((Mc, P), jnp.float32)
    for kh in range(3):
        for kw in range(3):
            tap = h1_ref[pl.ds(kh * Wp + kw, Mc), :].astype(jnp.bfloat16)
            acc = acc + jnp.dot(tap, w2_ref[3 * kh + kw],
                                preferred_element_type=jnp.float32)
    h2 = jnp.maximum(acc + b2_ref[...], 0.0).astype(jnp.bfloat16)

    # ---- conv3 (1x1, BN3 folded) + residual add + ReLU ----------------------
    # Junk columns are computed too (cheap) and discarded by the wrapper.
    y = jnp.dot(h2, w3_ref[...], preferred_element_type=jnp.float32)
    y = y + b3_ref[...] + xr_ref[...]
    o_ref[...] = jnp.maximum(y, 0.0).astype(o_ref.dtype)


def bottleneck_forward(x_nchw, params):
    N, Cin, H, W = x_nchw.shape
    P = params["w1"].shape[1]
    Cout = params["w3"].shape[1]
    assert Cin == Cout, "stride=1 / downsample=None requires inplanes == planes*4"

    Hp, Wp = H + 3, W + 2         # 1 top / 2 bottom / 1 left / 1 right pad
    Mp = Hp * Wp                  # padded, flattened h1 rows
    Mc = H * Wp                   # conv2/conv3/output rows (2 junk cols / row)

    # NCHW -> NHWC. Spatial zero pad: the extra bottom row keeps every
    # flattened row-offset tap read in bounds; halo is re-zeroed in-kernel.
    x_nhwc = jnp.transpose(x_nchw, (0, 2, 3, 1))
    xp = jnp.pad(x_nhwc, ((0, 0), (1, 2), (1, 1), (0, 0))).astype(jnp.bfloat16)
    xp = xp.reshape(N, Mp, Cin)
    # Residual laid out to match the conv2 accumulation rows (junk cols = 0).
    xr = jnp.pad(x_nhwc, ((0, 0), (0, 0), (0, 2), (0, 0))).reshape(N, Mc, Cin)

    r = jnp.arange(Hp)[:, None]
    c = jnp.arange(Wp)[None, :]
    mask = ((r >= 1) & (r <= H) & (c >= 1) & (c <= W)).astype(jnp.float32)
    mask = mask.reshape(Mp, 1)

    kernel = functools.partial(_bottleneck_kernel, Wp=Wp, Mc=Mc)
    out = pl.pallas_call(
        kernel,
        out_shape=jax.ShapeDtypeStruct((N, Mc, Cout), x_nchw.dtype),
        grid=(N,),
        in_specs=[
            pl.BlockSpec((None, Mp, Cin), lambda n: (n, 0, 0)),   # padded x (bf16)
            pl.BlockSpec((None, Mc, Cin), lambda n: (n, 0, 0)),   # residual (f32)
            pl.BlockSpec((Mp, 1), lambda n: (0, 0)),              # halo mask
            pl.BlockSpec((Cin, P), lambda n: (0, 0)),             # w1 (BN1 folded)
            pl.BlockSpec((1, P), lambda n: (0, 0)),               # b1
            pl.BlockSpec((9, P, P), lambda n: (0, 0, 0)),         # w2 taps (BN2 folded)
            pl.BlockSpec((1, P), lambda n: (0, 0)),               # b2
            pl.BlockSpec((P, Cout), lambda n: (0, 0)),            # w3 (BN3 folded)
            pl.BlockSpec((1, Cout), lambda n: (0, 0)),            # b3
        ],
        out_specs=pl.BlockSpec((None, Mc, Cout), lambda n: (n, 0, 0)),
        scratch_shapes=[pltpu.VMEM((Mp, P), jnp.float32)],        # h1 (never in HBM)
        compiler_params=pltpu.CompilerParams(
            dimension_semantics=("parallel",),                    # megacore on v7x
        ),
    )(xp, xr, mask, params["w1"], params["b1"], params["w2"],
      params["b2"], params["w3"], params["b3"])

    # Drop the 2 junk columns per image row, back to NCHW.
    out = out.reshape(N, H, Wp, Cout)[:, :, :W, :]
    return jnp.transpose(out, (0, 3, 1, 2))


# ---------------------------------------------------------------------------
# Deterministic parameter init (shapes from the nn.Module __init__), with
# inference-mode BN folded into the conv weights (scale) and a bias term.
# ---------------------------------------------------------------------------
def init_params(key, inplanes, planes):
    expansion = 4
    ks = jax.random.split(key, 7)
    w1 = 0.1 * jax.random.normal(ks[0], (planes, inplanes, 1, 1), jnp.float32)
    w2 = 0.1 * jax.random.normal(ks[1], (planes, planes, 3, 3), jnp.float32)
    w3 = 0.1 * jax.random.normal(ks[2], (planes * expansion, planes, 1, 1),
                                 jnp.float32)

    def bn(k, c):
        k1, k2, k3, k4 = jax.random.split(k, 4)
        gamma = 1.0 + 0.1 * jax.random.normal(k1, (c,), jnp.float32)
        beta = 0.1 * jax.random.normal(k2, (c,), jnp.float32)
        mean = 0.1 * jax.random.normal(k3, (c,), jnp.float32)
        var = jax.random.uniform(k4, (c,), jnp.float32, 0.5, 1.5)
        scale = gamma / jnp.sqrt(var + 1e-5)                   # eval-mode fold
        bias = beta - mean * scale
        return scale, bias

    s1, b1 = bn(ks[3], planes)
    s2, b2 = bn(ks[4], planes)
    s3, b3 = bn(ks[5], planes * expansion)

    # Fold BN scale into weights (per output channel); cast to bf16 for MXU.
    w1_2d = w1[:, :, 0, 0].T * s1[None, :]                                  # (Cin, P)
    w2_taps = (jnp.transpose(w2, (2, 3, 1, 0)) * s2[None, None, None, :]
               ).reshape(9, planes, planes)                                 # (9, P, P)
    w3_2d = w3[:, :, 0, 0].T * s3[None, :]                                  # (P, 4P)

    params = {
        "w1": w1_2d.astype(jnp.bfloat16),
        "w2": w2_taps.astype(jnp.bfloat16),
        "w3": w3_2d.astype(jnp.bfloat16),
        "b1": b1.reshape(1, -1),
        "b2": b2.reshape(1, -1),
        "b3": b3.reshape(1, -1),
    }
    ref = {"w1": w1, "w2": w2, "w3": w3,
           "s1": s1, "b1": b1, "s2": s2, "b2": b2, "s3": s3, "b3": b3}
    return params, ref


# Pure-JAX f32 reference (lax.conv) for verification.
def reference_forward(x, ref):
    def conv(x, w, pad=0):
        return lax.conv_general_dilated(
            x, w, (1, 1), [(pad, pad), (pad, pad)],
            dimension_numbers=("NCHW", "OIHW", "NCHW"))

    def bn(x, s, b):
        return x * s[None, :, None, None] + b[None, :, None, None]

    out = jax.nn.relu(bn(conv(x, ref["w1"]), ref["s1"], ref["b1"]))
    out = jax.nn.relu(bn(conv(out, ref["w2"], pad=1), ref["s2"], ref["b2"]))
    out = bn(conv(out, ref["w3"]), ref["s3"], ref["b3"])
    return jax.nn.relu(out + x)


if __name__ == "__main__":
    key = jax.random.PRNGKey(0)
    k_params, k_x = jax.random.split(key)

    N, planes = 2, 4
    inplanes = planes * 4          # required for downsample=None residual add
    H = W = 16

    params, ref = init_params(k_params, inplanes, planes)
    x = jax.random.normal(k_x, (N, inplanes, H, W), jnp.float32)

    out = jax.jit(bottleneck_forward)(x, params)
    out = jax.block_until_ready(out)

    expected = reference_forward(x, ref)
    assert out.shape == (N, planes * 4, H, W), out.shape
    # Kernel uses bf16 matmul operands (f32 accumulation); tolerance accounts
    # for bf16 quantization vs. the pure-f32 reference.
    max_err = float(jnp.max(jnp.abs(out - expected)))
    assert max_err < 2e-2, f"mismatch vs reference: {max_err}"
    print("KERNEL_OK")
</pallas_src>

<mosaic_0001>
module attributes {stable_mosaic.version = 11 : i64} {
  func.func @_bottleneck_kernel(%arg0: i32, %arg1: memref<1x342x16xbf16, #tpu.memory_space<vmem>>, %arg2: memref<1x288x16xf32, #tpu.memory_space<vmem>>, %arg3: memref<342x1xf32, #tpu.memory_space<vmem>>, %arg4: memref<16x4xbf16, #tpu.memory_space<vmem>>, %arg5: memref<1x4xf32, #tpu.memory_space<vmem>>, %arg6: memref<9x4x4xbf16, #tpu.memory_space<vmem>>, %arg7: memref<1x4xf32, #tpu.memory_space<vmem>>, %arg8: memref<4x16xbf16, #tpu.memory_space<vmem>>, %arg9: memref<1x16xf32, #tpu.memory_space<vmem>>, %arg10: memref<1x288x16xf32, #tpu.memory_space<vmem>>, %arg11: memref<342x4xf32, #tpu.memory_space<vmem>>) attributes {dimension_semantics = [#tpu.dimension_semantics<parallel>], iteration_bounds = array<i64: 2>, scalar_prefetch = 0 : i64, scratch_operands = 1 : i64, tpu.core_type = #tpu.core_type<tc>, window_params = [{transform_indices = @transform_0, window_bounds = array<i64: 1, 342, 16>}, {transform_indices = @transform_1, window_bounds = array<i64: 1, 288, 16>}, {pipeline_mode = #tpu.pipeline_mode<synchronous>, transform_indices = @transform_2, window_bounds = array<i64: 342, 1>}, {pipeline_mode = #tpu.pipeline_mode<synchronous>, transform_indices = @transform_3, window_bounds = array<i64: 16, 4>}, {pipeline_mode = #tpu.pipeline_mode<synchronous>, transform_indices = @transform_4, window_bounds = array<i64: 1, 4>}, {pipeline_mode = #tpu.pipeline_mode<synchronous>, transform_indices = @transform_5, window_bounds = array<i64: 9, 4, 4>}, {pipeline_mode = #tpu.pipeline_mode<synchronous>, transform_indices = @transform_6, window_bounds = array<i64: 1, 4>}, {pipeline_mode = #tpu.pipeline_mode<synchronous>, transform_indices = @transform_7, window_bounds = array<i64: 4, 16>}, {pipeline_mode = #tpu.pipeline_mode<synchronous>, transform_indices = @transform_8, window_bounds = array<i64: 1, 16>}, {transform_indices = @transform_9, window_bounds = array<i64: 1, 288, 16>}]} {
    %c0 = arith.constant 0 : index
    %c0_0 = arith.constant 0 : index
    %c0_1 = arith.constant 0 : index
    %0 = vector.load %arg1[%c0, %c0_0, %c0_1] : memref<1x342x16xbf16, #tpu.memory_space<vmem>>, vector<1x342x16xbf16>
    %1 = vector.shape_cast %0 : vector<1x342x16xbf16> to vector<342x16xbf16>
    %c0_2 = arith.constant 0 : index
    %c0_3 = arith.constant 0 : index
    %2 = vector.load %arg4[%c0_2, %c0_3] : memref<16x4xbf16, #tpu.memory_space<vmem>>, vector<16x4xbf16>
    %cst = arith.constant dense<0.000000e+00> : vector<342x4xf32>
    %3 = tpu.matmul %1, %2, %cst {dimension_numbers = #tpu.dot_dimension_numbers<[1], [0], [0], [1], [0, 0, 1, 1], [], []>} : vector<342x16xbf16>, vector<16x4xbf16>, vector<342x4xf32> -> vector<342x4xf32>
    %c0_4 = arith.constant 0 : index
    %c0_5 = arith.constant 0 : index
    %4 = vector.load %arg5[%c0_4, %c0_5] : memref<1x4xf32, #tpu.memory_space<vmem>>, vector<1x4xf32>
    %5 = vector.broadcast %4 : vector<1x4xf32> to vector<342x4xf32>
    %6 = arith.addf %3, %5 : vector<342x4xf32>
    %cst_6 = arith.constant 0.000000e+00 : f32
    %7 = vector.broadcast %cst_6 : f32 to vector<342x4xf32>
    %8 = arith.maximumf %6, %7 : vector<342x4xf32>
    %c0_7 = arith.constant 0 : index
    %c0_8 = arith.constant 0 : index
    %9 = vector.load %arg3[%c0_7, %c0_8] : memref<342x1xf32, #tpu.memory_space<vmem>>, vector<342x1xf32>
    %10 = vector.broadcast %9 : vector<342x1xf32> to vector<342x4xf32>
    %11 = arith.mulf %8, %10 : vector<342x4xf32>
    %c0_9 = arith.constant 0 : index
    %c0_10 = arith.constant 0 : index
    %12 = vector.load %arg11[%c0_9, %c0_10] : memref<342x4xf32, #tpu.memory_space<vmem>>, vector<342x4xf32>
    tpu.vector_store %arg11[%c0_9, %c0_10], %11 {strides = array<i32>} : memref<342x4xf32, #tpu.memory_space<vmem>>, vector<342x4xf32>,
    %cst_11 = arith.constant 0.000000e+00 : f32
    %13 = vector.broadcast %cst_11 : f32 to vector<288x4xf32>
    %c0_12 = arith.constant 0 : index
    %c0_13 = arith.constant 0 : index
    %14 = vector.load %arg11[%c0_12, %c0_13] : memref<342x4xf32, #tpu.memory_space<vmem>>, vector<288x4xf32>
    %15 = arith.truncf %14 : vector<288x4xf32> to vector<288x4xbf16>
    %c0_14 = arith.constant 0 : index
    %c0_15 = arith.constant 0 : index
    %c0_16 = arith.constant 0 : index
    %16 = vector.load %arg6[%c0_14, %c0_15, %c0_16] : memref<9x4x4xbf16, #tpu.memory_space<vmem>>, vector<1x4x4xbf16>
    %17 = vector.shape_cast %16 : vector<1x4x4xbf16> to vector<4x4xbf16>
    %cst_17 = arith.constant dense<0.000000e+00> : vector<288x4xf32>
    %18 = tpu.matmul %15, %17, %cst_17 {dimension_numbers = #tpu.dot_dimension_numbers<[1], [0], [0], [1], [0, 0, 1, 1], [], []>} : vector<288x4xbf16>, vector<4x4xbf16>, vector<288x4xf32> -> vector<288x4xf32>
    %19 = arith.addf %13, %18 : vector<288x4xf32>
    %c1 = arith.constant 1 : index
    %c0_18 = arith.constant 0 : index
    %20 = vector.load %arg11[%c1, %c0_18] : memref<342x4xf32, #tpu.memory_space<vmem>>, vector<288x4xf32>
    %21 = arith.truncf %20 : vector<288x4xf32> to vector<288x4xbf16>
    %c1_19 = arith.constant 1 : index
    %c0_20 = arith.constant 0 : index
    %c0_21 = arith.constant 0 : index
    %22 = vector.load %arg6[%c1_19, %c0_20, %c0_21] : memref<9x4x4xbf16, #tpu.memory_space<vmem>>, vector<1x4x4xbf16>
    %23 = vector.shape_cast %22 : vector<1x4x4xbf16> to vector<4x4xbf16>
    %cst_22 = arith.constant dense<0.000000e+00> : vector<288x4xf32>
    %24 = tpu.matmul %21, %23, %cst_22 {dimension_numbers = #tpu.dot_dimension_numbers<[1], [0], [0], [1], [0, 0, 1, 1], [], []>} : vector<288x4xbf16>, vector<4x4xbf16>, vector<288x4xf32> -> vector<288x4xf32>
    %25 = arith.addf %19, %24 : vector<288x4xf32>
    %c2 = arith.constant 2 : index
    %c0_23 = arith.constant 0 : index
    %26 = vector.load %arg11[%c2, %c0_23] : memref<342x4xf32, #tpu.memory_space<vmem>>, vector<288x4xf32>
    %27 = arith.truncf %26 : vector<288x4xf32> to vector<288x4xbf16>
    %c2_24 = arith.constant 2 : index
    %c0_25 = arith.constant 0 : index
    %c0_26 = arith.constant 0 : index
    %28 = vector.load %arg6[%c2_24, %c0_25, %c0_26] : memref<9x4x4xbf16, #tpu.memory_space<vmem>>, vector<1x4x4xbf16>
    %29 = vector.shape_cast %28 : vector<1x4x4xbf16> to vector<4x4xbf16>
    %cst_27 = arith.constant dense<0.000000e+00> : vector<288x4xf32>
    %30 = tpu.matmul %27, %29, %cst_27 {dimension_numbers = #tpu.dot_dimension_numbers<[1], [0], [0], [1], [0, 0, 1, 1], [], []>} : vector<288x4xbf16>, vector<4x4xbf16>, vector<288x4xf32> -> vector<288x4xf32>
    %31 = arith.addf %25, %30 : vector<288x4xf32>
    %c18 = arith.constant 18 : index
    %c0_28 = arith.constant 0 : index
    %32 = vector.load %arg11[%c18, %c0_28] : memref<342x4xf32, #tpu.memory_space<vmem>>, vector<288x4xf32>
    %33 = arith.truncf %32 : vector<288x4xf32> to vector<288x4xbf16>
    %c3 = arith.constant 3 : index
    %c0_29 = arith.constant 0 : index
    %c0_30 = arith.constant 0 : index
    %34 = vector.load %arg6[%c3, %c0_29, %c0_30] : memref<9x4x4xbf16, #tpu.memory_space<vmem>>, vector<1x4x4xbf16>
    %35 = vector.shape_cast %34 : vector<1x4x4xbf16> to vector<4x4xbf16>
    %cst_31 = arith.constant dense<0.000000e+00> : vector<288x4xf32>
    %36 = tpu.matmul %33, %35, %cst_31 {dimension_numbers = #tpu.dot_dimension_numbers<[1], [0], [0], [1], [0, 0, 1, 1], [], []>} : vector<288x4xbf16>, vector<4x4xbf16>, vector<288x4xf32> -> vector<288x4xf32>
    %37 = arith.addf %31, %36 : vector<288x4xf32>
    %c19 = arith.constant 19 : index
    %c0_32 = arith.constant 0 : index
    %38 = vector.load %arg11[%c19, %c0_32] : memref<342x4xf32, #tpu.memory_space<vmem>>, vector<288x4xf32>
    %39 = arith.truncf %38 : vector<288x4xf32> to vector<288x4xbf16>
    %c4 = arith.constant 4 : index
    %c0_33 = arith.constant 0 : index
    %c0_34 = arith.constant 0 : index
    %40 = vector.load %arg6[%c4, %c0_33, %c0_34] : memref<9x4x4xbf16, #tpu.memory_space<vmem>>, vector<1x4x4xbf16>
    %41 = vector.shape_cast %40 : vector<1x4x4xbf16> to vector<4x4xbf16>
    %cst_35 = arith.constant dense<0.000000e+00> : vector<288x4xf32>
    %42 = tpu.matmul %39, %41, %cst_35 {dimension_numbers = #tpu.dot_dimension_numbers<[1], [0], [0], [1], [0, 0, 1, 1], [], []>} : vector<288x4xbf16>, vector<4x4xbf16>, vector<288x4xf32> -> vector<288x4xf32>
    %43 = arith.addf %37, %42 : vector<288x4xf32>
    %c20 = arith.constant 20 : index
    %c0_36 = arith.constant 0 : index
    %44 = vector.load %arg11[%c20, %c0_36] : memref<342x4xf32, #tpu.memory_space<vmem>>, vector<288x4xf32>
    %45 = arith.truncf %44 : vector<288x4xf32> to vector<288x4xbf16>
    %c5 = arith.constant 5 : index
    %c0_37 = arith.constant 0 : index
    %c0_38 = arith.constant 0 : index
    %46 = vector.load %arg6[%c5, %c0_37, %c0_38] : memref<9x4x4xbf16, #tpu.memory_space<vmem>>, vector<1x4x4xbf16>
    %47 = vector.shape_cast %46 : vector<1x4x4xbf16> to vector<4x4xbf16>
    %cst_39 = arith.constant dense<0.000000e+00> : vector<288x4xf32>
    %48 = tpu.matmul %45, %47, %cst_39 {dimension_numbers = #tpu.dot_dimension_numbers<[1], [0], [0], [1], [0, 0, 1, 1], [], []>} : vector<288x4xbf16>, vector<4x4xbf16>, vector<288x4xf32> -> vector<288x4xf32>
    %49 = arith.addf %43, %48 : vector<288x4xf32>
    %c36 = arith.constant 36 : index
    %c0_40 = arith.constant 0 : index
    %50 = vector.load %arg11[%c36, %c0_40] : memref<342x4xf32, #tpu.memory_space<vmem>>, vector<288x4xf32>
    %51 = arith.truncf %50 : vector<288x4xf32> to vector<288x4xbf16>
    %c6 = arith.constant 6 : index
    %c0_41 = arith.constant 0 : index
    %c0_42 = arith.constant 0 : index
    %52 = vector.load %arg6[%c6, %c0_41, %c0_42] : memref<9x4x4xbf16, #tpu.memory_space<vmem>>, vector<1x4x4xbf16>
    %53 = vector.shape_cast %52 : vector<1x4x4xbf16> to vector<4x4xbf16>
    %cst_43 = arith.constant dense<0.000000e+00> : vector<288x4xf32>
    %54 = tpu.matmul %51, %53, %cst_43 {dimension_numbers = #tpu.dot_dimension_numbers<[1], [0], [0], [1], [0, 0, 1, 1], [], []>} : vector<288x4xbf16>, vector<4x4xbf16>, vector<288x4xf32> -> vector<288x4xf32>
    %55 = arith.addf %49, %54 : vector<288x4xf32>
    %c37 = arith.constant 37 : index
    %c0_44 = arith.constant 0 : index
    %56 = vector.load %arg11[%c37, %c0_44] : memref<342x4xf32, #tpu.memory_space<vmem>>, vector<288x4xf32>
    %57 = arith.truncf %56 : vector<288x4xf32> to vector<288x4xbf16>
    %c7 = arith.constant 7 : index
    %c0_45 = arith.constant 0 : index
    %c0_46 = arith.constant 0 : index
    %58 = vector.load %arg6[%c7, %c0_45, %c0_46] : memref<9x4x4xbf16, #tpu.memory_space<vmem>>, vector<1x4x4xbf16>
    %59 = vector.shape_cast %58 : vector<1x4x4xbf16> to vector<4x4xbf16>
    %cst_47 = arith.constant dense<0.000000e+00> : vector<288x4xf32>
    %60 = tpu.matmul %57, %59, %cst_47 {dimension_numbers = #tpu.dot_dimension_numbers<[1], [0], [0], [1], [0, 0, 1, 1], [], []>} : vector<288x4xbf16>, vector<4x4xbf16>, vector<288x4xf32> -> vector<288x4xf32>
    %61 = arith.addf %55, %60 : vector<288x4xf32>
    %c38 = arith.constant 38 : index
    %c0_48 = arith.constant 0 : index
    %62 = vector.load %arg11[%c38, %c0_48] : memref<342x4xf32, #tpu.memory_space<vmem>>, vector<288x4xf32>
    %63 = arith.truncf %62 : vector<288x4xf32> to vector<288x4xbf16>
    %c8 = arith.constant 8 : index
    %c0_49 = arith.constant 0 : index
    %c0_50 = arith.constant 0 : index
    %64 = vector.load %arg6[%c8, %c0_49, %c0_50] : memref<9x4x4xbf16, #tpu.memory_space<vmem>>, vector<1x4x4xbf16>
    %65 = vector.shape_cast %64 : vector<1x4x4xbf16> to vector<4x4xbf16>
    %cst_51 = arith.constant dense<0.000000e+00> : vector<288x4xf32>
    %66 = tpu.matmul %63, %65, %cst_51 {dimension_numbers = #tpu.dot_dimension_numbers<[1], [0], [0], [1], [0, 0, 1, 1], [], []>} : vector<288x4xbf16>, vector<4x4xbf16>, vector<288x4xf32> -> vector<288x4xf32>
    %67 = arith.addf %61, %66 : vector<288x4xf32>
    %c0_52 = arith.constant 0 : index
    %c0_53 = arith.constant 0 : index
    %68 = vector.load %arg7[%c0_52, %c0_53] : memref<1x4xf32, #tpu.memory_space<vmem>>, vector<1x4xf32>
    %69 = vector.broadcast %68 : vector<1x4xf32> to vector<288x4xf32>
    %70 = arith.addf %67, %69 : vector<288x4xf32>
    %cst_54 = arith.constant 0.000000e+00 : f32
    %71 = vector.broadcast %cst_54 : f32 to vector<288x4xf32>
    %72 = arith.maximumf %70, %71 : vector<288x4xf32>
    %73 = arith.truncf %72 : vector<288x4xf32> to vector<288x4xbf16>
    %c0_55 = arith.constant 0 : index
    %c0_56 = arith.constant 0 : index
    %74 = vector.load %arg8[%c0_55, %c0_56] : memref<4x16xbf16, #tpu.memory_space<vmem>>, vector<4x16xbf16>
    %cst_57 = arith.constant dense<0.000000e+00> : vector<288x16xf32>
    %75 = tpu.matmul %73, %74, %cst_57 {dimension_numbers = #tpu.dot_dimension_numbers<[1], [0], [0], [1], [0, 0, 1, 1], [], []>} : vector<288x4xbf16>, vector<4x16xbf16>, vector<288x16xf32> -> vector<288x16xf32>
    %c0_58 = arith.constant 0 : index
    %c0_59 = arith.constant 0 : index
    %76 = vector.load %arg9[%c0_58, %c0_59] : memref<1x16xf32, #tpu.memory_space<vmem>>, vector<1x16xf32>
    %77 = vector.broadcast %76 : vector<1x16xf32> to vector<288x16xf32>
    %78 = arith.addf %75, %77 : vector<288x16xf32>
    %c0_60 = arith.constant 0 : index
    %c0_61 = arith.constant 0 : index
    %c0_62 = arith.constant 0 : index
    %79 = vector.load %arg2[%c0_60, %c0_61, %c0_62] : memref<1x288x16xf32, #tpu.memory_space<vmem>>, vector<1x288x16xf32>
    %80 = vector.shape_cast %79 : vector<1x288x16xf32> to vector<288x16xf32>
    %81 = arith.addf %78, %80 : vector<288x16xf32>
    %cst_63 = arith.constant 0.000000e+00 : f32
    %82 = vector.broadcast %cst_63 : f32 to vector<288x16xf32>
    %83 = arith.maximumf %81, %82 : vector<288x16xf32>
    %c0_64 = arith.constant 0 : index
    %c0_65 = arith.constant 0 : index
    %c0_66 = arith.constant 0 : index
    %84 = vector.load %arg10[%c0_64, %c0_65, %c0_66] : memref<1x288x16xf32, #tpu.memory_space<vmem>>, vector<1x288x16xf32>
    %85 = vector.shape_cast %84 : vector<1x288x16xf32> to vector<288x16xf32>
    %86 = vector.shape_cast %83 : vector<288x16xf32> to vector<1x288x16xf32>
    tpu.vector_store %arg10[%c0_64, %c0_65, %c0_66], %86 {strides = array<i32>} : memref<1x288x16xf32, #tpu.memory_space<vmem>>, vector<1x288x16xf32>,
    return
  }
  func.func @transform_0(%arg0: i32) -> (i32, i32, i32) {
    %c0_i32 = arith.constant 0 : i32
    %c0_i32_0 = arith.constant 0 : i32
    %c0_i32_1 = arith.constant 0 : i32
    return %arg0, %c0_i32, %c0_i32_0 : i32, i32, i32
  }
  func.func @transform_1(%arg0: i32) -> (i32, i32, i32) {
    %c0_i32 = arith.constant 0 : i32
    %c0_i32_0 = arith.constant 0 : i32
    %c0_i32_1 = arith.constant 0 : i32
    return %arg0, %c0_i32, %c0_i32_0 : i32, i32, i32
  }
  func.func @transform_2(%arg0: i32) -> (i32, i32) {
    %c0_i32 = arith.constant 0 : i32
    %c0_i32_0 = arith.constant 0 : i32
    %c0_i32_1 = arith.constant 0 : i32
    return %c0_i32, %c0_i32_0 : i32, i32
  }
  func.func @transform_3(%arg0: i32) -> (i32, i32) {
    %c0_i32 = arith.constant 0 : i32
    %c0_i32_0 = arith.constant 0 : i32
    %c0_i32_1 = arith.constant 0 : i32
    return %c0_i32, %c0_i32_0 : i32, i32
  }
  func.func @transform_4(%arg0: i32) -> (i32, i32) {
    %c0_i32 = arith.constant 0 : i32
    %c0_i32_0 = arith.constant 0 : i32
    %c0_i32_1 = arith.constant 0 : i32
    return %c0_i32, %c0_i32_0 : i32, i32
  }
  func.func @transform_5(%arg0: i32) -> (i32, i32, i32) {
    %c0_i32 = arith.constant 0 : i32
    %c0_i32_0 = arith.constant 0 : i32
    %c0_i32_1 = arith.constant 0 : i32
    %c0_i32_2 = arith.constant 0 : i32
    return %c0_i32, %c0_i32_0, %c0_i32_1 : i32, i32, i32
  }
  func.func @transform_6(%arg0: i32) -> (i32, i32) {
    %c0_i32 = arith.constant 0 : i32
    %c0_i32_0 = arith.constant 0 : i32
    %c0_i32_1 = arith.constant 0 : i32
    return %c0_i32, %c0_i32_0 : i32, i32
  }
  func.func @transform_7(%arg0: i32) -> (i32, i32) {
    %c0_i32 = arith.constant 0 : i32
    %c0_i32_0 = arith.constant 0 : i32
    %c0_i32_1 = arith.constant 0 : i32
    return %c0_i32, %c0_i32_0 : i32, i32
  }
  func.func @transform_8(%arg0: i32) -> (i32, i32) {
    %c0_i32 = arith.constant 0 : i32
    %c0_i32_0 = arith.constant 0 : i32
    %c0_i32_1 = arith.constant 0 : i32
    return %c0_i32, %c0_i32_0 : i32, i32
  }
  func.func @transform_9(%arg0: i32) -> (i32, i32, i32) {
    %c0_i32 = arith.constant 0 : i32
    %c0_i32_0 = arith.constant 0 : i32
    %c0_i32_1 = arith.constant 0 : i32
    return %arg0, %c0_i32, %c0_i32_0 : i32, i32, i32
  }
}

</mosaic_0001>

<llo_original>
// kernel: bottleneck_forward.1
$region0: #{bottleneck_forward.1}
  #allocation0 [shape = 'u32[]', space=smem, size = 0x4, offset = 0x4, fixed_abs, tag = 'smem constant byte address 0x4 - core index']
  #allocation1 [shape = 'u32[144,128]{1,0:T(1,128)}', space=vmem, size = 0x12000, scoped, tag = 'internal scratch']
  #allocation2 [shape = 'f32[342,4]{1,0:T(8,128)}', space=vmem, size = 0x2b000, scoped, tag = 'scratch operand']
  %s0 = inlined_call_operand.vmem [shape: bf16[2,342,16], index: 0, kind: input, shape index: {}]
  %s1 = inlined_call_operand.vmem [shape: f32[2,288,16], index: 1, kind: input, shape index: {}]
  %s2 = inlined_call_operand.vmem [shape: f32[342,1], index: 2, kind: input, shape index: {}]
  %s3 = inlined_call_operand.vmem [shape: bf16[16,4], index: 3, kind: input, shape index: {}]
  %s4 = inlined_call_operand.vmem [shape: f32[1,4], index: 4, kind: input, shape index: {}]
  %s5 = inlined_call_operand.vmem [shape: bf16[9,4,4], index: 5, kind: input, shape index: {}]
  %s6 = inlined_call_operand.vmem [shape: f32[1,4], index: 6, kind: input, shape index: {}]
  %s7 = inlined_call_operand.vmem [shape: bf16[4,16], index: 7, kind: input, shape index: {}]
  %s8 = inlined_call_operand.vmem [shape: f32[1,16], index: 8, kind: input, shape index: {}]
  %s9 = inlined_call_operand.vmem [shape: f32[2,288,16], index: 9, kind: output, shape index: {}]
  %s10 = sld [smem:[#allocation0]]
  $region69: #{bottleneck_forward.1} parent=0
    _
  %s12 = ssub.s32 1, %s10
  %s13 = scalar_select 0, %s12, %s10
  loop: start=0, step=1, limit=4
  $region2: #{bottleneck_forward.1} parent=0 // loop_pre_header
    _
  $region3: #{bottleneck_forward.1} parent=0 // loop_header
    %s15 = sphi 0, %s19
    %p16 = scmp.ge.s32.totalorder %s15, 4
    %s25 = sphi 0, %s27
    %s28 = sphi 0, %s25
    %s29 = sphi 0, %s28
    %s45 = sphi 0, %s29
    %s51 = sphi 0, %s53
    %s54 = sphi 0, %s51
    %s55 = sphi 0, %s54
    %s71 = sphi 0, %s55
    %s75 = sphi 0, %s75
    %s77 = sphi 0, %s75
    %s78 = sphi 0, %s77
    %s92 = sphi 0, %s78
    %s96 = sphi 0, %s96
    %s98 = sphi 0, %s96
    %s99 = sphi 0, %s98
    %s113 = sphi 0, %s99
    %s117 = sphi 0, %s117
    %s119 = sphi 0, %s117
    %s120 = sphi 0, %s119
    %s134 = sphi 0, %s120
    %s138 = sphi 0, %s138
    %s140 = sphi 0, %s138
    %s141 = sphi 0, %s140
    %s155 = sphi 0, %s141
    %s159 = sphi 0, %s159
    %s161 = sphi 0, %s159
    %s162 = sphi 0, %s161
    %s176 = sphi 0, %s162
    %s180 = sphi 0, %s180
    %s182 = sphi 0, %s180
    %s183 = sphi 0, %s182
    %s197 = sphi 0, %s183
    %s201 = sphi 0, %s201
    %s203 = sphi 0, %s201
    %s204 = sphi 0, %s203
    %s218 = sphi 0, %s204
    %s224 = sphi 0, %s226
    %s227 = sphi 0, %s224
    %s228 = sphi 0, %s227
    %s244 = sphi 0, %s228
  $region4: #{bottleneck_forward.1} parent=0 // loop_header_branch
    %18 = sbr.rel (%p16) target = $region8
  $region5: #{bottleneck_forward.1} parent=0 // loop_body
    %s20 = ssub.s32 %s15, 1
    %s21 = ssub.s32 %s15, 2
    %s22 = sadd.s32 %s15, 1
    %s23 = ssub.s32 %s15, %s22
    %p24 = scmp.eq.s32.totalorder %s23, 0
    %s26 = sadd.s32 %s25, 1
    %s27 = scalar_select %p24, %s25, %s26
    %p30 = pneg %p24
    %p31 = scmp.eq.s32.totalorder %s15, 1
    %p32 = por %p30, %p31
    %p33 = scmp.ne.s32.totalorder %s25, %s28
    %p34 = scmp.eq.s32.totalorder %s15, 0
    %p35 = por %p33, %p34
    %p36 = scmp.ne.s32.totalorder %s25, %s28
    %p37 = scmp.eq.s32.totalorder %s20, 1
    %p38 = por %p36, %p37
    %p39 = scmp.ne.s32.totalorder %s28, %s29
    %p40 = scmp.eq.s32.totalorder %s20, 0
    %p41 = por %p39, %p40
    %p42 = scmp.ne.s32.totalorder %s28, %s29
    %p43 = scmp.eq.s32.totalorder %s21, 1
    %p44 = por %p42, %p43
    %p46 = scmp.ne.s32.totalorder %s29, %s45
    %p47 = scmp.eq.s32.totalorder %s21, 0
    %p48 = por %p46, %p47
    %s49 = ssub.s32 %s15, %s22
    %p50 = scmp.eq.s32.totalorder %s49, 0
    %s52 = sadd.s32 %s51, 1
    %s53 = scalar_select %p50, %s51, %s52
    %p56 = pneg %p50
    %p57 = scmp.eq.s32.totalorder %s15, 1
    %p58 = por %p56, %p57
    %p59 = scmp.ne.s32.totalorder %s51, %s54
    %p60 = scmp.eq.s32.totalorder %s15, 0
    %p61 = por %p59, %p60
    %p62 = scmp.ne.s32.totalorder %s51, %s54
    %p63 = scmp.eq.s32.totalorder %s20, 1
    %p64 = por %p62, %p63
    %p65 = scmp.ne.s32.totalorder %s54, %s55
    %p66 = scmp.eq.s32.totalorder %s20, 0
    %p67 = por %p65, %p66
    %p68 = scmp.ne.s32.totalorder %s54, %s55
    %p69 = scmp.eq.s32.totalorder %s21, 1
    %p70 = por %p68, %p69
    %p72 = scmp.ne.s32.totalorder %s55, %s71
    %p73 = scmp.eq.s32.totalorder %s21, 0
    %p74 = por %p72, %p73
    %s76 = sadd.s32 %s75, 1
    %p79 = scmp.eq.s32.totalorder %s15, 1
    %p80 = scmp.ne.s32.totalorder %s75, %s77
    %p81 = scmp.eq.s32.totalorder %s15, 0
    %p82 = por %p80, %p81
    %p83 = scmp.ne.s32.totalorder %s75, %s77
    %p84 = scmp.eq.s32.totalorder %s20, 1
    %p85 = por %p83, %p84
    %p86 = scmp.ne.s32.totalorder %s77, %s78
    %p87 = scmp.eq.s32.totalorder %s20, 0
    %p88 = por %p86, %p87
    %p89 = scmp.ne.s32.totalorder %s77, %s78
    %p90 = scmp.eq.s32.totalorder %s21, 1
    %p91 = por %p89, %p90
    %p93 = scmp.ne.s32.totalorder %s78, %s92
    %p94 = scmp.eq.s32.totalorder %s21, 0
    %p95 = por %p93, %p94
    %s97 = sadd.s32 %s96, 1
    %p100 = scmp.eq.s32.totalorder %s15, 1
    %p101 = scmp.ne.s32.totalorder %s96, %s98
    %p102 = scmp.eq.s32.totalorder %s15, 0
    %p103 = por %p101, %p102
    %p104 = scmp.ne.s32.totalorder %s96, %s98
    %p105 = scmp.eq.s32.totalorder %s20, 1
    %p106 = por %p104, %p105
    %p107 = scmp.ne.s32.totalorder %s98, %s99
    %p108 = scmp.eq.s32.totalorder %s20, 0
    %p109 = por %p107, %p108
    %p110 = scmp.ne.s32.totalorder %s98, %s99
    %p111 = scmp.eq.s32.totalorder %s21, 1
    %p112 = por %p110, %p111
    %p114 = scmp.ne.s32.totalorder %s99, %s113
    %p115 = scmp.eq.s32.totalorder %s21, 0
    %p116 = por %p114, %p115
    %s118 = sadd.s32 %s117, 1
    %p121 = scmp.eq.s32.totalorder %s15, 1
    %p122 = scmp.ne.s32.totalorder %s117, %s119
    %p123 = scmp.eq.s32.totalorder %s15, 0
    %p124 = por %p122, %p123
    %p125 = scmp.ne.s32.totalorder %s117, %s119
    %p126 = scmp.eq.s32.totalorder %s20, 1
    %p127 = por %p125, %p126
    %p128 = scmp.ne.s32.totalorder %s119, %s120
    %p129 = scmp.eq.s32.totalorder %s20, 0
    %p130 = por %p128, %p129
    %p131 = scmp.ne.s32.totalorder %s119, %s120
    %p132 = scmp.eq.s32.totalorder %s21, 1
    %p133 = por %p131, %p132
    %p135 = scmp.ne.s32.totalorder %s120, %s134
    %p136 = scmp.eq.s32.totalorder %s21, 0
    %p137 = por %p135, %p136
    %s139 = sadd.s32 %s138, 1
    %p142 = scmp.eq.s32.totalorder %s15, 1
    %p143 = scmp.ne.s32.totalorder %s138, %s140
    %p144 = scmp.eq.s32.totalorder %s15, 0
    %p145 = por %p143, %p144
    %p146 = scmp.ne.s32.totalorder %s138, %s140
    %p147 = scmp.eq.s32.totalorder %s20, 1
    %p148 = por %p146, %p147
    %p149 = scmp.ne.s32.totalorder %s140, %s141
    %p150 = scmp.eq.s32.totalorder %s20, 0
    %p151 = por %p149, %p150
    %p152 = scmp.ne.s32.totalorder %s140, %s141
    %p153 = scmp.eq.s32.totalorder %s21, 1
    %p154 = por %p152, %p153
    %p156 = scmp.ne.s32.totalorder %s141, %s155
    %p157 = scmp.eq.s32.totalorder %s21, 0
    %p158 = por %p156, %p157
    %s160 = sadd.s32 %s159, 1
    %p163 = scmp.eq.s32.totalorder %s15, 1
    %p164 = scmp.ne.s32.totalorder %s159, %s161
    %p165 = scmp.eq.s32.totalorder %s15, 0
    %p166 = por %p164, %p165
    %p167 = scmp.ne.s32.totalorder %s159, %s161
    %p168 = scmp.eq.s32.totalorder %s20, 1
    %p169 = por %p167, %p168
    %p170 = scmp.ne.s32.totalorder %s161, %s162
    %p171 = scmp.eq.s32.totalorder %s20, 0
    %p172 = por %p170, %p171
    %p173 = scmp.ne.s32.totalorder %s161, %s162
    %p174 = scmp.eq.s32.totalorder %s21, 1
    %p175 = por %p173, %p174
    %p177 = scmp.ne.s32.totalorder %s162, %s176
    %p178 = scmp.eq.s32.totalorder %s21, 0
    %p179 = por %p177, %p178
    %s181 = sadd.s32 %s180, 1
    %p184 = scmp.eq.s32.totalorder %s15, 1
    %p185 = scmp.ne.s32.totalorder %s180, %s182
    %p186 = scmp.eq.s32.totalorder %s15, 0
    %p187 = por %p185, %p186
    %p188 = scmp.ne.s32.totalorder %s180, %s182
    %p189 = scmp.eq.s32.totalorder %s20, 1
    %p190 = por %p188, %p189
    %p191 = scmp.ne.s32.totalorder %s182, %s183
    %p192 = scmp.eq.s32.totalorder %s20, 0
    %p193 = por %p191, %p192
    %p194 = scmp.ne.s32.totalorder %s182, %s183
    %p195 = scmp.eq.s32.totalorder %s21, 1
    %p196 = por %p194, %p195
    %p198 = scmp.ne.s32.totalorder %s183, %s197
    %p199 = scmp.eq.s32.totalorder %s21, 0
    %p200 = por %p198, %p199
    %s202 = sadd.s32 %s201, 1
    %p205 = scmp.eq.s32.totalorder %s15, 1
    %p206 = scmp.ne.s32.totalorder %s201, %s203
    %p207 = scmp.eq.s32.totalorder %s15, 0
    %p208 = por %p206, %p207
    %p209 = scmp.ne.s32.totalorder %s201, %s203
    %p210 = scmp.eq.s32.totalorder %s20, 1
    %p211 = por %p209, %p210
    %p212 = scmp.ne.s32.totalorder %s203, %s204
    %p213 = scmp.eq.s32.totalorder %s20, 0
    %p214 = por %p212, %p213
    %p215 = scmp.ne.s32.totalorder %s203, %s204
    %p216 = scmp.eq.s32.totalorder %s21, 1
    %p217 = por %p215, %p216
    %p219 = scmp.ne.s32.totalorder %s204, %s218
    %p220 = scmp.eq.s32.totalorder %s21, 0
    %p221 = por %p219, %p220
    %s222 = ssub.s32 %s15, %s22
    %p223 = scmp.eq.s32.totalorder %s222, 0
    %s225 = sadd.s32 %s224, 1
    %s226 = scalar_select %p223, %s224, %s225
    %p229 = pneg %p223
    %p230 = scmp.eq.s32.totalorder %s15, 1
    %p231 = por %p229, %p230
    %p232 = scmp.ne.s32.totalorder %s224, %s227
    %p233 = scmp.eq.s32.totalorder %s15, 0
    %p234 = por %p232, %p233
    %p235 = scmp.ne.s32.totalorder %s224, %s227
    %p236 = scmp.eq.s32.totalorder %s20, 1
    %p237 = por %p235, %p236
    %p238 = scmp.ne.s32.totalorder %s227, %s228
    %p239 = scmp.eq.s32.totalorder %s20, 0
    %p240 = por %p238, %p239
    %p241 = scmp.ne.s32.totalorder %s227, %s228
    %p242 = scmp.eq.s32.totalorder %s21, 1
    %p243 = por %p241, %p242
    %p245 = scmp.ne.s32.totalorder %s228, %s244
    %p246 = scmp.eq.s32.totalorder %s21, 0
    %p247 = por %p245, %p246
    %p248 = scmp.le.s32.totalorder 1, %s15
    %p249 = scmp.lt.s32.totalorder %s15, 3
    %p250 = pnand %p248, %p249
    %p251 = pneg %p250
    // Predicated region
    $region9: #{bottleneck_forward.1} parent=5 // pred_check
      _
    $region10: #{bottleneck_forward.1} parent=5 // pred_check_branch
      %253 = sbr.rel (%p250) target = $region12
    $region11: #{bottleneck_forward.1} parent=5 // pred_region
      %s254 = ssub.s32 %s15, 1
      // Predicated region
      $region13: #{bottleneck_forward.1} parent=11 // pred_check
        %p255 = pneg %p88
      $region14: #{bottleneck_forward.1} parent=11 // pred_check_branch
        %257 = sbr.rel (%p255) target = $region16
      $region15: #{bottleneck_forward.1} parent=11 // pred_region
        _
      $region16: #{bottleneck_forward.1} parent=11 // pred_fallthru
        _
      // Predicated region
      $region17: #{bottleneck_forward.1} parent=11 // pred_check
        %p258 = pneg %p109
      $region18: #{bottleneck_forward.1} parent=11 // pred_check_branch
        %260 = sbr.rel (%p258) target = $region20
      $region19: #{bottleneck_forward.1} parent=11 // pred_region
        _
      $region20: #{bottleneck_forward.1} parent=11 // pred_fallthru
        _
      // Predicated region
      $region21: #{bottleneck_forward.1} parent=11 // pred_check
        %p261 = pneg %p130
      $region22: #{bottleneck_forward.1} parent=11 // pred_check_branch
        %263 = sbr.rel (%p261) target = $region24
      $region23: #{bottleneck_forward.1} parent=11 // pred_region
        _
      $region24: #{bottleneck_forward.1} parent=11 // pred_fallthru
        _
      // Predicated region
      $region25: #{bottleneck_forward.1} parent=11 // pred_check
        %p264 = pneg %p151
      $region26: #{bottleneck_forward.1} parent=11 // pred_check_branch
        %266 = sbr.rel (%p264) target = $region28
      $region27: #{bottleneck_forward.1} parent=11 // pred_region
        _
      $region28: #{bottleneck_forward.1} parent=11 // pred_fallthru
        _
      // Predicated region
      $region29: #{bottleneck_forward.1} parent=11 // pred_check
        %p267 = pneg %p172
      $region30: #{bottleneck_forward.1} parent=11 // pred_check_branch
        %269 = sbr.rel (%p267) target = $region32
      $region31: #{bottleneck_forward.1} parent=11 // pred_region
        _
      $region32: #{bottleneck_forward.1} parent=11 // pred_fallthru
        _
      // Predicated region
      $region33: #{bottleneck_forward.1} parent=11 // pred_check
        %p270 = pneg %p193
      $region34: #{bottleneck_forward.1} parent=11 // pred_check_branch
        %272 = sbr.rel (%p270) target = $region36
      $region35: #{bottleneck_forward.1} parent=11 // pred_region
        _
      $region36: #{bottleneck_forward.1} parent=11 // pred_fallthru
        _
      // Predicated region
      $region37: #{bottleneck_forward.1} parent=11 // pred_check
        %p273 = pneg %p214
      $region38: #{bottleneck_forward.1} parent=11 // pred_check_branch
        %275 = sbr.rel (%p273) target = $region40
      $region39: #{bottleneck_forward.1} parent=11 // pred_region
        _
      $region40: #{bottleneck_forward.1} parent=11 // pred_fallthru
        _
    $region12: #{bottleneck_forward.1} parent=5 // pred_fallthru
      _
    %p276 = scmp.lt.s32.totalorder %s15, 2
    // Predicated region
    $region41: #{bottleneck_forward.1} parent=5 // pred_check
      %p277 = pneg %p276
    $region42: #{bottleneck_forward.1} parent=5 // pred_check_branch
      %279 = sbr.rel (%p277) target = $region44
    $region43: #{bottleneck_forward.1} parent=5 // pred_region
      // Predicated region
      $region45: #{bottleneck_forward.1} parent=43 // pred_check
        %p280 = pneg %p35
      $region46: #{bottleneck_forward.1} parent=43 // pred_check_branch
        %282 = sbr.rel (%p280) target = $region48
      $region47: #{bottleneck_forward.1} parent=43 // pred_region
        %p283 = scmp.lt.s32.totalorder %s15, 1
        %s284 = scalar_select %p283, %s15, 1
        %s285 = smul.addr %s284, 43
        %s286 = smul.addr %s285, 4
        %s287 = scalar_lea.vmem %s0, %s286
      $region48: #{bottleneck_forward.1} parent=43 // pred_fallthru
        _
      // Predicated region
      $region49: #{bottleneck_forward.1} parent=43 // pred_check
        %p288 = pneg %p61
      $region50: #{bottleneck_forward.1} parent=43 // pred_check_branch
        %290 = sbr.rel (%p288) target = $region52
      $region51: #{bottleneck_forward.1} parent=43 // pred_region
        %p291 = scmp.lt.s32.totalorder %s15, 1
        %s292 = scalar_select %p291, %s15, 1
        %s293 = smul.addr %s292, 36
        %s294 = smul.addr %s293, 8
        %s295 = scalar_lea.vmem %s1, %s294
      $region52: #{bottleneck_forward.1} parent=43 // pred_fallthru
        _
    $region44: #{bottleneck_forward.1} parent=5 // pred_fallthru
      _
    %p296 = scmp.le.s32.totalorder 1, %s15
    %p297 = scmp.lt.s32.totalorder %s15, 3
    %p298 = pnand %p296, %p297
    %p299 = pneg %p298
    // Predicated region
    $region53: #{bottleneck_forward.1} parent=5 // pred_check
      _
    $region54: #{bottleneck_forward.1} parent=5 // pred_check_branch
      %301 = sbr.rel (%p298) target = $region56
    $region55: #{bottleneck_forward.1} parent=5 // pred_region
      %s302 = ssub.s32 %s15, 1
      %p303 = scmp.lt.s32.totalorder %s20, 1
      %s304 = scalar_select %p303, %s20, 1
      %s305 = smul.addr %s304, 43
      %s306 = smul.addr %s305, 4
      %s307 = scalar_lea.vmem %s0, %s306
      %p308 = pneg %p41
      %p309 = pneg %p38
      %p310 = scmp.lt.s32.totalorder %s20, 1
      %s311 = scalar_select %p310, %s20, 1
      %s312 = smul.addr %s311, 36
      %s313 = smul.addr %s312, 8
      %s314 = scalar_lea.vmem %s1, %s313
      %p315 = pneg %p67
      %p316 = pneg %p64
      %p317 = pneg %p88
      %p318 = pneg %p85
      %p319 = pneg %p109
      %p320 = pneg %p106
      %p321 = pneg %p130
      %p322 = pneg %p127
      %p323 = pneg %p151
      %p324 = pneg %p148
      %p325 = pneg %p172
      %p326 = pneg %p169
      %p327 = pneg %p193
      %p328 = pneg %p190
      %p329 = pneg %p214
      %p330 = pneg %p211
      %p331 = pneg %p240
      %p332 = pneg %p237
      %p333 = scmp.lt.s32.totalorder %s20, 1
      %s334 = scalar_select %p333, %s20, 1
      %s335 = smul.addr %s334, 36
      %s336 = smul.addr %s335, 8
      %s337 = scalar_lea.vmem %s9, %s336
      %p338 = scmp.lt.s32.totalorder %s20, 1
      %s339 = scalar_select %p338, %s20, 1
      %s340 = smul.addr %s339, 43
      %s341 = smul.addr %s340, 4
      %s342 = scalar_lea.vmem %s0, %s341
      %p343 = scmp.lt.s32.totalorder %s20, 1
      %s344 = scalar_select %p343, %s20, 1
      %s345 = smul.addr %s344, 36
      %s346 = smul.addr %s345, 8
      %s347 = scalar_lea.vmem %s1, %s346
      %p348 = scmp.lt.s32.totalorder %s20, 1
      %s349 = scalar_select %p348, %s20, 1
      %s350 = smul.addr %s349, 36
      %s351 = smul.addr %s350, 8
      %s352 = scalar_lea.vmem %s9, %s351
      %v354 = vld [vmem:[%s342] sm:$0xf]
      %v355 = vld [vmem:[%s342 + $0x4] sm:$0xf]
      %v356 = vld [vmem:[%s342 + $0x8] sm:$0xf]
      %v357 = vld [vmem:[%s342 + $0xc] sm:$0xf]
      %v358 = vld [vmem:[%s342 + $0x10] sm:$0xf]
      %v359 = vld [vmem:[%s342 + $0x14] sm:$0xf]
      %v360 = vld [vmem:[%s342 + $0x18] sm:$0xf]
      %v361 = vld [vmem:[%s342 + $0x1c] sm:$0xf]
      %v362 = vld [vmem:[%s342 + $0x20] sm:$0xf]
      %v363 = vld [vmem:[%s342 + $0x24] sm:$0xf]
      %v364 = vld [vmem:[%s342 + $0x28] sm:$0xf]
      %v365 = vld [vmem:[%s342 + $0x2c] sm:$0xf]
      %v366 = vld [vmem:[%s342 + $0x30] sm:$0xf]
      %v367 = vld [vmem:[%s342 + $0x34] sm:$0xf]
      %v368 = vld [vmem:[%s342 + $0x38] sm:$0xf]
      %v369 = vld [vmem:[%s342 + $0x3c] sm:$0xf]
      %v370 = vld [vmem:[%s342 + $0x40] sm:$0xf]
      %v371 = vld [vmem:[%s342 + $0x44] sm:$0xf]
      %v372 = vld [vmem:[%s342 + $0x48] sm:$0xf]
      %v373 = vld [vmem:[%s342 + $0x4c] sm:$0xf]
      %v374 = vld [vmem:[%s342 + $0x50] sm:$0xf]
      %v375 = vld [vmem:[%s342 + $0x54] sm:$0xf]
      %v376 = vld [vmem:[%s342 + $0x58] sm:$0xf]
      %v377 = vld [vmem:[%s342 + $0x5c] sm:$0xf]
      %v378 = vld [vmem:[%s342 + $0x60] sm:$0xf]
      %v379 = vld [vmem:[%s342 + $0x64] sm:$0xf]
      %v380 = vld [vmem:[%s342 + $0x68] sm:$0xf]
      %v381 = vld [vmem:[%s342 + $0x6c] sm:$0xf]
      %v382 = vld [vmem:[%s342 + $0x70] sm:$0xf]
      %v383 = vld [vmem:[%s342 + $0x74] sm:$0xf]
      %v384 = vld [vmem:[%s342 + $0x78] sm:$0xf]
      %v385 = vld [vmem:[%s342 + $0x7c] sm:$0xf]
      %v386 = vld [vmem:[%s342 + $0x80] sm:$0xf]
      %v387 = vld [vmem:[%s342 + $0x84] sm:$0xf]
      %v388 = vld [vmem:[%s342 + $0x88] sm:$0xf]
      %v389 = vld [vmem:[%s342 + $0x8c] sm:$0xf]
      %v390 = vld [vmem:[%s342 + $0x90] sm:$0xf]
      %v391 = vld [vmem:[%s342 + $0x94] sm:$0xf]
      %v392 = vld [vmem:[%s342 + $0x98] sm:$0xf]
      %v393 = vld [vmem:[%s342 + $0x9c] sm:$0xf]
      %v394 = vld [vmem:[%s342 + $0xa0] sm:$0xf]
      %v395 = vld [vmem:[%s342 + $0xa4] sm:$0xf]
      %v396 = vld [vmem:[%s342 + $0xa8] sm:$0x7]
      %v397 = vld [vmem:[%s3] sm:$0xf]
      %v398 = vld [vmem:[%s3 + $0x4] sm:$0xf]
      %v399 = vld [vmem:[%s4] sm:$0x1]
      %v401 = vlaneseq
      %v402 = vshrl.u32 %v401, 7
      %v403 = vsub.s32 0, %v402
      %v404 = vrot.slane %v399, %v403
      %v449 = vunpack.c.l.b16 %v354
      %v450 = vunpack.c.l.b16 %v355
      %v451 = vunpack.c.l.b16 %v356
      %v452 = vunpack.c.l.b16 %v357
      %v453 = vunpack.c.l.b16 %v358
      %v454 = vunpack.c.l.b16 %v359
      %v455 = vunpack.c.l.b16 %v360
      %v456 = vunpack.c.l.b16 %v361
      %v457 = vunpack.c.l.b16 %v362
      %v458 = vunpack.c.l.b16 %v363
      %v459 = vunpack.c.l.b16 %v364
      %v460 = vunpack.c.l.b16 %v365
      %v461 = vunpack.c.l.b16 %v366
      %v462 = vunpack.c.l.b16 %v367
      %v463 = vunpack.c.l.b16 %v368
      %v464 = vunpack.c.l.b16 %v369
      %v465 = vunpack.c.l.b16 %v370
      %v466 = vunpack.c.l.b16 %v371
      %v467 = vunpack.c.l.b16 %v372
      %v468 = vunpack.c.l.b16 %v373
      %v469 = vunpack.c.l.b16 %v374
      %v470 = vunpack.c.l.b16 %v375
      %v471 = vunpack.c.l.b16 %v376
      %v472 = vunpack.c.l.b16 %v377
      %v473 = vunpack.c.l.b16 %v378
      %v474 = vunpack.c.l.b16 %v379
      %v475 = vunpack.c.l.b16 %v380
      %v476 = vunpack.c.l.b16 %v381
      %v477 = vunpack.c.l.b16 %v382
      %v478 = vunpack.c.l.b16 %v383
      %v479 = vunpack.c.l.b16 %v384
      %v480 = vunpack.c.l.b16 %v385
      %v481 = vunpack.c.l.b16 %v386
      %v482 = vunpack.c.l.b16 %v387
      %v483 = vunpack.c.l.b16 %v388
      %v484 = vunpack.c.l.b16 %v389
      %v485 = vunpack.c.l.b16 %v390
      %v486 = vunpack.c.l.b16 %v391
      %v487 = vunpack.c.l.b16 %v392
      %v488 = vunpack.c.l.b16 %v393
      %v489 = vunpack.c.l.b16 %v394
      %v490 = vunpack.c.l.b16 %v395
      %v491 = vunpack.c.l.b16 %v396
      %v492 = vpack.c.b16 %v450, %v449
      %v493 = vpack.c.b16 %v452, %v451
      %v494 = vpack.c.b16 %v454, %v453
      %v495 = vpack.c.b16 %v456, %v455
      %v496 = vpack.c.b16 %v458, %v457
      %v497 = vpack.c.b16 %v460, %v459
      %v498 = vpack.c.b16 %v462, %v461
      %v499 = vpack.c.b16 %v464, %v463
      %v500 = vpack.c.b16 %v466, %v465
      %v501 = vpack.c.b16 %v468, %v467
      %v502 = vpack.c.b16 %v470, %v469
      %v503 = vpack.c.b16 %v472, %v471
      %v504 = vpack.c.b16 %v474, %v473
      %v505 = vpack.c.b16 %v476, %v475
      %v506 = vpack.c.b16 %v478, %v477
      %v507 = vpack.c.b16 %v480, %v479
      %v508 = vpack.c.b16 %v482, %v481
      %v509 = vpack.c.b16 %v484, %v483
      %v510 = vpack.c.b16 %v486, %v485
      %v511 = vpack.c.b16 %v488, %v487
      %v512 = vpack.c.b16 %v490, %v489
      %v513 = vpack.c.b16 %v491, %v491
      %v516 = vunpack.c.l.b16 %v397
      %v517 = vunpack.c.l.b16 %v398
      %v518 = vpack.c.b16 %v517, %v516
      %vm520 = vcmask 130048
      %v522 = vsel %vm520, %v492, 0
      %v525 = vsel %vm520, %v493, 0
      %v528 = vsel %vm520, %v494, 0
      %v531 = vsel %vm520, %v495, 0
      %v534 = vsel %vm520, %v496, 0
      %v537 = vsel %vm520, %v497, 0
      %v540 = vsel %vm520, %v498, 0
      %v543 = vsel %vm520, %v499, 0
      %v546 = vsel %vm520, %v500, 0
      %v549 = vsel %vm520, %v501, 0
      %v552 = vsel %vm520, %v502, 0
      %v555 = vsel %vm520, %v503, 0
      %v558 = vsel %vm520, %v504, 0
      %v561 = vsel %vm520, %v505, 0
      %v564 = vsel %vm520, %v506, 0
      %v567 = vsel %vm520, %v507, 0
      %v570 = vsel %vm520, %v508, 0
      %v573 = vsel %vm520, %v509, 0
      %v576 = vsel %vm520, %v510, 0
      %v579 = vsel %vm520, %v511, 0
      %v582 = vsel %vm520, %v512, 0
      %v585 = vsel %vm520, %v513, 0
      %587 = vmatprep.subr.bf16.mxu0 0
      %588 = vmatpush1.bf16.msra.mxu0 0
      %589 = vmatprep.subr.bf16.mxu0 0
      %590 = vmatpush1.bf16.msra.mxu0 0
      %591 = vmatprep.subr.bf16.mxu0 0
      %592 = vmatpush1.bf16.msra.mxu0 0
      %593 = vmatprep.subr.bf16.mxu0 0
      %594 = vmatpush1.bf16.msra.mxu0 0
      %595 = vmatprep.subr.bf16.mxu0 0
      %596 = vmatpush1.bf16.msra.mxu0 0
      %597 = vmatprep.subr.bf16.mxu0 0
      %598 = vmatpush1.bf16.msra.mxu0 0
      %599 = vmatprep.subr.bf16.mxu0 0
      %600 = vmatpush1.bf16.msra.mxu0 0
      %601 = vmatprep.subr.bf16.mxu0 0
      %602 = vmatpush1.bf16.msra.mxu0 %v518
      %603 = vmatprep.subr.bf16.mxu0 0
      %604 = vmatpush2.bf16.msra.mxu0 0
      %605 = vmatprep.subr.bf16.mxu0 0
      %606 = vmatpush2.bf16.msra.mxu0 0
      %607 = vmatprep.subr.bf16.mxu0 0
      %608 = vmatpush2.bf16.msra.mxu0 0
      %609 = vmatprep.subr.bf16.mxu0 0
      %610 = vmatpush2.bf16.msra.mxu0 0
      %611 = vmatprep.subr.bf16.mxu0 0
      %612 = vmatpush2.bf16.msra.mxu0 0
      %613 = vmatprep.subr.bf16.mxu0 0
      %614 = vmatpush2.bf16.msra.mxu0 0
      %615 = vmatprep.subr.bf16.mxu0 0
      %616 = vmatpush2.bf16.msra.mxu0 0
      %617 = vmatprep.subr.bf16.mxu0 0
      %618 = vmatpush2.bf16.msra.mxu0 0
      %619 = vmatprep.mubr.bf16.mxu0 0
      %620 = vmatmul.mubr.bf16.gmra.mxu0 %v522
      %v621 = vpop.f32.mrf.mxu0
      %v622 = vadd.f32 %v404, %v621
      %v623 = vpop.f32.mrf.mxu0
      %v624 = vpop.f32.mrf.mxu0
      %v625 = vadd.f32 %v404, %v624
      %v626 = vpop.f32.mrf.mxu0
      %627 = vmatprep.mubr.bf16.mxu0 0
      %628 = vmatmul.mubr.bf16.gmra.mxu0 %v525
      %v629 = vpop.f32.mrf.mxu0
      %v630 = vadd.f32 %v404, %v629
      %v631 = vpop.f32.mrf.mxu0
      %v632 = vpop.f32.mrf.mxu0
      %v633 = vadd.f32 %v404, %v632
      %v634 = vpop.f32.mrf.mxu0
      %635 = vmatprep.mubr.bf16.mxu0 0
      %636 = vmatmul.mubr.bf16.gmra.mxu0 %v528
      %v637 = vpop.f32.mrf.mxu0
      %v638 = vadd.f32 %v404, %v637
      %v639 = vpop.f32.mrf.mxu0
      %v640 = vpop.f32.mrf.mxu0
      %v641 = vadd.f32 %v404, %v640
      %v642 = vpop.f32.mrf.mxu0
      %643 = vmatprep.mubr.bf16.mxu0 0
      %644 = vmatmul.mubr.bf16.gmra.mxu0 %v531
      %v645 = vpop.f32.mrf.mxu0
      %v646 = vadd.f32 %v404, %v645
      %v647 = vpop.f32.mrf.mxu0
      %v648 = vpop.f32.mrf.mxu0
      %v649 = vadd.f32 %v404, %v648
      %v650 = vpop.f32.mrf.mxu0
      %651 = vmatprep.mubr.bf16.mxu0 0
      %652 = vmatmul.mubr.bf16.gmra.mxu0 %v534
      %v653 = vpop.f32.mrf.mxu0
      %v654 = vadd.f32 %v404, %v653
      %v655 = vpop.f32.mrf.mxu0
      %v656 = vpop.f32.mrf.mxu0
      %v657 = vadd.f32 %v404, %v656
      %v658 = vpop.f32.mrf.mxu0
      %659 = vmatprep.mubr.bf16.mxu0 0
      %660 = vmatmul.mubr.bf16.gmra.mxu0 %v537
      %v661 = vpop.f32.mrf.mxu0
      %v662 = vadd.f32 %v404, %v661
      %v663 = vpop.f32.mrf.mxu0
      %v664 = vpop.f32.mrf.mxu0
      %v665 = vadd.f32 %v404, %v664
      %v666 = vpop.f32.mrf.mxu0
      %667 = vmatprep.mubr.bf16.mxu0 0
      %668 = vmatmul.mubr.bf16.gmra.mxu0 %v540
      %v669 = vpop.f32.mrf.mxu0
      %v670 = vadd.f32 %v404, %v669
      %v671 = vpop.f32.mrf.mxu0
      %v672 = vpop.f32.mrf.mxu0
      %v673 = vadd.f32 %v404, %v672
      %v674 = vpop.f32.mrf.mxu0
      %675 = vmatprep.mubr.bf16.mxu0 0
      %676 = vmatmul.mubr.bf16.gmra.mxu0 %v543
      %v677 = vpop.f32.mrf.mxu0
      %v678 = vadd.f32 %v404, %v677
      %v679 = vpop.f32.mrf.mxu0
      %v680 = vpop.f32.mrf.mxu0
      %v681 = vadd.f32 %v404, %v680
      %v682 = vpop.f32.mrf.mxu0
      %683 = vmatprep.mubr.bf16.mxu0 0
      %684 = vmatmul.mubr.bf16.gmra.mxu0 %v546
      %v685 = vpop.f32.mrf.mxu0
      %v686 = vadd.f32 %v404, %v685
      %v687 = vpop.f32.mrf.mxu0
      %v688 = vpop.f32.mrf.mxu0
      %v689 = vadd.f32 %v404, %v688
      %v690 = vpop.f32.mrf.mxu0
      %691 = vmatprep.mubr.bf16.mxu0 0
      %692 = vmatmul.mubr.bf16.gmra.mxu0 %v549
      %v693 = vpop.f32.mrf.mxu0
      %v694 = vadd.f32 %v404, %v693
      %v695 = vpop.f32.mrf.mxu0
      %v696 = vpop.f32.mrf.mxu0
      %v697 = vadd.f32 %v404, %v696
      %v698 = vpop.f32.mrf.mxu0
      %699 = vmatprep.mubr.bf16.mxu0 0
      %700 = vmatmul.mubr.bf16.gmra.mxu0 %v552
      %v701 = vpop.f32.mrf.mxu0
      %v702 = vadd.f32 %v404, %v701
      %v703 = vpop.f32.mrf.mxu0
      %v704 = vpop.f32.mrf.mxu0
      %v705 = vadd.f32 %v404, %v704
      %v706 = vpop.f32.mrf.mxu0
      %707 = vmatprep.mubr.bf16.mxu0 0
      %708 = vmatmul.mubr.bf16.gmra.mxu0 %v555
      %v709 = vpop.f32.mrf.mxu0
      %v710 = vadd.f32 %v404, %v709
      %v711 = vpop.f32.mrf.mxu0
      %v712 = vpop.f32.mrf.mxu0
      %v713 = vadd.f32 %v404, %v712
      %v714 = vpop.f32.mrf.mxu0
      %715 = vmatprep.mubr.bf16.mxu0 0
      %716 = vmatmul.mubr.bf16.gmra.mxu0 %v558
      %v717 = vpop.f32.mrf.mxu0
      %v718 = vadd.f32 %v404, %v717
      %v719 = vpop.f32.mrf.mxu0
      %v720 = vpop.f32.mrf.mxu0
      %v721 = vadd.f32 %v404, %v720
      %v722 = vpop.f32.mrf.mxu0
      %723 = vmatprep.mubr.bf16.mxu0 0
      %724 = vmatmul.mubr.bf16.gmra.mxu0 %v561
      %v725 = vpop.f32.mrf.mxu0
      %v726 = vadd.f32 %v404, %v725
      %v727 = vpop.f32.mrf.mxu0
      %v728 = vpop.f32.mrf.mxu0
      %v729 = vadd.f32 %v404, %v728
      %v730 = vpop.f32.mrf.mxu0
      %731 = vmatprep.mubr.bf16.mxu0 0
      %732 = vmatmul.mubr.bf16.gmra.mxu0 %v564
      %v733 = vpop.f32.mrf.mxu0
      %v734 = vadd.f32 %v404, %v733
      %v735 = vpop.f32.mrf.mxu0
      %v736 = vpop.f32.mrf.mxu0
      %v737 = vadd.f32 %v404, %v736
      %v738 = vpop.f32.mrf.mxu0
      %739 = vmatprep.mubr.bf16.mxu0 0
      %740 = vmatmul.mubr.bf16.gmra.mxu0 %v567
      %v741 = vpop.f32.mrf.mxu0
      %v742 = vadd.f32 %v404, %v741
      %v743 = vpop.f32.mrf.mxu0
      %v744 = vpop.f32.mrf.mxu0
      %v745 = vadd.f32 %v404, %v744
      %v746 = vpop.f32.mrf.mxu0
      %747 = vmatprep.mubr.bf16.mxu0 0
      %748 = vmatmul.mubr.bf16.gmra.mxu0 %v570
      %v749 = vpop.f32.mrf.mxu0
      %v750 = vadd.f32 %v404, %v749
      %v751 = vpop.f32.mrf.mxu0
      %v752 = vpop.f32.mrf.mxu0
      %v753 = vadd.f32 %v404, %v752
      %v754 = vpop.f32.mrf.mxu0
      %755 = vmatprep.mubr.bf16.mxu0 0
      %756 = vmatmul.mubr.bf16.gmra.mxu0 %v573
      %v757 = vpop.f32.mrf.mxu0
      %v758 = vadd.f32 %v404, %v757
      %v759 = vpop.f32.mrf.mxu0
      %v760 = vpop.f32.mrf.mxu0
      %v761 = vadd.f32 %v404, %v760
      %v762 = vpop.f32.mrf.mxu0
      %763 = vmatprep.mubr.bf16.mxu0 0
      %764 = vmatmul.mubr.bf16.gmra.mxu0 %v576
      %v765 = vpop.f32.mrf.mxu0
      %v766 = vadd.f32 %v404, %v765
      %v767 = vpop.f32.mrf.mxu0
      %v768 = vpop.f32.mrf.mxu0
      %v769 = vadd.f32 %v404, %v768
      %v770 = vpop.f32.mrf.mxu0
      %771 = vmatprep.mubr.bf16.mxu0 0
      %772 = vmatmul.mubr.bf16.gmra.mxu0 %v579
      %v773 = vpop.f32.mrf.mxu0
      %v774 = vadd.f32 %v404, %v773
      %v775 = vpop.f32.mrf.mxu0
      %v776 = vpop.f32.mrf.mxu0
      %v777 = vadd.f32 %v404, %v776
      %v778 = vpop.f32.mrf.mxu0
      %779 = vmatprep.mubr.bf16.mxu0 0
      %780 = vmatmul.mubr.bf16.gmra.mxu0 %v582
      %v781 = vpop.f32.mrf.mxu0
      %v782 = vadd.f32 %v404, %v781
      %v783 = vpop.f32.mrf.mxu0
      %v784 = vpop.f32.mrf.mxu0
      %v785 = vadd.f32 %v404, %v784
      %v786 = vpop.f32.mrf.mxu0
      %787 = vmatprep.mubr.bf16.mxu0 0
      %788 = vmatmul.mubr.bf16.gmra.mxu0 %v585
      %v789 = vpop.f32.mrf.mxu0
      %v790 = vadd.f32 %v404, %v789
      %v791 = vpop.f32.mrf.mxu0
      %v792 = vpop.f32.mrf.mxu0
      %v793 = vpop.f32.mrf.mxu0
      %794 = vdwg.mxu0
      %v795 = vmax.f32 %v622, 0.0
      %v796 = vmax.f32 %v625, 0.0
      %v797 = vmax.f32 %v630, 0.0
      %v798 = vmax.f32 %v633, 0.0
      %v799 = vmax.f32 %v638, 0.0
      %v800 = vmax.f32 %v641, 0.0
      %v801 = vmax.f32 %v646, 0.0
      %v802 = vmax.f32 %v649, 0.0
      %v803 = vmax.f32 %v654, 0.0
      %v804 = vmax.f32 %v657, 0.0
      %v805 = vmax.f32 %v662, 0.0
      %v806 = vmax.f32 %v665, 0.0
      %v807 = vmax.f32 %v670, 0.0
      %v808 = vmax.f32 %v673, 0.0
      %v809 = vmax.f32 %v678, 0.0
      %v810 = vmax.f32 %v681, 0.0
      %v811 = vmax.f32 %v686, 0.0
      %v812 = vmax.f32 %v689, 0.0
      %v813 = vmax.f32 %v694, 0.0
      %v814 = vmax.f32 %v697, 0.0
      %v815 = vmax.f32 %v702, 0.0
      %v816 = vmax.f32 %v705, 0.0
      %v817 = vmax.f32 %v710, 0.0
      %v818 = vmax.f32 %v713, 0.0
      %v819 = vmax.f32 %v718, 0.0
      %v820 = vmax.f32 %v721, 0.0
      %v821 = vmax.f32 %v726, 0.0
      %v822 = vmax.f32 %v729, 0.0
      %v823 = vmax.f32 %v734, 0.0
      %v824 = vmax.f32 %v737, 0.0
      %v825 = vmax.f32 %v742, 0.0
      %v826 = vmax.f32 %v745, 0.0
      %v827 = vmax.f32 %v750, 0.0
      %v828 = vmax.f32 %v753, 0.0
      %v829 = vmax.f32 %v758, 0.0
      %v830 = vmax.f32 %v761, 0.0
      %v831 = vmax.f32 %v766, 0.0
      %v832 = vmax.f32 %v769, 0.0
      %v833 = vmax.f32 %v774, 0.0
      %v834 = vmax.f32 %v777, 0.0
      %v835 = vmax.f32 %v782, 0.0
      %v836 = vmax.f32 %v785, 0.0
      %v837 = vmax.f32 %v790, 0.0
      %v838 = vld [vmem:[%s2] sm:$0xff]
      %v839 = vld [vmem:[%s2 + $0x8] sm:$0xff]
      %v840 = vld [vmem:[%s2 + $0x10] sm:$0xff]
      %v841 = vld [vmem:[%s2 + $0x18] sm:$0xff]
      %v842 = vld [vmem:[%s2 + $0x20] sm:$0xff]
      %v843 = vld [vmem:[%s2 + $0x28] sm:$0xff]
      %v844 = vld [vmem:[%s2 + $0x30] sm:$0xff]
      %v845 = vld [vmem:[%s2 + $0x38] sm:$0xff]
      %v846 = vld [vmem:[%s2 + $0x40] sm:$0xff]
      %v847 = vld [vmem:[%s2 + $0x48] sm:$0xff]
      %v848 = vld [vmem:[%s2 + $0x50] sm:$0xff]
      %v849 = vld [vmem:[%s2 + $0x58] sm:$0xff]
      %v850 = vld [vmem:[%s2 + $0x60] sm:$0xff]
      %v851 = vld [vmem:[%s2 + $0x68] sm:$0xff]
      %v852 = vld [vmem:[%s2 + $0x70] sm:$0xff]
      %v853 = vld [vmem:[%s2 + $0x78] sm:$0xff]
      %v854 = vld [vmem:[%s2 + $0x80] sm:$0xff]
      %v855 = vld [vmem:[%s2 + $0x88] sm:$0xff]
      %v856 = vld [vmem:[%s2 + $0x90] sm:$0xff]
      %v857 = vld [vmem:[%s2 + $0x98] sm:$0xff]
      %v858 = vld [vmem:[%s2 + $0xa0] sm:$0xff]
      %v859 = vld [vmem:[%s2 + $0xa8] sm:$0xff]
      %v860 = vld [vmem:[%s2 + $0xb0] sm:$0xff]
      %v861 = vld [vmem:[%s2 + $0xb8] sm:$0xff]
      %v862 = vld [vmem:[%s2 + $0xc0] sm:$0xff]
      %v863 = vld [vmem:[%s2 + $0xc8] sm:$0xff]
      %v864 = vld [vmem:[%s2 + $0xd0] sm:$0xff]
      %v865 = vld [vmem:[%s2 + $0xd8] sm:$0xff]
      %v866 = vld [vmem:[%s2 + $0xe0] sm:$0xff]
      %v867 = vld [vmem:[%s2 + $0xe8] sm:$0xff]
      %v868 = vld [vmem:[%s2 + $0xf0] sm:$0xff]
      %v869 = vld [vmem:[%s2 + $0xf8] sm:$0xff]
      %v870 = vld [vmem:[%s2 + $0x100] sm:$0xff]
      %v871 = vld [vmem:[%s2 + $0x108] sm:$0xff]
      %v872 = vld [vmem:[%s2 + $0x110] sm:$0xff]
      %v873 = vld [vmem:[%s2 + $0x118] sm:$0xff]
      %v874 = vld [vmem:[%s2 + $0x120] sm:$0xff]
      %v875 = vld [vmem:[%s2 + $0x128] sm:$0xff]
      %v876 = vld [vmem:[%s2 + $0x130] sm:$0xff]
      %v877 = vld [vmem:[%s2 + $0x138] sm:$0xff]
      %v878 = vld [vmem:[%s2 + $0x140] sm:$0xff]
      %v879 = vld [vmem:[%s2 + $0x148] sm:$0xff]
      %v880 = vld [vmem:[%s2 + $0x150] sm:$0x3f]
      %882 = vset.pattern.permute.xlu0 0
      %883 = vperm.xlu0 %882, %v838
      %v884 = vpop.permute.xlu0 %883
      %887 = vset.pattern.permute.xlu0 0
      %888 = vperm.xlu0 %887, %v839
      %v889 = vpop.permute.xlu0 %888
      %892 = vset.pattern.permute.xlu0 0
      %893 = vperm.xlu0 %892, %v840
      %v894 = vpop.permute.xlu0 %893
      %897 = vset.pattern.permute.xlu0 0
      %898 = vperm.xlu0 %897, %v841
      %v899 = vpop.permute.xlu0 %898
      %902 = vset.pattern.permute.xlu0 0
      %903 = vperm.xlu0 %902, %v842
      %v904 = vpop.permute.xlu0 %903
      %907 = vset.pattern.permute.xlu0 0
      %908 = vperm.xlu0 %907, %v843
      %v909 = vpop.permute.xlu0 %908
      %912 = vset.pattern.permute.xlu0 0
      %913 = vperm.xlu0 %912, %v844
      %v914 = vpop.permute.xlu0 %913
      %917 = vset.pattern.permute.xlu0 0
      %918 = vperm.xlu0 %917, %v845
      %v919 = vpop.permute.xlu0 %918
      %922 = vset.pattern.permute.xlu0 0
      %923 = vperm.xlu0 %922, %v846
      %v924 = vpop.permute.xlu0 %923
      %927 = vset.pattern.permute.xlu0 0
      %928 = vperm.xlu0 %927, %v847
      %v929 = vpop.permute.xlu0 %928
      %932 = vset.pattern.permute.xlu0 0
      %933 = vperm.xlu0 %932, %v848
      %v934 = vpop.permute.xlu0 %933
      %937 = vset.pattern.permute.xlu0 0
      %938 = vperm.xlu0 %937, %v849
      %v939 = vpop.permute.xlu0 %938
      %942 = vset.pattern.permute.xlu0 0
      %943 = vperm.xlu0 %942, %v850
      %v944 = vpop.permute.xlu0 %943
      %947 = vset.pattern.permute.xlu0 0
      %948 = vperm.xlu0 %947, %v851
      %v949 = vpop.permute.xlu0 %948
      %952 = vset.pattern.permute.xlu0 0
      %953 = vperm.xlu0 %952, %v852
      %v954 = vpop.permute.xlu0 %953
      %957 = vset.pattern.permute.xlu0 0
      %958 = vperm.xlu0 %957, %v853
      %v959 = vpop.permute.xlu0 %958
      %962 = vset.pattern.permute.xlu0 0
      %963 = vperm.xlu0 %962, %v854
      %v964 = vpop.permute.xlu0 %963
      %967 = vset.pattern.permute.xlu0 0
      %968 = vperm.xlu0 %967, %v855
      %v969 = vpop.permute.xlu0 %968
      %972 = vset.pattern.permute.xlu0 0
      %973 = vperm.xlu0 %972, %v856
      %v974 = vpop.permute.xlu0 %973
      %977 = vset.pattern.permute.xlu0 0
      %978 = vperm.xlu0 %977, %v857
      %v979 = vpop.permute.xlu0 %978
      %982 = vset.pattern.permute.xlu0 0
      %983 = vperm.xlu0 %982, %v858
      %v984 = vpop.permute.xlu0 %983
      %987 = vset.pattern.permute.xlu0 0
      %988 = vperm.xlu0 %987, %v859
      %v989 = vpop.permute.xlu0 %988
      %992 = vset.pattern.permute.xlu0 0
      %993 = vperm.xlu0 %992, %v860
      %v994 = vpop.permute.xlu0 %993
      %997 = vset.pattern.permute.xlu0 0
      %998 = vperm.xlu0 %997, %v861
      %v999 = vpop.permute.xlu0 %998
      %1002 = vset.pattern.permute.xlu0 0
      %1003 = vperm.xlu0 %1002, %v862
      %v1004 = vpop.permute.xlu0 %1003
      %1007 = vset.pattern.permute.xlu0 0
      %1008 = vperm.xlu0 %1007, %v863
      %v1009 = vpop.permute.xlu0 %1008
      %1012 = vset.pattern.permute.xlu0 0
      %1013 = vperm.xlu0 %1012, %v864
      %v1014 = vpop.permute.xlu0 %1013
      %1017 = vset.pattern.permute.xlu0 0
      %1018 = vperm.xlu0 %1017, %v865
      %v1019 = vpop.permute.xlu0 %1018
      %1022 = vset.pattern.permute.xlu0 0
      %1023 = vperm.xlu0 %1022, %v866
      %v1024 = vpop.permute.xlu0 %1023
      %1027 = vset.pattern.permute.xlu0 0
      %1028 = vperm.xlu0 %1027, %v867
      %v1029 = vpop.permute.xlu0 %1028
      %1032 = vset.pattern.permute.xlu0 0
      %1033 = vperm.xlu0 %1032, %v868
      %v1034 = vpop.permute.xlu0 %1033
      %1037 = vset.pattern.permute.xlu0 0
      %1038 = vperm.xlu0 %1037, %v869
      %v1039 = vpop.permute.xlu0 %1038
      %1042 = vset.pattern.permute.xlu0 0
      %1043 = vperm.xlu0 %1042, %v870
      %v1044 = vpop.permute.xlu0 %1043
      %1047 = vset.pattern.permute.xlu0 0
      %1048 = vperm.xlu0 %1047, %v871
      %v1049 = vpop.permute.xlu0 %1048
      %1052 = vset.pattern.permute.xlu0 0
      %1053 = vperm.xlu0 %1052, %v872
      %v1054 = vpop.permute.xlu0 %1053
      %1057 = vset.pattern.permute.xlu0 0
      %1058 = vperm.xlu0 %1057, %v873
      %v1059 = vpop.permute.xlu0 %1058
      %1062 = vset.pattern.permute.xlu0 0
      %1063 = vperm.xlu0 %1062, %v874
      %v1064 = vpop.permute.xlu0 %1063
      %1067 = vset.pattern.permute.xlu0 0
      %1068 = vperm.xlu0 %1067, %v875
      %v1069 = vpop.permute.xlu0 %1068
      %1072 = vset.pattern.permute.xlu0 0
      %1073 = vperm.xlu0 %1072, %v876
      %v1074 = vpop.permute.xlu0 %1073
      %1077 = vset.pattern.permute.xlu0 0
      %1078 = vperm.xlu0 %1077, %v877
      %v1079 = vpop.permute.xlu0 %1078
      %1082 = vset.pattern.permute.xlu0 0
      %1083 = vperm.xlu0 %1082, %v878
      %v1084 = vpop.permute.xlu0 %1083
      %1087 = vset.pattern.permute.xlu0 0
      %1088 = vperm.xlu0 %1087, %v879
      %v1089 = vpop.permute.xlu0 %1088
      %1092 = vset.pattern.permute.xlu0 0
      %1093 = vperm.xlu0 %1092, %v880
      %v1094 = vpop.permute.xlu0 %1093
      %v1096 = vmul.f32 %v795, %v884
      %v1097 = vmul.f32 %v796, %v889
      %v1098 = vmul.f32 %v797, %v894
      %v1099 = vmul.f32 %v798, %v899
      %v1100 = vmul.f32 %v799, %v904
      %v1101 = vmul.f32 %v800, %v909
      %v1102 = vmul.f32 %v801, %v914
      %v1103 = vmul.f32 %v802, %v919
      %v1104 = vmul.f32 %v803, %v924
      %v1105 = vmul.f32 %v804, %v929
      %v1106 = vmul.f32 %v805, %v934
      %v1107 = vmul.f32 %v806, %v939
      %v1108 = vmul.f32 %v807, %v944
      %v1109 = vmul.f32 %v808, %v949
      %v1110 = vmul.f32 %v809, %v954
      %v1111 = vmul.f32 %v810, %v959
      %v1112 = vmul.f32 %v811, %v964
      %v1113 = vmul.f32 %v812, %v969
      %v1114 = vmul.f32 %v813, %v974
      %v1115 = vmul.f32 %v814, %v979
      %v1116 = vmul.f32 %v815, %v984
      %v1117 = vmul.f32 %v816, %v989
      %v1118 = vmul.f32 %v817, %v994
      %v1119 = vmul.f32 %v818, %v999
      %v1120 = vmul.f32 %v819, %v1004
      %v1121 = vmul.f32 %v820, %v1009
      %v1122 = vmul.f32 %v821, %v1014
      %v1123 = vmul.f32 %v822, %v1019
      %v1124 = vmul.f32 %v823, %v1024
      %v1125 = vmul.f32 %v824, %v1029
      %v1126 = vmul.f32 %v825, %v1034
      %v1127 = vmul.f32 %v826, %v1039
      %v1128 = vmul.f32 %v827, %v1044
      %v1129 = vmul.f32 %v828, %v1049
      %v1130 = vmul.f32 %v829, %v1054
      %v1131 = vmul.f32 %v830, %v1059
      %v1132 = vmul.f32 %v831, %v1064
      %v1133 = vmul.f32 %v832, %v1069
      %v1134 = vmul.f32 %v833, %v1074
      %v1135 = vmul.f32 %v834, %v1079
      %v1136 = vmul.f32 %v835, %v1084
      %v1137 = vmul.f32 %v836, %v1089
      %v1138 = vmul.f32 %v837, %v1094
      %vm1139 = vcmask 31744
      %1140 = vst.msk [vmem:[#allocation2] sm:$0xff] %vm1139, %v1096
      %1141 = vst.msk [vmem:[#allocation2 + $0x8] sm:$0xff] %vm1139, %v1097
      %1142 = vst.msk [vmem:[#allocation2 + $0x10] sm:$0xff] %vm1139, %v1098
      %1143 = vst.msk [vmem:[#allocation2 + $0x18] sm:$0xff] %vm1139, %v1099
      %1144 = vst.msk [vmem:[#allocation2 + $0x20] sm:$0xff] %vm1139, %v1100
      %1145 = vst.msk [vmem:[#allocation2 + $0x28] sm:$0xff] %vm1139, %v1101
      %1146 = vst.msk [vmem:[#allocation2 + $0x30] sm:$0xff] %vm1139, %v1102
      %1147 = vst.msk [vmem:[#allocation2 + $0x38] sm:$0xff] %vm1139, %v1103
      %1148 = vst.msk [vmem:[#allocation2 + $0x40] sm:$0xff] %vm1139, %v1104
      %1149 = vst.msk [vmem:[#allocation2 + $0x48] sm:$0xff] %vm1139, %v1105
      %1150 = vst.msk [vmem:[#allocation2 + $0x50] sm:$0xff] %vm1139, %v1106
      %1151 = vst.msk [vmem:[#allocation2 + $0x58] sm:$0xff] %vm1139, %v1107
      %1152 = vst.msk [vmem:[#allocation2 + $0x60] sm:$0xff] %vm1139, %v1108
      %1153 = vst.msk [vmem:[#allocation2 + $0x68] sm:$0xff] %vm1139, %v1109
      %1154 = vst.msk [vmem:[#allocation2 + $0x70] sm:$0xff] %vm1139, %v1110
      %1155 = vst.msk [vmem:[#allocation2 + $0x78] sm:$0xff] %vm1139, %v1111
      %1156 = vst.msk [vmem:[#allocation2 + $0x80] sm:$0xff] %vm1139, %v1112
      %1157 = vst.msk [vmem:[#allocation2 + $0x88] sm:$0xff] %vm1139, %v1113
      %1158 = vst.msk [vmem:[#allocation2 + $0x90] sm:$0xff] %vm1139, %v1114
      %1159 = vst.msk [vmem:[#allocation2 + $0x98] sm:$0xff] %vm1139, %v1115
      %1160 = vst.msk [vmem:[#allocation2 + $0xa0] sm:$0xff] %vm1139, %v1116
      %1161 = vst.msk [vmem:[#allocation2 + $0xa8] sm:$0xff] %vm1139, %v1117
      %1162 = vst.msk [vmem:[#allocation2 + $0xb0] sm:$0xff] %vm1139, %v1118
      %1163 = vst.msk [vmem:[#allocation2 + $0xb8] sm:$0xff] %vm1139, %v1119
      %1164 = vst.msk [vmem:[#allocation2 + $0xc0] sm:$0xff] %vm1139, %v1120
      %1165 = vst.msk [vmem:[#allocation2 + $0xc8] sm:$0xff] %vm1139, %v1121
      %1166 = vst.msk [vmem:[#allocation2 + $0xd0] sm:$0xff] %vm1139, %v1122
      %1167 = vst.msk [vmem:[#allocation2 + $0xd8] sm:$0xff] %vm1139, %v1123
      %1168 = vst.msk [vmem:[#allocation2 + $0xe0] sm:$0xff] %vm1139, %v1124
      %1169 = vst.msk [vmem:[#allocation2 + $0xe8] sm:$0xff] %vm1139, %v1125
      %1170 = vst.msk [vmem:[#allocation2 + $0xf0] sm:$0xff] %vm1139, %v1126
      %1171 = vst.msk [vmem:[#allocation2 + $0xf8] sm:$0xff] %vm1139, %v1127
      %1172 = vst.msk [vmem:[#allocation2 + $0x100] sm:$0xff] %vm1139, %v1128
      %1173 = vst.msk [vmem:[#allocation2 + $0x108] sm:$0xff] %vm1139, %v1129
      %1174 = vst.msk [vmem:[#allocation2 + $0x110] sm:$0xff] %vm1139, %v1130
      %1175 = vst.msk [vmem:[#allocation2 + $0x118] sm:$0xff] %vm1139, %v1131
      %1176 = vst.msk [vmem:[#allocation2 + $0x120] sm:$0xff] %vm1139, %v1132
      %1177 = vst.msk [vmem:[#allocation2 + $0x128] sm:$0xff] %vm1139, %v1133
      %1178 = vst.msk [vmem:[#allocation2 + $0x130] sm:$0xff] %vm1139, %v1134
      %1179 = vst.msk [vmem:[#allocation2 + $0x138] sm:$0xff] %vm1139, %v1135
      %1180 = vst.msk [vmem:[#allocation2 + $0x140] sm:$0xff] %vm1139, %v1136
      %1181 = vst.msk [vmem:[#allocation2 + $0x148] sm:$0xff] %vm1139, %v1137
      %vm1182 = vcmask 29696
      %1183 = vst.msk [vmem:[#allocation2 + $0x150] sm:$0x3f] %vm1182, %v1138
      %v1184 = vld [vmem:[#allocation2] sm:$0xff]
      %v1185 = vld [vmem:[#allocation2 + $0x8] sm:$0xff]
      %v1186 = vld [vmem:[#allocation2 + $0x10] sm:$0xff]
      %v1187 = vld [vmem:[#allocation2 + $0x18] sm:$0xff]
      %v1188 = vld [vmem:[#allocation2 + $0x20] sm:$0xff]
      %v1189 = vld [vmem:[#allocation2 + $0x28] sm:$0xff]
      %v1190 = vld [vmem:[#allocation2 + $0x30] sm:$0xff]
      %v1191 = vld [vmem:[#allocation2 + $0x38] sm:$0xff]
      %v1192 = vld [vmem:[#allocation2 + $0x40] sm:$0xff]
      %v1193 = vld [vmem:[#allocation2 + $0x48] sm:$0xff]
      %v1194 = vld [vmem:[#allocation2 + $0x50] sm:$0xff]
      %v1195 = vld [vmem:[#allocation2 + $0x58] sm:$0xff]
      %v1196 = vld [vmem:[#allocation2 + $0x60] sm:$0xff]
      %v1197 = vld [vmem:[#allocation2 + $0x68] sm:$0xff]
      %v1198 = vld [vmem:[#allocation2 + $0x70] sm:$0xff]
      %v1199 = vld [vmem:[#allocation2 + $0x78] sm:$0xff]
      %v1200 = vld [vmem:[#allocation2 + $0x80] sm:$0xff]
      %v1201 = vld [vmem:[#allocation2 + $0x88] sm:$0xff]
      %v1202 = vld [vmem:[#allocation2 + $0x90] sm:$0xff]
      %v1203 = vld [vmem:[#allocation2 + $0x98] sm:$0xff]
      %v1204 = vld [vmem:[#allocation2 + $0xa0] sm:$0xff]
      %v1205 = vld [vmem:[#allocation2 + $0xa8] sm:$0xff]
      %v1206 = vld [vmem:[#allocation2 + $0xb0] sm:$0xff]
      %v1207 = vld [vmem:[#allocation2 + $0xb8] sm:$0xff]
      %v1208 = vld [vmem:[#allocation2 + $0xc0] sm:$0xff]
      %v1209 = vld [vmem:[#allocation2 + $0xc8] sm:$0xff]
      %v1210 = vld [vmem:[#allocation2 + $0xd0] sm:$0xff]
      %v1211 = vld [vmem:[#allocation2 + $0xd8] sm:$0xff]
      %v1212 = vld [vmem:[#allocation2 + $0xe0] sm:$0xff]
      %v1213 = vld [vmem:[#allocation2 + $0xe8] sm:$0xff]
      %v1214 = vld [vmem:[#allocation2 + $0xf0] sm:$0xff]
      %v1215 = vld [vmem:[#allocation2 + $0xf8] sm:$0xff]
      %v1216 = vld [vmem:[#allocation2 + $0x100] sm:$0xff]
      %v1217 = vld [vmem:[#allocation2 + $0x108] sm:$0xff]
      %v1218 = vld [vmem:[#allocation2 + $0x110] sm:$0xff]
      %v1219 = vld [vmem:[#allocation2 + $0x118] sm:$0xff]
      %v1220 = vpack.c.bf16 %v1185, %v1184
      %v1221 = vpack.c.bf16 %v1187, %v1186
      %v1222 = vpack.c.bf16 %v1189, %v1188
      %v1223 = vpack.c.bf16 %v1191, %v1190
      %v1224 = vpack.c.bf16 %v1193, %v1192
      %v1225 = vpack.c.bf16 %v1195, %v1194
      %v1226 = vpack.c.bf16 %v1197, %v1196
      %v1227 = vpack.c.bf16 %v1199, %v1198
      %v1228 = vpack.c.bf16 %v1201, %v1200
      %v1229 = vpack.c.bf16 %v1203, %v1202
      %v1230 = vpack.c.bf16 %v1205, %v1204
      %v1231 = vpack.c.bf16 %v1207, %v1206
      %v1232 = vpack.c.bf16 %v1209, %v1208
      %v1233 = vpack.c.bf16 %v1211, %v1210
      %v1234 = vpack.c.bf16 %v1213, %v1212
      %v1235 = vpack.c.bf16 %v1215, %v1214
      %v1236 = vpack.c.bf16 %v1217, %v1216
      %v1237 = vpack.c.bf16 %v1219, %v1218
      %v1238 = vld [vmem:[%s5] sm:$0x3]
      %v1239 = vld [vmem:[#allocation2 + $0x1] sm:$0xff]
      %v1240 = vld [vmem:[#allocation2 + $0x9] sm:$0xff]
      %v1241 = vld [vmem:[#allocation2 + $0x11] sm:$0xff]
      %v1242 = vld [vmem:[#allocation2 + $0x19] sm:$0xff]
      %v1243 = vld [vmem:[#allocation2 + $0x21] sm:$0xff]
      %v1244 = vld [vmem:[#allocation2 + $0x29] sm:$0xff]
      %v1245 = vld [vmem:[#allocation2 + $0x31] sm:$0xff]
      %v1246 = vld [vmem:[#allocation2 + $0x39] sm:$0xff]
      %v1247 = vld [vmem:[#allocation2 + $0x41] sm:$0xff]
      %v1248 = vld [vmem:[#allocation2 + $0x49] sm:$0xff]
      %v1249 = vld [vmem:[#allocation2 + $0x51] sm:$0xff]
      %v1250 = vld [vmem:[#allocation2 + $0x59] sm:$0xff]
      %v1251 = vld [vmem:[#allocation2 + $0x61] sm:$0xff]
      %v1252 = vld [vmem:[#allocation2 + $0x69] sm:$0xff]
      %v1253 = vld [vmem:[#allocation2 + $0x71] sm:$0xff]
      %v1254 = vld [vmem:[#allocation2 + $0x79] sm:$0xff]
      %v1255 = vld [vmem:[#allocation2 + $0x81] sm:$0xff]
      %v1256 = vld [vmem:[#allocation2 + $0x89] sm:$0xff]
      %v1257 = vld [vmem:[#allocation2 + $0x91] sm:$0xff]
      %v1258 = vld [vmem:[#allocation2 + $0x99] sm:$0xff]
      %v1259 = vld [vmem:[#allocation2 + $0xa1] sm:$0xff]
      %v1260 = vld [vmem:[#allocation2 + $0xa9] sm:$0xff]
      %v1261 = vld [vmem:[#allocation2 + $0xb1] sm:$0xff]
      %v1262 = vld [vmem:[#allocation2 + $0xb9] sm:$0xff]
      %v1263 = vld [vmem:[#allocation2 + $0xc1] sm:$0xff]
      %v1264 = vld [vmem:[#allocation2 + $0xc9] sm:$0xff]
      %v1265 = vld [vmem:[#allocation2 + $0xd1] sm:$0xff]
      %v1266 = vld [vmem:[#allocation2 + $0xd9] sm:$0xff]
      %v1267 = vld [vmem:[#allocation2 + $0xe1] sm:$0xff]
      %v1268 = vld [vmem:[#allocation2 + $0xe9] sm:$0xff]
      %v1269 = vld [vmem:[#allocation2 + $0xf1] sm:$0xff]
      %v1270 = vld [vmem:[#allocation2 + $0xf9] sm:$0xff]
      %v1271 = vld [vmem:[#allocation2 + $0x101] sm:$0xff]
      %v1272 = vld [vmem:[#allocation2 + $0x109] sm:$0xff]
      %v1273 = vld [vmem:[#allocation2 + $0x111] sm:$0xff]
      %v1274 = vld [vmem:[#allocation2 + $0x119] sm:$0xff]
      %v1275 = vpack.c.bf16 %v1240, %v1239
      %v1276 = vpack.c.bf16 %v1242, %v1241
      %v1277 = vpack.c.bf16 %v1244, %v1243
      %v1278 = vpack.c.bf16 %v1246, %v1245
      %v1279 = vpack.c.bf16 %v1248, %v1247
      %v1280 = vpack.c.bf16 %v1250, %v1249
      %v1281 = vpack.c.bf16 %v1252, %v1251
      %v1282 = vpack.c.bf16 %v1254, %v1253
      %v1283 = vpack.c.bf16 %v1256, %v1255
      %v1284 = vpack.c.bf16 %v1258, %v1257
      %v1285 = vpack.c.bf16 %v1260, %v1259
      %v1286 = vpack.c.bf16 %v1262, %v1261
      %v1287 = vpack.c.bf16 %v1264, %v1263
      %v1288 = vpack.c.bf16 %v1266, %v1265
      %v1289 = vpack.c.bf16 %v1268, %v1267
      %v1290 = vpack.c.bf16 %v1270, %v1269
      %v1291 = vpack.c.bf16 %v1272, %v1271
      %v1292 = vpack.c.bf16 %v1274, %v1273
      %s1293 = scalar_lea.vmem %s5, 2
      %v1294 = vld [vmem:[%s1293] sm:$0x3]
      %v1296 = vsel %vm1139, %v1275, 0
      %v1299 = vsel %vm1139, %v1276, 0
      %v1302 = vsel %vm1139, %v1277, 0
      %v1305 = vsel %vm1139, %v1278, 0
      %v1308 = vsel %vm1139, %v1279, 0
      %v1311 = vsel %vm1139, %v1280, 0
      %v1314 = vsel %vm1139, %v1281, 0
      %v1317 = vsel %vm1139, %v1282, 0
      %v1320 = vsel %vm1139, %v1283, 0
      %v1323 = vsel %vm1139, %v1284, 0
      %v1326 = vsel %vm1139, %v1285, 0
      %v1329 = vsel %vm1139, %v1286, 0
      %v1332 = vsel %vm1139, %v1287, 0
      %v1335 = vsel %vm1139, %v1288, 0
      %v1338 = vsel %vm1139, %v1289, 0
      %v1341 = vsel %vm1139, %v1290, 0
      %v1344 = vsel %vm1139, %v1291, 0
      %v1347 = vsel %vm1139, %v1292, 0
      %vm1349 = vcmask 1041408
      %v1351 = vsel %vm1349, %v1294, 0
      %1353 = vmatprep.subr.bf16.mxu0 0
      %1354 = vmatpush1.bf16.msra.mxu0 0
      %1355 = vmatprep.subr.bf16.mxu0 0
      %1356 = vmatpush1.bf16.msra.mxu0 0
      %1357 = vmatprep.subr.bf16.mxu0 0
      %1358 = vmatpush1.bf16.msra.mxu0 0
      %1359 = vmatprep.subr.bf16.mxu0 0
      %1360 = vmatpush1.bf16.msra.mxu0 0
      %1361 = vmatprep.subr.bf16.mxu0 0
      %1362 = vmatpush1.bf16.msra.mxu0 0
      %1363 = vmatprep.subr.bf16.mxu0 0
      %1364 = vmatpush1.bf16.msra.mxu0 0
      %1365 = vmatprep.subr.bf16.mxu0 0
      %1366 = vmatpush1.bf16.msra.mxu0 0
      %1367 = vmatprep.subr.bf16.mxu0 0
      %1368 = vmatpush1.bf16.msra.mxu0 %v1351
      %1369 = vmatprep.subr.bf16.mxu0 0
      %1370 = vmatpush2.bf16.msra.mxu0 0
      %1371 = vmatprep.subr.bf16.mxu0 0
      %1372 = vmatpush2.bf16.msra.mxu0 0
      %1373 = vmatprep.subr.bf16.mxu0 0
      %1374 = vmatpush2.bf16.msra.mxu0 0
      %1375 = vmatprep.subr.bf16.mxu0 0
      %1376 = vmatpush2.bf16.msra.mxu0 0
      %1377 = vmatprep.subr.bf16.mxu0 0
      %1378 = vmatpush2.bf16.msra.mxu0 0
      %1379 = vmatprep.subr.bf16.mxu0 0
      %1380 = vmatpush2.bf16.msra.mxu0 0
      %1381 = vmatprep.subr.bf16.mxu0 0
      %1382 = vmatpush2.bf16.msra.mxu0 0
      %1383 = vmatprep.subr.bf16.mxu0 0
      %1384 = vmatpush2.bf16.msra.mxu0 0
      %1385 = vmatprep.mubr.bf16.mxu0 0
      %1386 = vmatmul.mubr.bf16.gmra.mxu0 %v1296
      %v1387 = vpop.f32.mrf.mxu0
      %v1388 = vadd.f32 0.0, %v1387
      %v1389 = vpop.f32.mrf.mxu0
      %v1390 = vpop.f32.mrf.mxu0
      %v1391 = vadd.f32 0.0, %v1390
      %v1392 = vpop.f32.mrf.mxu0
      %1393 = vmatprep.mubr.bf16.mxu0 0
      %1394 = vmatmul.mubr.bf16.gmra.mxu0 %v1299
      %v1395 = vpop.f32.mrf.mxu0
      %v1396 = vadd.f32 0.0, %v1395
      %v1397 = vpop.f32.mrf.mxu0
      %v1398 = vpop.f32.mrf.mxu0
      %v1399 = vadd.f32 0.0, %v1398
      %v1400 = vpop.f32.mrf.mxu0
      %1401 = vmatprep.mubr.bf16.mxu0 0
      %1402 = vmatmul.mubr.bf16.gmra.mxu0 %v1302
      %v1403 = vpop.f32.mrf.mxu0
      %v1404 = vadd.f32 0.0, %v1403
      %v1405 = vpop.f32.mrf.mxu0
      %v1406 = vpop.f32.mrf.mxu0
      %v1407 = vadd.f32 0.0, %v1406
      %v1408 = vpop.f32.mrf.mxu0
      %1409 = vmatprep.mubr.bf16.mxu0 0
      %1410 = vmatmul.mubr.bf16.gmra.mxu0 %v1305
      %v1411 = vpop.f32.mrf.mxu0
      %v1412 = vadd.f32 0.0, %v1411
      %v1413 = vpop.f32.mrf.mxu0
      %v1414 = vpop.f32.mrf.mxu0
      %v1415 = vadd.f32 0.0, %v1414
      %v1416 = vpop.f32.mrf.mxu0
      %1417 = vmatprep.mubr.bf16.mxu0 0
      %1418 = vmatmul.mubr.bf16.gmra.mxu0 %v1308
      %v1419 = vpop.f32.mrf.mxu0
      %v1420 = vadd.f32 0.0, %v1419
      %v1421 = vpop.f32.mrf.mxu0
      %v1422 = vpop.f32.mrf.mxu0
      %v1423 = vadd.f32 0.0, %v1422
      %v1424 = vpop.f32.mrf.mxu0
      %1425 = vmatprep.mubr.bf16.mxu0 0
      %1426 = vmatmul.mubr.bf16.gmra.mxu0 %v1311
      %v1427 = vpop.f32.mrf.mxu0
      %v1428 = vadd.f32 0.0, %v1427
      %v1429 = vpop.f32.mrf.mxu0
      %v1430 = vpop.f32.mrf.mxu0
      %v1431 = vadd.f32 0.0, %v1430
      %v1432 = vpop.f32.mrf.mxu0
      %1433 = vmatprep.mubr.bf16.mxu0 0
      %1434 = vmatmul.mubr.bf16.gmra.mxu0 %v1314
      %v1435 = vpop.f32.mrf.mxu0
      %v1436 = vadd.f32 0.0, %v1435
      %v1437 = vpop.f32.mrf.mxu0
      %v1438 = vpop.f32.mrf.mxu0
      %v1439 = vadd.f32 0.0, %v1438
      %v1440 = vpop.f32.mrf.mxu0
      %1441 = vmatprep.mubr.bf16.mxu0 0
      %1442 = vmatmul.mubr.bf16.gmra.mxu0 %v1317
      %v1443 = vpop.f32.mrf.mxu0
      %v1444 = vadd.f32 0.0, %v1443
      %v1445 = vpop.f32.mrf.mxu0
      %v1446 = vpop.f32.mrf.mxu0
      %v1447 = vadd.f32 0.0, %v1446
      %v1448 = vpop.f32.mrf.mxu0
      %1449 = vmatprep.mubr.bf16.mxu0 0
      %1450 = vmatmul.mubr.bf16.gmra.mxu0 %v1320
      %v1451 = vpop.f32.mrf.mxu0
      %v1452 = vadd.f32 0.0, %v1451
      %v1453 = vpop.f32.mrf.mxu0
      %v1454 = vpop.f32.mrf.mxu0
      %v1455 = vadd.f32 0.0, %v1454
      %v1456 = vpop.f32.mrf.mxu0
      %1457 = vmatprep.mubr.bf16.mxu0 0
      %1458 = vmatmul.mubr.bf16.gmra.mxu0 %v1323
      %v1459 = vpop.f32.mrf.mxu0
      %v1460 = vadd.f32 0.0, %v1459
      %v1461 = vpop.f32.mrf.mxu0
      %v1462 = vpop.f32.mrf.mxu0
      %v1463 = vadd.f32 0.0, %v1462
      %v1464 = vpop.f32.mrf.mxu0
      %1465 = vmatprep.mubr.bf16.mxu0 0
      %1466 = vmatmul.mubr.bf16.gmra.mxu0 %v1326
      %v1467 = vpop.f32.mrf.mxu0
      %v1468 = vadd.f32 0.0, %v1467
      %v1469 = vpop.f32.mrf.mxu0
      %v1470 = vpop.f32.mrf.mxu0
      %v1471 = vadd.f32 0.0, %v1470
      %v1472 = vpop.f32.mrf.mxu0
      %1473 = vmatprep.mubr.bf16.mxu0 0
      %1474 = vmatmul.mubr.bf16.gmra.mxu0 %v1329
      %v1475 = vpop.f32.mrf.mxu0
      %v1476 = vadd.f32 0.0, %v1475
      %v1477 = vpop.f32.mrf.mxu0
      %v1478 = vpop.f32.mrf.mxu0
      %v1479 = vadd.f32 0.0, %v1478
      %v1480 = vpop.f32.mrf.mxu0
      %1481 = vmatprep.mubr.bf16.mxu0 0
      %1482 = vmatmul.mubr.bf16.gmra.mxu0 %v1332
      %v1483 = vpop.f32.mrf.mxu0
      %v1484 = vadd.f32 0.0, %v1483
      %v1485 = vpop.f32.mrf.mxu0
      %v1486 = vpop.f32.mrf.mxu0
      %v1487 = vadd.f32 0.0, %v1486
      %v1488 = vpop.f32.mrf.mxu0
      %1489 = vmatprep.mubr.bf16.mxu0 0
      %1490 = vmatmul.mubr.bf16.gmra.mxu0 %v1335
      %v1491 = vpop.f32.mrf.mxu0
      %v1492 = vadd.f32 0.0, %v1491
      %v1493 = vpop.f32.mrf.mxu0
      %v1494 = vpop.f32.mrf.mxu0
      %v1495 = vadd.f32 0.0, %v1494
      %v1496 = vpop.f32.mrf.mxu0
      %1497 = vmatprep.mubr.bf16.mxu0 0
      %1498 = vmatmul.mubr.bf16.gmra.mxu0 %v1338
      %v1499 = vpop.f32.mrf.mxu0
      %v1500 = vadd.f32 0.0, %v1499
      %v1501 = vpop.f32.mrf.mxu0
      %v1502 = vpop.f32.mrf.mxu0
      %v1503 = vadd.f32 0.0, %v1502
      %v1504 = vpop.f32.mrf.mxu0
      %1505 = vmatprep.mubr.bf16.mxu0 0
      %1506 = vmatmul.mubr.bf16.gmra.mxu0 %v1341
      %v1507 = vpop.f32.mrf.mxu0
      %v1508 = vadd.f32 0.0, %v1507
      %v1509 = vpop.f32.mrf.mxu0
      %v1510 = vpop.f32.mrf.mxu0
      %v1511 = vadd.f32 0.0, %v1510
      %v1512 = vpop.f32.mrf.mxu0
      %1513 = vmatprep.mubr.bf16.mxu0 0
      %1514 = vmatmul.mubr.bf16.gmra.mxu0 %v1344
      %v1515 = vpop.f32.mrf.mxu0
      %v1516 = vadd.f32 0.0, %v1515
      %v1517 = vpop.f32.mrf.mxu0
      %v1518 = vpop.f32.mrf.mxu0
      %v1519 = vadd.f32 0.0, %v1518
      %v1520 = vpop.f32.mrf.mxu0
      %1521 = vmatprep.mubr.bf16.mxu0 0
      %1522 = vmatmul.mubr.bf16.gmra.mxu0 %v1347
      %v1523 = vpop.f32.mrf.mxu0
      %v1524 = vadd.f32 0.0, %v1523
      %v1525 = vpop.f32.mrf.mxu0
      %v1526 = vpop.f32.mrf.mxu0
      %v1527 = vadd.f32 0.0, %v1526
      %v1528 = vpop.f32.mrf.mxu0
      %1529 = vdwg.mxu0
      %v1531 = vsel %vm1139, %v1220, 0
      %v1534 = vsel %vm1139, %v1221, 0
      %v1537 = vsel %vm1139, %v1222, 0
      %v1540 = vsel %vm1139, %v1223, 0
      %v1543 = vsel %vm1139, %v1224, 0
      %v1546 = vsel %vm1139, %v1225, 0
      %v1549 = vsel %vm1139, %v1226, 0
      %v1552 = vsel %vm1139, %v1227, 0
      %v1555 = vsel %vm1139, %v1228, 0
      %v1558 = vsel %vm1139, %v1229, 0
      %v1561 = vsel %vm1139, %v1230, 0
      %v1564 = vsel %vm1139, %v1231, 0
      %v1567 = vsel %vm1139, %v1232, 0
      %v1570 = vsel %vm1139, %v1233, 0
      %v1573 = vsel %vm1139, %v1234, 0
      %v1576 = vsel %vm1139, %v1235, 0
      %v1579 = vsel %vm1139, %v1236, 0
      %v1582 = vsel %vm1139, %v1237, 0
      %v1585 = vsel %vm1349, %v1238, 0
      %1587 = vmatprep.subr.bf16.mxu0 0
      %1588 = vmatpush1.bf16.msra.mxu0 0
      %1589 = vmatprep.subr.bf16.mxu0 0
      %1590 = vmatpush1.bf16.msra.mxu0 0
      %1591 = vmatprep.subr.bf16.mxu0 0
      %1592 = vmatpush1.bf16.msra.mxu0 0
      %1593 = vmatprep.subr.bf16.mxu0 0
      %1594 = vmatpush1.bf16.msra.mxu0 0
      %1595 = vmatprep.subr.bf16.mxu0 0
      %1596 = vmatpush1.bf16.msra.mxu0 0
      %1597 = vmatprep.subr.bf16.mxu0 0
      %1598 = vmatpush1.bf16.msra.mxu0 0
      %1599 = vmatprep.subr.bf16.mxu0 0
      %1600 = vmatpush1.bf16.msra.mxu0 0
      %1601 = vmatprep.subr.bf16.mxu0 0
      %1602 = vmatpush1.bf16.msra.mxu0 %v1585
      %1603 = vmatprep.subr.bf16.mxu0 0
      %1604 = vmatpush2.bf16.msra.mxu0 0
      %1605 = vmatprep.subr.bf16.mxu0 0
      %1606 = vmatpush2.bf16.msra.mxu0 0
      %1607 = vmatprep.subr.bf16.mxu0 0
      %1608 = vmatpush2.bf16.msra.mxu0 0
      %1609 = vmatprep.subr.bf16.mxu0 0
      %1610 = vmatpush2.bf16.msra.mxu0 0
      %1611 = vmatprep.subr.bf16.mxu0 0
      %1612 = vmatpush2.bf16.msra.mxu0 0
      %1613 = vmatprep.subr.bf16.mxu0 0
      %1614 = vmatpush2.bf16.msra.mxu0 0
      %1615 = vmatprep.subr.bf16.mxu0 0
      %1616 = vmatpush2.bf16.msra.mxu0 0
      %1617 = vmatprep.subr.bf16.mxu0 0
      %1618 = vmatpush2.bf16.msra.mxu0 0
      %1619 = vmatprep.mubr.bf16.mxu0 0
      %1620 = vmatmul.mubr.bf16.gmra.mxu0 %v1531
      %v1621 = vpop.f32.mrf.mxu0
      %v1622 = vadd.f32 %v1388, %v1621
      %v1623 = vpop.f32.mrf.mxu0
      %v1624 = vpop.f32.mrf.mxu0
      %v1625 = vadd.f32 %v1391, %v1624
      %v1626 = vpop.f32.mrf.mxu0
      %1627 = vmatprep.mubr.bf16.mxu0 0
      %1628 = vmatmul.mubr.bf16.gmra.mxu0 %v1534
      %v1629 = vpop.f32.mrf.mxu0
      %v1630 = vadd.f32 %v1396, %v1629
      %v1631 = vpop.f32.mrf.mxu0
      %v1632 = vpop.f32.mrf.mxu0
      %v1633 = vadd.f32 %v1399, %v1632
      %v1634 = vpop.f32.mrf.mxu0
      %1635 = vmatprep.mubr.bf16.mxu0 0
      %1636 = vmatmul.mubr.bf16.gmra.mxu0 %v1537
      %v1637 = vpop.f32.mrf.mxu0
      %v1638 = vadd.f32 %v1404, %v1637
      %v1639 = vpop.f32.mrf.mxu0
      %v1640 = vpop.f32.mrf.mxu0
      %v1641 = vadd.f32 %v1407, %v1640
      %v1642 = vpop.f32.mrf.mxu0
      %1643 = vmatprep.mubr.bf16.mxu0 0
      %1644 = vmatmul.mubr.bf16.gmra.mxu0 %v1540
      %v1645 = vpop.f32.mrf.mxu0
      %v1646 = vadd.f32 %v1412, %v1645
      %v1647 = vpop.f32.mrf.mxu0
      %v1648 = vpop.f32.mrf.mxu0
      %v1649 = vadd.f32 %v1415, %v1648
      %v1650 = vpop.f32.mrf.mxu0
      %1651 = vmatprep.mubr.bf16.mxu0 0
      %1652 = vmatmul.mubr.bf16.gmra.mxu0 %v1543
      %v1653 = vpop.f32.mrf.mxu0
      %v1654 = vadd.f32 %v1420, %v1653
      %v1655 = vpop.f32.mrf.mxu0
      %v1656 = vpop.f32.mrf.mxu0
      %v1657 = vadd.f32 %v1423, %v1656
      %v1658 = vpop.f32.mrf.mxu0
      %1659 = vmatprep.mubr.bf16.mxu0 0
      %1660 = vmatmul.mubr.bf16.gmra.mxu0 %v1546
      %v1661 = vpop.f32.mrf.mxu0
      %v1662 = vadd.f32 %v1428, %v1661
      %v1663 = vpop.f32.mrf.mxu0
      %v1664 = vpop.f32.mrf.mxu0
      %v1665 = vadd.f32 %v1431, %v1664
      %v1666 = vpop.f32.mrf.mxu0
      %1667 = vmatprep.mubr.bf16.mxu0 0
      %1668 = vmatmul.mubr.bf16.gmra.mxu0 %v1549
      %v1669 = vpop.f32.mrf.mxu0
      %v1670 = vadd.f32 %v1436, %v1669
      %v1671 = vpop.f32.mrf.mxu0
      %v1672 = vpop.f32.mrf.mxu0
      %v1673 = vadd.f32 %v1439, %v1672
      %v1674 = vpop.f32.mrf.mxu0
      %1675 = vmatprep.mubr.bf16.mxu0 0
      %1676 = vmatmul.mubr.bf16.gmra.mxu0 %v1552
      %v1677 = vpop.f32.mrf.mxu0
      %v1678 = vadd.f32 %v1444, %v1677
      %v1679 = vpop.f32.mrf.mxu0
      %v1680 = vpop.f32.mrf.mxu0
      %v1681 = vadd.f32 %v1447, %v1680
      %v1682 = vpop.f32.mrf.mxu0
      %1683 = vmatprep.mubr.bf16.mxu0 0
      %1684 = vmatmul.mubr.bf16.gmra.mxu0 %v1555
      %v1685 = vpop.f32.mrf.mxu0
      %v1686 = vadd.f32 %v1452, %v1685
      %v1687 = vpop.f32.mrf.mxu0
      %v1688 = vpop.f32.mrf.mxu0
      %v1689 = vadd.f32 %v1455, %v1688
      %v1690 = vpop.f32.mrf.mxu0
      %1691 = vmatprep.mubr.bf16.mxu0 0
      %1692 = vmatmul.mubr.bf16.gmra.mxu0 %v1558
      %v1693 = vpop.f32.mrf.mxu0
      %v1694 = vadd.f32 %v1460, %v1693
      %v1695 = vpop.f32.mrf.mxu0
      %v1696 = vpop.f32.mrf.mxu0
      %v1697 = vadd.f32 %v1463, %v1696
      %v1698 = vpop.f32.mrf.mxu0
      %1699 = vmatprep.mubr.bf16.mxu0 0
      %1700 = vmatmul.mubr.bf16.gmra.mxu0 %v1561
      %v1701 = vpop.f32.mrf.mxu0
      %v1702 = vadd.f32 %v1468, %v1701
      %v1703 = vpop.f32.mrf.mxu0
      %v1704 = vpop.f32.mrf.mxu0
      %v1705 = vadd.f32 %v1471, %v1704
      %v1706 = vpop.f32.mrf.mxu0
      %1707 = vmatprep.mubr.bf16.mxu0 0
      %1708 = vmatmul.mubr.bf16.gmra.mxu0 %v1564
      %v1709 = vpop.f32.mrf.mxu0
      %v1710 = vadd.f32 %v1476, %v1709
      %v1711 = vpop.f32.mrf.mxu0
      %v1712 = vpop.f32.mrf.mxu0
      %v1713 = vadd.f32 %v1479, %v1712
      %v1714 = vpop.f32.mrf.mxu0
      %1715 = vmatprep.mubr.bf16.mxu0 0
      %1716 = vmatmul.mubr.bf16.gmra.mxu0 %v1567
      %v1717 = vpop.f32.mrf.mxu0
      %v1718 = vadd.f32 %v1484, %v1717
      %v1719 = vpop.f32.mrf.mxu0
      %v1720 = vpop.f32.mrf.mxu0
      %v1721 = vadd.f32 %v1487, %v1720
      %v1722 = vpop.f32.mrf.mxu0
      %1723 = vmatprep.mubr.bf16.mxu0 0
      %1724 = vmatmul.mubr.bf16.gmra.mxu0 %v1570
      %v1725 = vpop.f32.mrf.mxu0
      %v1726 = vadd.f32 %v1492, %v1725
      %v1727 = vpop.f32.mrf.mxu0
      %v1728 = vpop.f32.mrf.mxu0
      %v1729 = vadd.f32 %v1495, %v1728
      %v1730 = vpop.f32.mrf.mxu0
      %1731 = vmatprep.mubr.bf16.mxu0 0
      %1732 = vmatmul.mubr.bf16.gmra.mxu0 %v1573
      %v1733 = vpop.f32.mrf.mxu0
      %v1734 = vadd.f32 %v1500, %v1733
      %v1735 = vpop.f32.mrf.mxu0
      %v1736 = vpop.f32.mrf.mxu0
      %v1737 = vadd.f32 %v1503, %v1736
      %v1738 = vpop.f32.mrf.mxu0
      %1739 = vmatprep.mubr.bf16.mxu0 0
      %1740 = vmatmul.mubr.bf16.gmra.mxu0 %v1576
      %v1741 = vpop.f32.mrf.mxu0
      %v1742 = vadd.f32 %v1508, %v1741
      %v1743 = vpop.f32.mrf.mxu0
      %v1744 = vpop.f32.mrf.mxu0
      %v1745 = vadd.f32 %v1511, %v1744
      %v1746 = vpop.f32.mrf.mxu0
      %1747 = vmatprep.mubr.bf16.mxu0 0
      %1748 = vmatmul.mubr.bf16.gmra.mxu0 %v1579
      %v1749 = vpop.f32.mrf.mxu0
      %v1750 = vadd.f32 %v1516, %v1749
      %v1751 = vpop.f32.mrf.mxu0
      %v1752 = vpop.f32.mrf.mxu0
      %v1753 = vadd.f32 %v1519, %v1752
      %v1754 = vpop.f32.mrf.mxu0
      %1755 = vmatprep.mubr.bf16.mxu0 0
      %1756 = vmatmul.mubr.bf16.gmra.mxu0 %v1582
      %v1757 = vpop.f32.mrf.mxu0
      %v1758 = vadd.f32 %v1524, %v1757
      %v1759 = vpop.f32.mrf.mxu0
      %v1760 = vpop.f32.mrf.mxu0
      %v1761 = vadd.f32 %v1527, %v1760
      %v1762 = vpop.f32.mrf.mxu0
      %1763 = vdwg.mxu0
      %v1764 = vld [vmem:[#allocation2 + $0x2] sm:$0xff]
      %v1765 = vld [vmem:[#allocation2 + $0xa] sm:$0xff]
      %v1766 = vld [vmem:[#allocation2 + $0x12] sm:$0xff]
      %v1767 = vld [vmem:[#allocation2 + $0x1a] sm:$0xff]
      %v1768 = vld [vmem:[#allocation2 + $0x22] sm:$0xff]
      %v1769 = vld [vmem:[#allocation2 + $0x2a] sm:$0xff]
      %v1770 = vld [vmem:[#allocation2 + $0x32] sm:$0xff]
      %v1771 = vld [vmem:[#allocation2 + $0x3a] sm:$0xff]
      %v1772 = vld [vmem:[#allocation2 + $0x42] sm:$0xff]
      %v1773 = vld [vmem:[#allocation2 + $0x4a] sm:$0xff]
      %v1774 = vld [vmem:[#allocation2 + $0x52] sm:$0xff]
      %v1775 = vld [vmem:[#allocation2 + $0x5a] sm:$0xff]
      %v1776 = vld [vmem:[#allocation2 + $0x62] sm:$0xff]
      %v1777 = vld [vmem:[#allocation2 + $0x6a] sm:$0xff]
      %v1778 = vld [vmem:[#allocation2 + $0x72] sm:$0xff]
      %v1779 = vld [vmem:[#allocation2 + $0x7a] sm:$0xff]
      %v1780 = vld [vmem:[#allocation2 + $0x82] sm:$0xff]
      %v1781 = vld [vmem:[#allocation2 + $0x8a] sm:$0xff]
      %v1782 = vld [vmem:[#allocation2 + $0x92] sm:$0xff]
      %v1783 = vld [vmem:[#allocation2 + $0x9a] sm:$0xff]
      %v1784 = vld [vmem:[#allocation2 + $0xa2] sm:$0xff]
      %v1785 = vld [vmem:[#allocation2 + $0xaa] sm:$0xff]
      %v1786 = vld [vmem:[#allocation2 + $0xb2] sm:$0xff]
      %v1787 = vld [vmem:[#allocation2 + $0xba] sm:$0xff]
      %v1788 = vld [vmem:[#allocation2 + $0xc2] sm:$0xff]
      %v1789 = vld [vmem:[#allocation2 + $0xca] sm:$0xff]
      %v1790 = vld [vmem:[#allocation2 + $0xd2] sm:$0xff]
      %v1791 = vld [vmem:[#allocation2 + $0xda] sm:$0xff]
      %v1792 = vld [vmem:[#allocation2 + $0xe2] sm:$0xff]
      %v1793 = vld [vmem:[#allocation2 + $0xea] sm:$0xff]
      %v1794 = vld [vmem:[#allocation2 + $0xf2] sm:$0xff]
      %v1795 = vld [vmem:[#allocation2 + $0xfa] sm:$0xff]
      %v1796 = vld [vmem:[#allocation2 + $0x102] sm:$0xff]
      %v1797 = vld [vmem:[#allocation2 + $0x10a] sm:$0xff]
      %v1798 = vld [vmem:[#allocation2 + $0x112] sm:$0xff]
      %v1799 = vld [vmem:[#allocation2 + $0x11a] sm:$0xff]
      %v1800 = vpack.c.bf16 %v1765, %v1764
      %v1801 = vpack.c.bf16 %v1767, %v1766
      %v1802 = vpack.c.bf16 %v1769, %v1768
      %v1803 = vpack.c.bf16 %v1771, %v1770
      %v1804 = vpack.c.bf16 %v1773, %v1772
      %v1805 = vpack.c.bf16 %v1775, %v1774
      %v1806 = vpack.c.bf16 %v1777, %v1776
      %v1807 = vpack.c.bf16 %v1779, %v1778
      %v1808 = vpack.c.bf16 %v1781, %v1780
      %v1809 = vpack.c.bf16 %v1783, %v1782
      %v1810 = vpack.c.bf16 %v1785, %v1784
      %v1811 = vpack.c.bf16 %v1787, %v1786
      %v1812 = vpack.c.bf16 %v1789, %v1788
      %v1813 = vpack.c.bf16 %v1791, %v1790
      %v1814 = vpack.c.bf16 %v1793, %v1792
      %v1815 = vpack.c.bf16 %v1795, %v1794
      %v1816 = vpack.c.bf16 %v1797, %v1796
      %v1817 = vpack.c.bf16 %v1799, %v1798
      %s1818 = scalar_lea.vmem %s5, 4
      %v1819 = vld [vmem:[%s1818] sm:$0x3]
      %v1821 = vsel %vm1139, %v1800, 0
      %v1824 = vsel %vm1139, %v1801, 0
      %v1827 = vsel %vm1139, %v1802, 0
      %v1830 = vsel %vm1139, %v1803, 0
      %v1833 = vsel %vm1139, %v1804, 0
      %v1836 = vsel %vm1139, %v1805, 0
      %v1839 = vsel %vm1139, %v1806, 0
      %v1842 = vsel %vm1139, %v1807, 0
      %v1845 = vsel %vm1139, %v1808, 0
      %v1848 = vsel %vm1139, %v1809, 0
      %v1851 = vsel %vm1139, %v1810, 0
      %v1854 = vsel %vm1139, %v1811, 0
      %v1857 = vsel %vm1139, %v1812, 0
      %v1860 = vsel %vm1139, %v1813, 0
      %v1863 = vsel %vm1139, %v1814, 0
      %v1866 = vsel %vm1139, %v1815, 0
      %v1869 = vsel %vm1139, %v1816, 0
      %v1872 = vsel %vm1139, %v1817, 0
      %v1875 = vsel %vm1349, %v1819, 0
      %1877 = vmatprep.subr.bf16.mxu0 0
      %1878 = vmatpush1.bf16.msra.mxu0 0
      %1879 = vmatprep.subr.bf16.mxu0 0
      %1880 = vmatpush1.bf16.msra.mxu0 0
      %1881 = vmatprep.subr.bf16.mxu0 0
      %1882 = vmatpush1.bf16.msra.mxu0 0
      %1883 = vmatprep.subr.bf16.mxu0 0
      %1884 = vmatpush1.bf16.msra.mxu0 0
      %1885 = vmatprep.subr.bf16.mxu0 0
      %1886 = vmatpush1.bf16.msra.mxu0 0
      %1887 = vmatprep.subr.bf16.mxu0 0
      %1888 = vmatpush1.bf16.msra.mxu0 0
      %1889 = vmatprep.subr.bf16.mxu0 0
      %1890 = vmatpush1.bf16.msra.mxu0 0
      %1891 = vmatprep.subr.bf16.mxu0 0
      %1892 = vmatpush1.bf16.msra.mxu0 %v1875
      %1893 = vmatprep.subr.bf16.mxu0 0
      %1894 = vmatpush2.bf16.msra.mxu0 0
      %1895 = vmatprep.subr.bf16.mxu0 0
      %1896 = vmatpush2.bf16.msra.mxu0 0
      %1897 = vmatprep.subr.bf16.mxu0 0
      %1898 = vmatpush2.bf16.msra.mxu0 0
      %1899 = vmatprep.subr.bf16.mxu0 0
      %1900 = vmatpush2.bf16.msra.mxu0 0
      %1901 = vmatprep.subr.bf16.mxu0 0
      %1902 = vmatpush2.bf16.msra.mxu0 0
      %1903 = vmatprep.subr.bf16.mxu0 0
      %1904 = vmatpush2.bf16.msra.mxu0 0
      %1905 = vmatprep.subr.bf16.mxu0 0
      %1906 = vmatpush2.bf16.msra.mxu0 0
      %1907 = vmatprep.subr.bf16.mxu0 0
      %1908 = vmatpush2.bf16.msra.mxu0 0
      %1909 = vmatprep.mubr.bf16.mxu0 0
      %1910 = vmatmul.mubr.bf16.gmra.mxu0 %v1821
      %v1911 = vpop.f32.mrf.mxu0
      %v1912 = vadd.f32 0.0, %v1911
      %v1913 = vpop.f32.mrf.mxu0
      %v1914 = vpop.f32.mrf.mxu0
      %v1915 = vadd.f32 0.0, %v1914
      %v1916 = vpop.f32.mrf.mxu0
      %1917 = vmatprep.mubr.bf16.mxu0 0
      %1918 = vmatmul.mubr.bf16.gmra.mxu0 %v1824
      %v1919 = vpop.f32.mrf.mxu0
      %v1920 = vadd.f32 0.0, %v1919
      %v1921 = vpop.f32.mrf.mxu0
      %v1922 = vpop.f32.mrf.mxu0
      %v1923 = vadd.f32 0.0, %v1922
      %v1924 = vpop.f32.mrf.mxu0
      %1925 = vmatprep.mubr.bf16.mxu0 0
      %1926 = vmatmul.mubr.bf16.gmra.mxu0 %v1827
      %v1927 = vpop.f32.mrf.mxu0
      %v1928 = vadd.f32 0.0, %v1927
      %v1929 = vpop.f32.mrf.mxu0
      %v1930 = vpop.f32.mrf.mxu0
      %v1931 = vadd.f32 0.0, %v1930
      %v1932 = vpop.f32.mrf.mxu0
      %1933 = vmatprep.mubr.bf16.mxu0 0
      %1934 = vmatmul.mubr.bf16.gmra.mxu0 %v1830
      %v1935 = vpop.f32.mrf.mxu0
      %v1936 = vadd.f32 0.0, %v1935
      %v1937 = vpop.f32.mrf.mxu0
      %v1938 = vpop.f32.mrf.mxu0
      %v1939 = vadd.f32 0.0, %v1938
      %v1940 = vpop.f32.mrf.mxu0
      %1941 = vmatprep.mubr.bf16.mxu0 0
      %1942 = vmatmul.mubr.bf16.gmra.mxu0 %v1833
      %v1943 = vpop.f32.mrf.mxu0
      %v1944 = vadd.f32 0.0, %v1943
      %v1945 = vpop.f32.mrf.mxu0
      %v1946 = vpop.f32.mrf.mxu0
      %v1947 = vadd.f32 0.0, %v1946
      %v1948 = vpop.f32.mrf.mxu0
      %1949 = vmatprep.mubr.bf16.mxu0 0
      %1950 = vmatmul.mubr.bf16.gmra.mxu0 %v1836
      %v1951 = vpop.f32.mrf.mxu0
      %v1952 = vadd.f32 0.0, %v1951
      %v1953 = vpop.f32.mrf.mxu0
      %v1954 = vpop.f32.mrf.mxu0
      %v1955 = vadd.f32 0.0, %v1954
      %v1956 = vpop.f32.mrf.mxu0
      %1957 = vmatprep.mubr.bf16.mxu0 0
      %1958 = vmatmul.mubr.bf16.gmra.mxu0 %v1839
      %v1959 = vpop.f32.mrf.mxu0
      %v1960 = vadd.f32 0.0, %v1959
      %v1961 = vpop.f32.mrf.mxu0
      %v1962 = vpop.f32.mrf.mxu0
      %v1963 = vadd.f32 0.0, %v1962
      %v1964 = vpop.f32.mrf.mxu0
      %1965 = vmatprep.mubr.bf16.mxu0 0
      %1966 = vmatmul.mubr.bf16.gmra.mxu0 %v1842
      %v1967 = vpop.f32.mrf.mxu0
      %v1968 = vadd.f32 0.0, %v1967
      %v1969 = vpop.f32.mrf.mxu0
      %v1970 = vpop.f32.mrf.mxu0
      %v1971 = vadd.f32 0.0, %v1970
      %v1972 = vpop.f32.mrf.mxu0
      %1973 = vmatprep.mubr.bf16.mxu0 0
      %1974 = vmatmul.mubr.bf16.gmra.mxu0 %v1845
      %v1975 = vpop.f32.mrf.mxu0
      %v1976 = vadd.f32 0.0, %v1975
      %v1977 = vpop.f32.mrf.mxu0
      %v1978 = vpop.f32.mrf.mxu0
      %v1979 = vadd.f32 0.0, %v1978
      %v1980 = vpop.f32.mrf.mxu0
      %1981 = vmatprep.mubr.bf16.mxu0 0
      %1982 = vmatmul.mubr.bf16.gmra.mxu0 %v1848
      %v1983 = vpop.f32.mrf.mxu0
      %v1984 = vadd.f32 0.0, %v1983
      %v1985 = vpop.f32.mrf.mxu0
      %v1986 = vpop.f32.mrf.mxu0
      %v1987 = vadd.f32 0.0, %v1986
      %v1988 = vpop.f32.mrf.mxu0
      %1989 = vmatprep.mubr.bf16.mxu0 0
      %1990 = vmatmul.mubr.bf16.gmra.mxu0 %v1851
      %v1991 = vpop.f32.mrf.mxu0
      %v1992 = vadd.f32 0.0, %v1991
      %v1993 = vpop.f32.mrf.mxu0
      %v1994 = vpop.f32.mrf.mxu0
      %v1995 = vadd.f32 0.0, %v1994
      %v1996 = vpop.f32.mrf.mxu0
      %1997 = vmatprep.mubr.bf16.mxu0 0
      %1998 = vmatmul.mubr.bf16.gmra.mxu0 %v1854
      %v1999 = vpop.f32.mrf.mxu0
      %v2000 = vadd.f32 0.0, %v1999
      %v2001 = vpop.f32.mrf.mxu0
      %v2002 = vpop.f32.mrf.mxu0
      %v2003 = vadd.f32 0.0, %v2002
      %v2004 = vpop.f32.mrf.mxu0
      %2005 = vmatprep.mubr.bf16.mxu0 0
      %2006 = vmatmul.mubr.bf16.gmra.mxu0 %v1857
      %v2007 = vpop.f32.mrf.mxu0
      %v2008 = vadd.f32 0.0, %v2007
      %v2009 = vpop.f32.mrf.mxu0
      %v2010 = vpop.f32.mrf.mxu0
      %v2011 = vadd.f32 0.0, %v2010
      %v2012 = vpop.f32.mrf.mxu0
      %2013 = vmatprep.mubr.bf16.mxu0 0
      %2014 = vmatmul.mubr.bf16.gmra.mxu0 %v1860
      %v2015 = vpop.f32.mrf.mxu0
      %v2016 = vadd.f32 0.0, %v2015
      %v2017 = vpop.f32.mrf.mxu0
      %v2018 = vpop.f32.mrf.mxu0
      %v2019 = vadd.f32 0.0, %v2018
      %v2020 = vpop.f32.mrf.mxu0
      %2021 = vmatprep.mubr.bf16.mxu0 0
      %2022 = vmatmul.mubr.bf16.gmra.mxu0 %v1863
      %v2023 = vpop.f32.mrf.mxu0
      %v2024 = vadd.f32 0.0, %v2023
      %v2025 = vpop.f32.mrf.mxu0
      %v2026 = vpop.f32.mrf.mxu0
      %v2027 = vadd.f32 0.0, %v2026
      %v2028 = vpop.f32.mrf.mxu0
      %2029 = vmatprep.mubr.bf16.mxu0 0
      %2030 = vmatmul.mubr.bf16.gmra.mxu0 %v1866
      %v2031 = vpop.f32.mrf.mxu0
      %v2032 = vadd.f32 0.0, %v2031
      %v2033 = vpop.f32.mrf.mxu0
      %v2034 = vpop.f32.mrf.mxu0
      %v2035 = vadd.f32 0.0, %v2034
      %v2036 = vpop.f32.mrf.mxu0
      %2037 = vmatprep.mubr.bf16.mxu0 0
      %2038 = vmatmul.mubr.bf16.gmra.mxu0 %v1869
      %v2039 = vpop.f32.mrf.mxu0
      %v2040 = vadd.f32 0.0, %v2039
      %v2041 = vpop.f32.mrf.mxu0
      %v2042 = vpop.f32.mrf.mxu0
      %v2043 = vadd.f32 0.0, %v2042
      %v2044 = vpop.f32.mrf.mxu0
      %2045 = vmatprep.mubr.bf16.mxu0 0
      %2046 = vmatmul.mubr.bf16.gmra.mxu0 %v1872
      %v2047 = vpop.f32.mrf.mxu0
      %v2048 = vadd.f32 0.0, %v2047
      %v2049 = vpop.f32.mrf.mxu0
      %v2050 = vpop.f32.mrf.mxu0
      %v2051 = vadd.f32 0.0, %v2050
      %v2052 = vpop.f32.mrf.mxu0
      %2053 = vdwg.mxu0
      %v2054 = vadd.f32 %v1622, %v1912
      %v2055 = vadd.f32 %v1625, %v1915
      %v2056 = vadd.f32 %v1630, %v1920
      %v2057 = vadd.f32 %v1633, %v1923
      %v2058 = vadd.f32 %v1638, %v1928
      %v2059 = vadd.f32 %v1641, %v1931
      %v2060 = vadd.f32 %v1646, %v1936
      %v2061 = vadd.f32 %v1649, %v1939
      %v2062 = vadd.f32 %v1654, %v1944
      %v2063 = vadd.f32 %v1657, %v1947
      %v2064 = vadd.f32 %v1662, %v1952
      %v2065 = vadd.f32 %v1665, %v1955
      %v2066 = vadd.f32 %v1670, %v1960
      %v2067 = vadd.f32 %v1673, %v1963
      %v2068 = vadd.f32 %v1678, %v1968
      %v2069 = vadd.f32 %v1681, %v1971
      %v2070 = vadd.f32 %v1686, %v1976
      %v2071 = vadd.f32 %v1689, %v1979
      %v2072 = vadd.f32 %v1694, %v1984
      %v2073 = vadd.f32 %v1697, %v1987
      %v2074 = vadd.f32 %v1702, %v1992
      %v2075 = vadd.f32 %v1705, %v1995
      %v2076 = vadd.f32 %v1710, %v2000
      %v2077 = vadd.f32 %v1713, %v2003
      %v2078 = vadd.f32 %v1718, %v2008
      %v2079 = vadd.f32 %v1721, %v2011
      %v2080 = vadd.f32 %v1726, %v2016
      %v2081 = vadd.f32 %v1729, %v2019
      %v2082 = vadd.f32 %v1734, %v2024
      %v2083 = vadd.f32 %v1737, %v2027
      %v2084 = vadd.f32 %v1742, %v2032
      %v2085 = vadd.f32 %v1745, %v2035
      %v2086 = vadd.f32 %v1750, %v2040
      %v2087 = vadd.f32 %v1753, %v2043
      %v2088 = vadd.f32 %v1758, %v2048
      %v2089 = vadd.f32 %v1761, %v2051
      %v2090 = vld [vmem:[#allocation2 + $0x12] sm:$0xff]
      %v2091 = vld [vmem:[#allocation2 + $0x1a] sm:$0xff]
      %v2092 = vld [vmem:[#allocation2 + $0x22] sm:$0xff]
      %v2093 = vld [vmem:[#allocation2 + $0x2a] sm:$0xff]
      %v2094 = vld [vmem:[#allocation2 + $0x32] sm:$0xff]
      %v2095 = vld [vmem:[#allocation2 + $0x3a] sm:$0xff]
      %v2096 = vld [vmem:[#allocation2 + $0x42] sm:$0xff]
      %v2097 = vld [vmem:[#allocation2 + $0x4a] sm:$0xff]
      %v2098 = vld [vmem:[#allocation2 + $0x52] sm:$0xff]
      %v2099 = vld [vmem:[#allocation2 + $0x5a] sm:$0xff]
      %v2100 = vld [vmem:[#allocation2 + $0x62] sm:$0xff]
      %v2101 = vld [vmem:[#allocation2 + $0x6a] sm:$0xff]
      %v2102 = vld [vmem:[#allocation2 + $0x72] sm:$0xff]
      %v2103 = vld [vmem:[#allocation2 + $0x7a] sm:$0xff]
      %v2104 = vld [vmem:[#allocation2 + $0x82] sm:$0xff]
      %v2105 = vld [vmem:[#allocation2 + $0x8a] sm:$0xff]
      %v2106 = vld [vmem:[#allocation2 + $0x92] sm:$0xff]
      %v2107 = vld [vmem:[#allocation2 + $0x9a] sm:$0xff]
      %v2108 = vld [vmem:[#allocation2 + $0xa2] sm:$0xff]
      %v2109 = vld [vmem:[#allocation2 + $0xaa] sm:$0xff]
      %v2110 = vld [vmem:[#allocation2 + $0xb2] sm:$0xff]
      %v2111 = vld [vmem:[#allocation2 + $0xba] sm:$0xff]
      %v2112 = vld [vmem:[#allocation2 + $0xc2] sm:$0xff]
      %v2113 = vld [vmem:[#allocation2 + $0xca] sm:$0xff]
      %v2114 = vld [vmem:[#allocation2 + $0xd2] sm:$0xff]
      %v2115 = vld [vmem:[#allocation2 + $0xda] sm:$0xff]
      %v2116 = vld [vmem:[#allocation2 + $0xe2] sm:$0xff]
      %v2117 = vld [vmem:[#allocation2 + $0xea] sm:$0xff]
      %v2118 = vld [vmem:[#allocation2 + $0xf2] sm:$0xff]
      %v2119 = vld [vmem:[#allocation2 + $0xfa] sm:$0xff]
      %v2120 = vld [vmem:[#allocation2 + $0x102] sm:$0xff]
      %v2121 = vld [vmem:[#allocation2 + $0x10a] sm:$0xff]
      %v2122 = vld [vmem:[#allocation2 + $0x112] sm:$0xff]
      %v2123 = vld [vmem:[#allocation2 + $0x11a] sm:$0xff]
      %v2124 = vld [vmem:[#allocation2 + $0x122] sm:$0xff]
      %v2125 = vld [vmem:[#allocation2 + $0x12a] sm:$0xff]
      %v2126 = vpack.c.bf16 %v2091, %v2090
      %v2127 = vpack.c.bf16 %v2093, %v2092
      %v2128 = vpack.c.bf16 %v2095, %v2094
      %v2129 = vpack.c.bf16 %v2097, %v2096
      %v2130 = vpack.c.bf16 %v2099, %v2098
      %v2131 = vpack.c.bf16 %v2101, %v2100
      %v2132 = vpack.c.bf16 %v2103, %v2102
      %v2133 = vpack.c.bf16 %v2105, %v2104
      %v2134 = vpack.c.bf16 %v2107, %v2106
      %v2135 = vpack.c.bf16 %v2109, %v2108
      %v2136 = vpack.c.bf16 %v2111, %v2110
      %v2137 = vpack.c.bf16 %v2113, %v2112
      %v2138 = vpack.c.bf16 %v2115, %v2114
      %v2139 = vpack.c.bf16 %v2117, %v2116
      %v2140 = vpack.c.bf16 %v2119, %v2118
      %v2141 = vpack.c.bf16 %v2121, %v2120
      %v2142 = vpack.c.bf16 %v2123, %v2122
      %v2143 = vpack.c.bf16 %v2125, %v2124
      %s2144 = scalar_lea.vmem %s5, 6
      %v2145 = vld [vmem:[%s2144] sm:$0x3]
      %v2147 = vsel %vm1139, %v2126, 0
      %v2150 = vsel %vm1139, %v2127, 0
      %v2153 = vsel %vm1139, %v2128, 0
      %v2156 = vsel %vm1139, %v2129, 0
      %v2159 = vsel %vm1139, %v2130, 0
      %v2162 = vsel %vm1139, %v2131, 0
      %v2165 = vsel %vm1139, %v2132, 0
      %v2168 = vsel %vm1139, %v2133, 0
      %v2171 = vsel %vm1139, %v2134, 0
      %v2174 = vsel %vm1139, %v2135, 0
      %v2177 = vsel %vm1139, %v2136, 0
      %v2180 = vsel %vm1139, %v2137, 0
      %v2183 = vsel %vm1139, %v2138, 0
      %v2186 = vsel %vm1139, %v2139, 0
      %v2189 = vsel %vm1139, %v2140, 0
      %v2192 = vsel %vm1139, %v2141, 0
      %v2195 = vsel %vm1139, %v2142, 0
      %v2198 = vsel %vm1139, %v2143, 0
      %v2201 = vsel %vm1349, %v2145, 0
      %2203 = vmatprep.subr.bf16.mxu0 0
      %2204 = vmatpush1.bf16.msra.mxu0 0
      %2205 = vmatprep.subr.bf16.mxu0 0
      %2206 = vmatpush1.bf16.msra.mxu0 0
      %2207 = vmatprep.subr.bf16.mxu0 0
      %2208 = vmatpush1.bf16.msra.mxu0 0
      %2209 = vmatprep.subr.bf16.mxu0 0
      %2210 = vmatpush1.bf16.msra.mxu0 0
      %2211 = vmatprep.subr.bf16.mxu0 0
      %2212 = vmatpush1.bf16.msra.mxu0 0
      %2213 = vmatprep.subr.bf16.mxu0 0
      %2214 = vmatpush1.bf16.msra.mxu0 0
      %2215 = vmatprep.subr.bf16.mxu0 0
      %2216 = vmatpush1.bf16.msra.mxu0 0
      %2217 = vmatprep.subr.bf16.mxu0 0
      %2218 = vmatpush1.bf16.msra.mxu0 %v2201
      %2219 = vmatprep.subr.bf16.mxu0 0
      %2220 = vmatpush2.bf16.msra.mxu0 0
      %2221 = vmatprep.subr.bf16.mxu0 0
      %2222 = vmatpush2.bf16.msra.mxu0 0
      %2223 = vmatprep.subr.bf16.mxu0 0
      %2224 = vmatpush2.bf16.msra.mxu0 0
      %2225 = vmatprep.subr.bf16.mxu0 0
      %2226 = vmatpush2.bf16.msra.mxu0 0
      %2227 = vmatprep.subr.bf16.mxu0 0
      %2228 = vmatpush2.bf16.msra.mxu0 0
      %2229 = vmatprep.subr.bf16.mxu0 0
      %2230 = vmatpush2.bf16.msra.mxu0 0
      %2231 = vmatprep.subr.bf16.mxu0 0
      %2232 = vmatpush2.bf16.msra.mxu0 0
      %2233 = vmatprep.subr.bf16.mxu0 0
      %2234 = vmatpush2.bf16.msra.mxu0 0
      %2235 = vmatprep.mubr.bf16.mxu0 0
      %2236 = vmatmul.mubr.bf16.gmra.mxu0 %v2147
      %v2237 = vpop.f32.mrf.mxu0
      %v2238 = vadd.f32 0.0, %v2237
      %v2239 = vpop.f32.mrf.mxu0
      %v2240 = vpop.f32.mrf.mxu0
      %v2241 = vadd.f32 0.0, %v2240
      %v2242 = vpop.f32.mrf.mxu0
      %2243 = vmatprep.mubr.bf16.mxu0 0
      %2244 = vmatmul.mubr.bf16.gmra.mxu0 %v2150
      %v2245 = vpop.f32.mrf.mxu0
      %v2246 = vadd.f32 0.0, %v2245
      %v2247 = vpop.f32.mrf.mxu0
      %v2248 = vpop.f32.mrf.mxu0
      %v2249 = vadd.f32 0.0, %v2248
      %v2250 = vpop.f32.mrf.mxu0
      %2251 = vmatprep.mubr.bf16.mxu0 0
      %2252 = vmatmul.mubr.bf16.gmra.mxu0 %v2153
      %v2253 = vpop.f32.mrf.mxu0
      %v2254 = vadd.f32 0.0, %v2253
      %v2255 = vpop.f32.mrf.mxu0
      %v2256 = vpop.f32.mrf.mxu0
      %v2257 = vadd.f32 0.0, %v2256
      %v2258 = vpop.f32.mrf.mxu0
      %2259 = vmatprep.mubr.bf16.mxu0 0
      %2260 = vmatmul.mubr.bf16.gmra.mxu0 %v2156
      %v2261 = vpop.f32.mrf.mxu0
      %v2262 = vadd.f32 0.0, %v2261
      %v2263 = vpop.f32.mrf.mxu0
      %v2264 = vpop.f32.mrf.mxu0
      %v2265 = vadd.f32 0.0, %v2264
      %v2266 = vpop.f32.mrf.mxu0
      %2267 = vmatprep.mubr.bf16.mxu0 0
      %2268 = vmatmul.mubr.bf16.gmra.mxu0 %v2159
      %v2269 = vpop.f32.mrf.mxu0
      %v2270 = vadd.f32 0.0, %v2269
      %v2271 = vpop.f32.mrf.mxu0
      %v2272 = vpop.f32.mrf.mxu0
      %v2273 = vadd.f32 0.0, %v2272
      %v2274 = vpop.f32.mrf.mxu0
      %2275 = vmatprep.mubr.bf16.mxu0 0
      %2276 = vmatmul.mubr.bf16.gmra.mxu0 %v2162
      %v2277 = vpop.f32.mrf.mxu0
      %v2278 = vadd.f32 0.0, %v2277
      %v2279 = vpop.f32.mrf.mxu0
      %v2280 = vpop.f32.mrf.mxu0
      %v2281 = vadd.f32 0.0, %v2280
      %v2282 = vpop.f32.mrf.mxu0
      %2283 = vmatprep.mubr.bf16.mxu0 0
      %2284 = vmatmul.mubr.bf16.gmra.mxu0 %v2165
      %v2285 = vpop.f32.mrf.mxu0
      %v2286 = vadd.f32 0.0, %v2285
      %v2287 = vpop.f32.mrf.mxu0
      %v2288 = vpop.f32.mrf.mxu0
      %v2289 = vadd.f32 0.0, %v2288
      %v2290 = vpop.f32.mrf.mxu0
      %2291 = vmatprep.mubr.bf16.mxu0 0
      %2292 = vmatmul.mubr.bf16.gmra.mxu0 %v2168
      %v2293 = vpop.f32.mrf.mxu0
      %v2294 = vadd.f32 0.0, %v2293
      %v2295 = vpop.f32.mrf.mxu0
      %v2296 = vpop.f32.mrf.mxu0
      %v2297 = vadd.f32 0.0, %v2296
      %v2298 = vpop.f32.mrf.mxu0
      %2299 = vmatprep.mubr.bf16.mxu0 0
      %2300 = vmatmul.mubr.bf16.gmra.mxu0 %v2171
      %v2301 = vpop.f32.mrf.mxu0
      %v2302 = vadd.f32 0.0, %v2301
      %v2303 = vpop.f32.mrf.mxu0
      %v2304 = vpop.f32.mrf.mxu0
      %v2305 = vadd.f32 0.0, %v2304
      %v2306 = vpop.f32.mrf.mxu0
      %2307 = vmatprep.mubr.bf16.mxu0 0
      %2308 = vmatmul.mubr.bf16.gmra.mxu0 %v2174
      %v2309 = vpop.f32.mrf.mxu0
      %v2310 = vadd.f32 0.0, %v2309
      %v2311 = vpop.f32.mrf.mxu0
      %v2312 = vpop.f32.mrf.mxu0
      %v2313 = vadd.f32 0.0, %v2312
      %v2314 = vpop.f32.mrf.mxu0
      %2315 = vmatprep.mubr.bf16.mxu0 0
      %2316 = vmatmul.mubr.bf16.gmra.mxu0 %v2177
      %v2317 = vpop.f32.mrf.mxu0
      %v2318 = vadd.f32 0.0, %v2317
      %v2319 = vpop.f32.mrf.mxu0
      %v2320 = vpop.f32.mrf.mxu0
      %v2321 = vadd.f32 0.0, %v2320
      %v2322 = vpop.f32.mrf.mxu0
      %2323 = vmatprep.mubr.bf16.mxu0 0
      %2324 = vmatmul.mubr.bf16.gmra.mxu0 %v2180
      %v2325 = vpop.f32.mrf.mxu0
      %v2326 = vadd.f32 0.0, %v2325
      %v2327 = vpop.f32.mrf.mxu0
      %v2328 = vpop.f32.mrf.mxu0
      %v2329 = vadd.f32 0.0, %v2328
      %v2330 = vpop.f32.mrf.mxu0
      %2331 = vmatprep.mubr.bf16.mxu0 0
      %2332 = vmatmul.mubr.bf16.gmra.mxu0 %v2183
      %v2333 = vpop.f32.mrf.mxu0
      %v2334 = vadd.f32 0.0, %v2333
      %v2335 = vpop.f32.mrf.mxu0
      %v2336 = vpop.f32.mrf.mxu0
      %v2337 = vadd.f32 0.0, %v2336
      %v2338 = vpop.f32.mrf.mxu0
      %2339 = vmatprep.mubr.bf16.mxu0 0
      %2340 = vmatmul.mubr.bf16.gmra.mxu0 %v2186
      %v2341 = vpop.f32.mrf.mxu0
      %v2342 = vadd.f32 0.0, %v2341
      %v2343 = vpop.f32.mrf.mxu0
      %v2344 = vpop.f32.mrf.mxu0
      %v2345 = vadd.f32 0.0, %v2344
      %v2346 = vpop.f32.mrf.mxu0
      %2347 = vmatprep.mubr.bf16.mxu0 0
      %2348 = vmatmul.mubr.bf16.gmra.mxu0 %v2189
      %v2349 = vpop.f32.mrf.mxu0
      %v2350 = vadd.f32 0.0, %v2349
      %v2351 = vpop.f32.mrf.mxu0
      %v2352 = vpop.f32.mrf.mxu0
      %v2353 = vadd.f32 0.0, %v2352
      %v2354 = vpop.f32.mrf.mxu0
      %2355 = vmatprep.mubr.bf16.mxu0 0
      %2356 = vmatmul.mubr.bf16.gmra.mxu0 %v2192
      %v2357 = vpop.f32.mrf.mxu0
      %v2358 = vadd.f32 0.0, %v2357
      %v2359 = vpop.f32.mrf.mxu0
      %v2360 = vpop.f32.mrf.mxu0
      %v2361 = vadd.f32 0.0, %v2360
      %v2362 = vpop.f32.mrf.mxu0
      %2363 = vmatprep.mubr.bf16.mxu0 0
      %2364 = vmatmul.mubr.bf16.gmra.mxu0 %v2195
      %v2365 = vpop.f32.mrf.mxu0
      %v2366 = vadd.f32 0.0, %v2365
      %v2367 = vpop.f32.mrf.mxu0
      %v2368 = vpop.f32.mrf.mxu0
      %v2369 = vadd.f32 0.0, %v2368
      %v2370 = vpop.f32.mrf.mxu0
      %2371 = vmatprep.mubr.bf16.mxu0 0
      %2372 = vmatmul.mubr.bf16.gmra.mxu0 %v2198
      %v2373 = vpop.f32.mrf.mxu0
      %v2374 = vadd.f32 0.0, %v2373
      %v2375 = vpop.f32.mrf.mxu0
      %v2376 = vpop.f32.mrf.mxu0
      %v2377 = vadd.f32 0.0, %v2376
      %v2378 = vpop.f32.mrf.mxu0
      %2379 = vdwg.mxu0
      %v2380 = vadd.f32 %v2054, %v2238
      %v2381 = vadd.f32 %v2055, %v2241
      %v2382 = vadd.f32 %v2056, %v2246
      %v2383 = vadd.f32 %v2057, %v2249
      %v2384 = vadd.f32 %v2058, %v2254
      %v2385 = vadd.f32 %v2059, %v2257
      %v2386 = vadd.f32 %v2060, %v2262
      %v2387 = vadd.f32 %v2061, %v2265
      %v2388 = vadd.f32 %v2062, %v2270
      %v2389 = vadd.f32 %v2063, %v2273
      %v2390 = vadd.f32 %v2064, %v2278
      %v2391 = vadd.f32 %v2065, %v2281
      %v2392 = vadd.f32 %v2066, %v2286
      %v2393 = vadd.f32 %v2067, %v2289
      %v2394 = vadd.f32 %v2068, %v2294
      %v2395 = vadd.f32 %v2069, %v2297
      %v2396 = vadd.f32 %v2070, %v2302
      %v2397 = vadd.f32 %v2071, %v2305
      %v2398 = vadd.f32 %v2072, %v2310
      %v2399 = vadd.f32 %v2073, %v2313
      %v2400 = vadd.f32 %v2074, %v2318
      %v2401 = vadd.f32 %v2075, %v2321
      %v2402 = vadd.f32 %v2076, %v2326
      %v2403 = vadd.f32 %v2077, %v2329
      %v2404 = vadd.f32 %v2078, %v2334
      %v2405 = vadd.f32 %v2079, %v2337
      %v2406 = vadd.f32 %v2080, %v2342
      %v2407 = vadd.f32 %v2081, %v2345
      %v2408 = vadd.f32 %v2082, %v2350
      %v2409 = vadd.f32 %v2083, %v2353
      %v2410 = vadd.f32 %v2084, %v2358
      %v2411 = vadd.f32 %v2085, %v2361
      %v2412 = vadd.f32 %v2086, %v2366
      %v2413 = vadd.f32 %v2087, %v2369
      %v2414 = vadd.f32 %v2088, %v2374
      %v2415 = vadd.f32 %v2089, %v2377
      %v2416 = vld [vmem:[#allocation2 + $0x13] sm:$0xff]
      %v2417 = vld [vmem:[#allocation2 + $0x1b] sm:$0xff]
      %v2418 = vld [vmem:[#allocation2 + $0x23] sm:$0xff]
      %v2419 = vld [vmem:[#allocation2 + $0x2b] sm:$0xff]
      %v2420 = vld [vmem:[#allocation2 + $0x33] sm:$0xff]
      %v2421 = vld [vmem:[#allocation2 + $0x3b] sm:$0xff]
      %v2422 = vld [vmem:[#allocation2 + $0x43] sm:$0xff]
      %v2423 = vld [vmem:[#allocation2 + $0x4b] sm:$0xff]
      %v2424 = vld [vmem:[#allocation2 + $0x53] sm:$0xff]
      %v2425 = vld [vmem:[#allocation2 + $0x5b] sm:$0xff]
      %v2426 = vld [vmem:[#allocation2 + $0x63] sm:$0xff]
      %v2427 = vld [vmem:[#allocation2 + $0x6b] sm:$0xff]
      %v2428 = vld [vmem:[#allocation2 + $0x73] sm:$0xff]
      %v2429 = vld [vmem:[#allocation2 + $0x7b] sm:$0xff]
      %v2430 = vld [vmem:[#allocation2 + $0x83] sm:$0xff]
      %v2431 = vld [vmem:[#allocation2 + $0x8b] sm:$0xff]
      %v2432 = vld [vmem:[#allocation2 + $0x93] sm:$0xff]
      %v2433 = vld [vmem:[#allocation2 + $0x9b] sm:$0xff]
      %v2434 = vld [vmem:[#allocation2 + $0xa3] sm:$0xff]
      %v2435 = vld [vmem:[#allocation2 + $0xab] sm:$0xff]
      %v2436 = vld [vmem:[#allocation2 + $0xb3] sm:$0xff]
      %v2437 = vld [vmem:[#allocation2 + $0xbb] sm:$0xff]
      %v2438 = vld [vmem:[#allocation2 + $0xc3] sm:$0xff]
      %v2439 = vld [vmem:[#allocation2 + $0xcb] sm:$0xff]
      %v2440 = vld [vmem:[#allocation2 + $0xd3] sm:$0xff]
      %v2441 = vld [vmem:[#allocation2 + $0xdb] sm:$0xff]
      %v2442 = vld [vmem:[#allocation2 + $0xe3] sm:$0xff]
      %v2443 = vld [vmem:[#allocation2 + $0xeb] sm:$0xff]
      %v2444 = vld [vmem:[#allocation2 + $0xf3] sm:$0xff]
      %v2445 = vld [vmem:[#allocation2 + $0xfb] sm:$0xff]
      %v2446 = vld [vmem:[#allocation2 + $0x103] sm:$0xff]
      %v2447 = vld [vmem:[#allocation2 + $0x10b] sm:$0xff]
      %v2448 = vld [vmem:[#allocation2 + $0x113] sm:$0xff]
      %v2449 = vld [vmem:[#allocation2 + $0x11b] sm:$0xff]
      %v2450 = vld [vmem:[#allocation2 + $0x123] sm:$0xff]
      %v2451 = vld [vmem:[#allocation2 + $0x12b] sm:$0xff]
      %v2452 = vpack.c.bf16 %v2417, %v2416
      %v2453 = vpack.c.bf16 %v2419, %v2418
      %v2454 = vpack.c.bf16 %v2421, %v2420
      %v2455 = vpack.c.bf16 %v2423, %v2422
      %v2456 = vpack.c.bf16 %v2425, %v2424
      %v2457 = vpack.c.bf16 %v2427, %v2426
      %v2458 = vpack.c.bf16 %v2429, %v2428
      %v2459 = vpack.c.bf16 %v2431, %v2430
      %v2460 = vpack.c.bf16 %v2433, %v2432
      %v2461 = vpack.c.bf16 %v2435, %v2434
      %v2462 = vpack.c.bf16 %v2437, %v2436
      %v2463 = vpack.c.bf16 %v2439, %v2438
      %v2464 = vpack.c.bf16 %v2441, %v2440
      %v2465 = vpack.c.bf16 %v2443, %v2442
      %v2466 = vpack.c.bf16 %v2445, %v2444
      %v2467 = vpack.c.bf16 %v2447, %v2446
      %v2468 = vpack.c.bf16 %v2449, %v2448
      %v2469 = vpack.c.bf16 %v2451, %v2450
      %s2470 = scalar_lea.vmem %s5, 8
      %v2471 = vld [vmem:[%s2470] sm:$0x3]
      %v2473 = vsel %vm1139, %v2452, 0
      %v2476 = vsel %vm1139, %v2453, 0
      %v2479 = vsel %vm1139, %v2454, 0
      %v2482 = vsel %vm1139, %v2455, 0
      %v2485 = vsel %vm1139, %v2456, 0
      %v2488 = vsel %vm1139, %v2457, 0
      %v2491 = vsel %vm1139, %v2458, 0
      %v2494 = vsel %vm1139, %v2459, 0
      %v2497 = vsel %vm1139, %v2460, 0
      %v2500 = vsel %vm1139, %v2461, 0
      %v2503 = vsel %vm1139, %v2462, 0
      %v2506 = vsel %vm1139, %v2463, 0
      %v2509 = vsel %vm1139, %v2464, 0
      %v2512 = vsel %vm1139, %v2465, 0
      %v2515 = vsel %vm1139, %v2466, 0
      %v2518 = vsel %vm1139, %v2467, 0
      %v2521 = vsel %vm1139, %v2468, 0
      %v2524 = vsel %vm1139, %v2469, 0
      %v2527 = vsel %vm1349, %v2471, 0
      %2529 = vmatprep.subr.bf16.mxu0 0
      %2530 = vmatpush1.bf16.msra.mxu0 0
      %2531 = vmatprep.subr.bf16.mxu0 0
      %2532 = vmatpush1.bf16.msra.mxu0 0
      %2533 = vmatprep.subr.bf16.mxu0 0
      %2534 = vmatpush1.bf16.msra.mxu0 0
      %2535 = vmatprep.subr.bf16.mxu0 0
      %2536 = vmatpush1.bf16.msra.mxu0 0
      %2537 = vmatprep.subr.bf16.mxu0 0
      %2538 = vmatpush1.bf16.msra.mxu0 0
      %2539 = vmatprep.subr.bf16.mxu0 0
      %2540 = vmatpush1.bf16.msra.mxu0 0
      %2541 = vmatprep.subr.bf16.mxu0 0
      %2542 = vmatpush1.bf16.msra.mxu0 0
      %2543 = vmatprep.subr.bf16.mxu0 0
      %2544 = vmatpush1.bf16.msra.mxu0 %v2527
      %2545 = vmatprep.subr.bf16.mxu0 0
      %2546 = vmatpush2.bf16.msra.mxu0 0
      %2547 = vmatprep.subr.bf16.mxu0 0
      %2548 = vmatpush2.bf16.msra.mxu0 0
      %2549 = vmatprep.subr.bf16.mxu0 0
      %2550 = vmatpush2.bf16.msra.mxu0 0
      %2551 = vmatprep.subr.bf16.mxu0 0
      %2552 = vmatpush2.bf16.msra.mxu0 0
      %2553 = vmatprep.subr.bf16.mxu0 0
      %2554 = vmatpush2.bf16.msra.mxu0 0
      %2555 = vmatprep.subr.bf16.mxu0 0
      %2556 = vmatpush2.bf16.msra.mxu0 0
      %2557 = vmatprep.subr.bf16.mxu0 0
      %2558 = vmatpush2.bf16.msra.mxu0 0
      %2559 = vmatprep.subr.bf16.mxu0 0
      %2560 = vmatpush2.bf16.msra.mxu0 0
      %2561 = vmatprep.mubr.bf16.mxu0 0
      %2562 = vmatmul.mubr.bf16.gmra.mxu0 %v2473
      %v2563 = vpop.f32.mrf.mxu0
      %v2564 = vadd.f32 0.0, %v2563
      %v2565 = vpop.f32.mrf.mxu0
      %v2566 = vpop.f32.mrf.mxu0
      %v2567 = vadd.f32 0.0, %v2566
      %v2568 = vpop.f32.mrf.mxu0
      %2569 = vmatprep.mubr.bf16.mxu0 0
      %2570 = vmatmul.mubr.bf16.gmra.mxu0 %v2476
      %v2571 = vpop.f32.mrf.mxu0
      %v2572 = vadd.f32 0.0, %v2571
      %v2573 = vpop.f32.mrf.mxu0
      %v2574 = vpop.f32.mrf.mxu0
      %v2575 = vadd.f32 0.0, %v2574
      %v2576 = vpop.f32.mrf.mxu0
      %2577 = vmatprep.mubr.bf16.mxu0 0
      %2578 = vmatmul.mubr.bf16.gmra.mxu0 %v2479
      %v2579 = vpop.f32.mrf.mxu0
      %v2580 = vadd.f32 0.0, %v2579
      %v2581 = vpop.f32.mrf.mxu0
      %v2582 = vpop.f32.mrf.mxu0
      %v2583 = vadd.f32 0.0, %v2582
      %v2584 = vpop.f32.mrf.mxu0
      %2585 = vmatprep.mubr.bf16.mxu0 0
      %2586 = vmatmul.mubr.bf16.gmra.mxu0 %v2482
      %v2587 = vpop.f32.mrf.mxu0
      %v2588 = vadd.f32 0.0, %v2587
      %v2589 = vpop.f32.mrf.mxu0
      %v2590 = vpop.f32.mrf.mxu0
      %v2591 = vadd.f32 0.0, %v2590
      %v2592 = vpop.f32.mrf.mxu0
      %2593 = vmatprep.mubr.bf16.mxu0 0
      %2594 = vmatmul.mubr.bf16.gmra.mxu0 %v2485
      %v2595 = vpop.f32.mrf.mxu0
      %v2596 = vadd.f32 0.0, %v2595
      %v2597 = vpop.f32.mrf.mxu0
      %v2598 = vpop.f32.mrf.mxu0
      %v2599 = vadd.f32 0.0, %v2598
      %v2600 = vpop.f32.mrf.mxu0
      %2601 = vmatprep.mubr.bf16.mxu0 0
      %2602 = vmatmul.mubr.bf16.gmra.mxu0 %v2488
      %v2603 = vpop.f32.mrf.mxu0
      %v2604 = vadd.f32 0.0, %v2603
      %v2605 = vpop.f32.mrf.mxu0
      %v2606 = vpop.f32.mrf.mxu0
      %v2607 = vadd.f32 0.0, %v2606
      %v2608 = vpop.f32.mrf.mxu0
      %2609 = vmatprep.mubr.bf16.mxu0 0
      %2610 = vmatmul.mubr.bf16.gmra.mxu0 %v2491
      %v2611 = vpop.f32.mrf.mxu0
      %v2612 = vadd.f32 0.0, %v2611
      %v2613 = vpop.f32.mrf.mxu0
      %v2614 = vpop.f32.mrf.mxu0
      %v2615 = vadd.f32 0.0, %v2614
      %v2616 = vpop.f32.mrf.mxu0
      %2617 = vmatprep.mubr.bf16.mxu0 0
      %2618 = vmatmul.mubr.bf16.gmra.mxu0 %v2494
      %v2619 = vpop.f32.mrf.mxu0
      %v2620 = vadd.f32 0.0, %v2619
      %v2621 = vpop.f32.mrf.mxu0
      %v2622 = vpop.f32.mrf.mxu0
      %v2623 = vadd.f32 0.0, %v2622
      %v2624 = vpop.f32.mrf.mxu0
      %2625 = vmatprep.mubr.bf16.mxu0 0
      %2626 = vmatmul.mubr.bf16.gmra.mxu0 %v2497
      %v2627 = vpop.f32.mrf.mxu0
      %v2628 = vadd.f32 0.0, %v2627
      %v2629 = vpop.f32.mrf.mxu0
      %v2630 = vpop.f32.mrf.mxu0
      %v2631 = vadd.f32 0.0, %v2630
      %v2632 = vpop.f32.mrf.mxu0
      %2633 = vmatprep.mubr.bf16.mxu0 0
      %2634 = vmatmul.mubr.bf16.gmra.mxu0 %v2500
      %v2635 = vpop.f32.mrf.mxu0
      %v2636 = vadd.f32 0.0, %v2635
      %v2637 = vpop.f32.mrf.mxu0
      %v2638 = vpop.f32.mrf.mxu0
      %v2639 = vadd.f32 0.0, %v2638
      %v2640 = vpop.f32.mrf.mxu0
      %2641 = vmatprep.mubr.bf16.mxu0 0
      %2642 = vmatmul.mubr.bf16.gmra.mxu0 %v2503
      %v2643 = vpop.f32.mrf.mxu0
      %v2644 = vadd.f32 0.0, %v2643
      %v2645 = vpop.f32.mrf.mxu0
      %v2646 = vpop.f32.mrf.mxu0
      %v2647 = vadd.f32 0.0, %v2646
      %v2648 = vpop.f32.mrf.mxu0
      %2649 = vmatprep.mubr.bf16.mxu0 0
      %2650 = vmatmul.mubr.bf16.gmra.mxu0 %v2506
      %v2651 = vpop.f32.mrf.mxu0
      %v2652 = vadd.f32 0.0, %v2651
      %v2653 = vpop.f32.mrf.mxu0
      %v2654 = vpop.f32.mrf.mxu0
      %v2655 = vadd.f32 0.0, %v2654
      %v2656 = vpop.f32.mrf.mxu0
      %2657 = vmatprep.mubr.bf16.mxu0 0
      %2658 = vmatmul.mubr.bf16.gmra.mxu0 %v2509
      %v2659 = vpop.f32.mrf.mxu0
      %v2660 = vadd.f32 0.0, %v2659
      %v2661 = vpop.f32.mrf.mxu0
      %v2662 = vpop.f32.mrf.mxu0
      %v2663 = vadd.f32 0.0, %v2662
      %v2664 = vpop.f32.mrf.mxu0
      %2665 = vmatprep.mubr.bf16.mxu0 0
      %2666 = vmatmul.mubr.bf16.gmra.mxu0 %v2512
      %v2667 = vpop.f32.mrf.mxu0
      %v2668 = vadd.f32 0.0, %v2667
      %v2669 = vpop.f32.mrf.mxu0
      %v2670 = vpop.f32.mrf.mxu0
      %v2671 = vadd.f32 0.0, %v2670
      %v2672 = vpop.f32.mrf.mxu0
      %2673 = vmatprep.mubr.bf16.mxu0 0
      %2674 = vmatmul.mubr.bf16.gmra.mxu0 %v2515
      %v2675 = vpop.f32.mrf.mxu0
      %v2676 = vadd.f32 0.0, %v2675
      %v2677 = vpop.f32.mrf.mxu0
      %v2678 = vpop.f32.mrf.mxu0
      %v2679 = vadd.f32 0.0, %v2678
      %v2680 = vpop.f32.mrf.mxu0
      %2681 = vmatprep.mubr.bf16.mxu0 0
      %2682 = vmatmul.mubr.bf16.gmra.mxu0 %v2518
      %v2683 = vpop.f32.mrf.mxu0
      %v2684 = vadd.f32 0.0, %v2683
      %v2685 = vpop.f32.mrf.mxu0
      %v2686 = vpop.f32.mrf.mxu0
      %v2687 = vadd.f32 0.0, %v2686
      %v2688 = vpop.f32.mrf.mxu0
      %2689 = vmatprep.mubr.bf16.mxu0 0
      %2690 = vmatmul.mubr.bf16.gmra.mxu0 %v2521
      %v2691 = vpop.f32.mrf.mxu0
      %v2692 = vadd.f32 0.0, %v2691
      %v2693 = vpop.f32.mrf.mxu0
      %v2694 = vpop.f32.mrf.mxu0
      %v2695 = vadd.f32 0.0, %v2694
      %v2696 = vpop.f32.mrf.mxu0
      %2697 = vmatprep.mubr.bf16.mxu0 0
      %2698 = vmatmul.mubr.bf16.gmra.mxu0 %v2524
      %v2699 = vpop.f32.mrf.mxu0
      %v2700 = vadd.f32 0.0, %v2699
      %v2701 = vpop.f32.mrf.mxu0
      %v2702 = vpop.f32.mrf.mxu0
      %v2703 = vadd.f32 0.0, %v2702
      %v2704 = vpop.f32.mrf.mxu0
      %2705 = vdwg.mxu0
      %v2706 = vadd.f32 %v2380, %v2564
      %v2707 = vadd.f32 %v2381, %v2567
      %v2708 = vadd.f32 %v2382, %v2572
      %v2709 = vadd.f32 %v2383, %v2575
      %v2710 = vadd.f32 %v2384, %v2580
      %v2711 = vadd.f32 %v2385, %v2583
      %v2712 = vadd.f32 %v2386, %v2588
      %v2713 = vadd.f32 %v2387, %v2591
      %v2714 = vadd.f32 %v2388, %v2596
      %v2715 = vadd.f32 %v2389, %v2599
      %v2716 = vadd.f32 %v2390, %v2604
      %v2717 = vadd.f32 %v2391, %v2607
      %v2718 = vadd.f32 %v2392, %v2612
      %v2719 = vadd.f32 %v2393, %v2615
      %v2720 = vadd.f32 %v2394, %v2620
      %v2721 = vadd.f32 %v2395, %v2623
      %v2722 = vadd.f32 %v2396, %v2628
      %v2723 = vadd.f32 %v2397, %v2631
      %v2724 = vadd.f32 %v2398, %v2636
      %v2725 = vadd.f32 %v2399, %v2639
      %v2726 = vadd.f32 %v2400, %v2644
      %v2727 = vadd.f32 %v2401, %v2647
      %v2728 = vadd.f32 %v2402, %v2652
      %v2729 = vadd.f32 %v2403, %v2655
      %v2730 = vadd.f32 %v2404, %v2660
      %v2731 = vadd.f32 %v2405, %v2663
      %v2732 = vadd.f32 %v2406, %v2668
      %v2733 = vadd.f32 %v2407, %v2671
      %v2734 = vadd.f32 %v2408, %v2676
      %v2735 = vadd.f32 %v2409, %v2679
      %v2736 = vadd.f32 %v2410, %v2684
      %v2737 = vadd.f32 %v2411, %v2687
      %v2738 = vadd.f32 %v2412, %v2692
      %v2739 = vadd.f32 %v2413, %v2695
      %v2740 = vadd.f32 %v2414, %v2700
      %v2741 = vadd.f32 %v2415, %v2703
      %v2742 = vld [vmem:[#allocation2 + $0x14] sm:$0xff]
      %v2743 = vld [vmem:[#allocation2 + $0x1c] sm:$0xff]
      %v2744 = vld [vmem:[#allocation2 + $0x24] sm:$0xff]
      %v2745 = vld [vmem:[#allocation2 + $0x2c] sm:$0xff]
      %v2746 = vld [vmem:[#allocation2 + $0x34] sm:$0xff]
      %v2747 = vld [vmem:[#allocation2 + $0x3c] sm:$0xff]
      %v2748 = vld [vmem:[#allocation2 + $0x44] sm:$0xff]
      %v2749 = vld [vmem:[#allocation2 + $0x4c] sm:$0xff]
      %v2750 = vld [vmem:[#allocation2 + $0x54] sm:$0xff]
      %v2751 = vld [vmem:[#allocation2 + $0x5c] sm:$0xff]
      %v2752 = vld [vmem:[#allocation2 + $0x64] sm:$0xff]
      %v2753 = vld [vmem:[#allocation2 + $0x6c] sm:$0xff]
      %v2754 = vld [vmem:[#allocation2 + $0x74] sm:$0xff]
      %v2755 = vld [vmem:[#allocation2 + $0x7c] sm:$0xff]
      %v2756 = vld [vmem:[#allocation2 + $0x84] sm:$0xff]
      %v2757 = vld [vmem:[#allocation2 + $0x8c] sm:$0xff]
      %v2758 = vld [vmem:[#allocation2 + $0x94] sm:$0xff]
      %v2759 = vld [vmem:[#allocation2 + $0x9c] sm:$0xff]
      %v2760 = vld [vmem:[#allocation2 + $0xa4] sm:$0xff]
      %v2761 = vld [vmem:[#allocation2 + $0xac] sm:$0xff]
      %v2762 = vld [vmem:[#allocation2 + $0xb4] sm:$0xff]
      %v2763 = vld [vmem:[#allocation2 + $0xbc] sm:$0xff]
      %v2764 = vld [vmem:[#allocation2 + $0xc4] sm:$0xff]
      %v2765 = vld [vmem:[#allocation2 + $0xcc] sm:$0xff]
      %v2766 = vld [vmem:[#allocation2 + $0xd4] sm:$0xff]
      %v2767 = vld [vmem:[#allocation2 + $0xdc] sm:$0xff]
      %v2768 = vld [vmem:[#allocation2 + $0xe4] sm:$0xff]
      %v2769 = vld [vmem:[#allocation2 + $0xec] sm:$0xff]
      %v2770 = vld [vmem:[#allocation2 + $0xf4] sm:$0xff]
      %v2771 = vld [vmem:[#allocation2 + $0xfc] sm:$0xff]
      %v2772 = vld [vmem:[#allocation2 + $0x104] sm:$0xff]
      %v2773 = vld [vmem:[#allocation2 + $0x10c] sm:$0xff]
      %v2774 = vld [vmem:[#allocation2 + $0x114] sm:$0xff]
      %v2775 = vld [vmem:[#allocation2 + $0x11c] sm:$0xff]
      %v2776 = vld [vmem:[#allocation2 + $0x124] sm:$0xff]
      %v2777 = vld [vmem:[#allocation2 + $0x12c] sm:$0xff]
      %v2778 = vpack.c.bf16 %v2743, %v2742
      %v2779 = vpack.c.bf16 %v2745, %v2744
      %v2780 = vpack.c.bf16 %v2747, %v2746
      %v2781 = vpack.c.bf16 %v2749, %v2748
      %v2782 = vpack.c.bf16 %v2751, %v2750
      %v2783 = vpack.c.bf16 %v2753, %v2752
      %v2784 = vpack.c.bf16 %v2755, %v2754
      %v2785 = vpack.c.bf16 %v2757, %v2756
      %v2786 = vpack.c.bf16 %v2759, %v2758
      %v2787 = vpack.c.bf16 %v2761, %v2760
      %v2788 = vpack.c.bf16 %v2763, %v2762
      %v2789 = vpack.c.bf16 %v2765, %v2764
      %v2790 = vpack.c.bf16 %v2767, %v2766
      %v2791 = vpack.c.bf16 %v2769, %v2768
      %v2792 = vpack.c.bf16 %v2771, %v2770
      %v2793 = vpack.c.bf16 %v2773, %v2772
      %v2794 = vpack.c.bf16 %v2775, %v2774
      %v2795 = vpack.c.bf16 %v2777, %v2776
      %s2796 = scalar_lea.vmem %s5, 10
      %v2797 = vld [vmem:[%s2796] sm:$0x3]
      %v2799 = vsel %vm1139, %v2778, 0
      %v2802 = vsel %vm1139, %v2779, 0
      %v2805 = vsel %vm1139, %v2780, 0
      %v2808 = vsel %vm1139, %v2781, 0
      %v2811 = vsel %vm1139, %v2782, 0
      %v2814 = vsel %vm1139, %v2783, 0
      %v2817 = vsel %vm1139, %v2784, 0
      %v2820 = vsel %vm1139, %v2785, 0
      %v2823 = vsel %vm1139, %v2786, 0
      %v2826 = vsel %vm1139, %v2787, 0
      %v2829 = vsel %vm1139, %v2788, 0
      %v2832 = vsel %vm1139, %v2789, 0
      %v2835 = vsel %vm1139, %v2790, 0
      %v2838 = vsel %vm1139, %v2791, 0
      %v2841 = vsel %vm1139, %v2792, 0
      %v2844 = vsel %vm1139, %v2793, 0
      %v2847 = vsel %vm1139, %v2794, 0
      %v2850 = vsel %vm1139, %v2795, 0
      %v2853 = vsel %vm1349, %v2797, 0
      %2855 = vmatprep.subr.bf16.mxu0 0
      %2856 = vmatpush1.bf16.msra.mxu0 0
      %2857 = vmatprep.subr.bf16.mxu0 0
      %2858 = vmatpush1.bf16.msra.mxu0 0
      %2859 = vmatprep.subr.bf16.mxu0 0
      %2860 = vmatpush1.bf16.msra.mxu0 0
      %2861 = vmatprep.subr.bf16.mxu0 0
      %2862 = vmatpush1.bf16.msra.mxu0 0
      %2863 = vmatprep.subr.bf16.mxu0 0
      %2864 = vmatpush1.bf16.msra.mxu0 0
      %2865 = vmatprep.subr.bf16.mxu0 0
      %2866 = vmatpush1.bf16.msra.mxu0 0
      %2867 = vmatprep.subr.bf16.mxu0 0
      %2868 = vmatpush1.bf16.msra.mxu0 0
      %2869 = vmatprep.subr.bf16.mxu0 0
      %2870 = vmatpush1.bf16.msra.mxu0 %v2853
      %2871 = vmatprep.subr.bf16.mxu0 0
      %2872 = vmatpush2.bf16.msra.mxu0 0
      %2873 = vmatprep.subr.bf16.mxu0 0
      %2874 = vmatpush2.bf16.msra.mxu0 0
      %2875 = vmatprep.subr.bf16.mxu0 0
      %2876 = vmatpush2.bf16.msra.mxu0 0
      %2877 = vmatprep.subr.bf16.mxu0 0
      %2878 = vmatpush2.bf16.msra.mxu0 0
      %2879 = vmatprep.subr.bf16.mxu0 0
      %2880 = vmatpush2.bf16.msra.mxu0 0
      %2881 = vmatprep.subr.bf16.mxu0 0
      %2882 = vmatpush2.bf16.msra.mxu0 0
      %2883 = vmatprep.subr.bf16.mxu0 0
      %2884 = vmatpush2.bf16.msra.mxu0 0
      %2885 = vmatprep.subr.bf16.mxu0 0
      %2886 = vmatpush2.bf16.msra.mxu0 0
      %2887 = vmatprep.mubr.bf16.mxu0 0
      %2888 = vmatmul.mubr.bf16.gmra.mxu0 %v2799
      %v2889 = vpop.f32.mrf.mxu0
      %v2890 = vadd.f32 0.0, %v2889
      %v2891 = vpop.f32.mrf.mxu0
      %v2892 = vpop.f32.mrf.mxu0
      %v2893 = vadd.f32 0.0, %v2892
      %v2894 = vpop.f32.mrf.mxu0
      %2895 = vmatprep.mubr.bf16.mxu0 0
      %2896 = vmatmul.mubr.bf16.gmra.mxu0 %v2802
      %v2897 = vpop.f32.mrf.mxu0
      %v2898 = vadd.f32 0.0, %v2897
      %v2899 = vpop.f32.mrf.mxu0
      %v2900 = vpop.f32.mrf.mxu0
      %v2901 = vadd.f32 0.0, %v2900
      %v2902 = vpop.f32.mrf.mxu0
      %2903 = vmatprep.mubr.bf16.mxu0 0
      %2904 = vmatmul.mubr.bf16.gmra.mxu0 %v2805
      %v2905 = vpop.f32.mrf.mxu0
      %v2906 = vadd.f32 0.0, %v2905
      %v2907 = vpop.f32.mrf.mxu0
      %v2908 = vpop.f32.mrf.mxu0
      %v2909 = vadd.f32 0.0, %v2908
      %v2910 = vpop.f32.mrf.mxu0
      %2911 = vmatprep.mubr.bf16.mxu0 0
      %2912 = vmatmul.mubr.bf16.gmra.mxu0 %v2808
      %v2913 = vpop.f32.mrf.mxu0
      %v2914 = vadd.f32 0.0, %v2913
      %v2915 = vpop.f32.mrf.mxu0
      %v2916 = vpop.f32.mrf.mxu0
      %v2917 = vadd.f32 0.0, %v2916
      %v2918 = vpop.f32.mrf.mxu0
      %2919 = vmatprep.mubr.bf16.mxu0 0
      %2920 = vmatmul.mubr.bf16.gmra.mxu0 %v2811
      %v2921 = vpop.f32.mrf.mxu0
      %v2922 = vadd.f32 0.0, %v2921
      %v2923 = vpop.f32.mrf.mxu0
      %v2924 = vpop.f32.mrf.mxu0
      %v2925 = vadd.f32 0.0, %v2924
      %v2926 = vpop.f32.mrf.mxu0
      %2927 = vmatprep.mubr.bf16.mxu0 0
      %2928 = vmatmul.mubr.bf16.gmra.mxu0 %v2814
      %v2929 = vpop.f32.mrf.mxu0
      %v2930 = vadd.f32 0.0, %v2929
      %v2931 = vpop.f32.mrf.mxu0
      %v2932 = vpop.f32.mrf.mxu0
      %v2933 = vadd.f32 0.0, %v2932
      %v2934 = vpop.f32.mrf.mxu0
      %2935 = vmatprep.mubr.bf16.mxu0 0
      %2936 = vmatmul.mubr.bf16.gmra.mxu0 %v2817
      %v2937 = vpop.f32.mrf.mxu0
      %v2938 = vadd.f32 0.0, %v2937
      %v2939 = vpop.f32.mrf.mxu0
      %v2940 = vpop.f32.mrf.mxu0
      %v2941 = vadd.f32 0.0, %v2940
      %v2942 = vpop.f32.mrf.mxu0
      %2943 = vmatprep.mubr.bf16.mxu0 0
      %2944 = vmatmul.mubr.bf16.gmra.mxu0 %v2820
      %v2945 = vpop.f32.mrf.mxu0
      %v2946 = vadd.f32 0.0, %v2945
      %v2947 = vpop.f32.mrf.mxu0
      %v2948 = vpop.f32.mrf.mxu0
      %v2949 = vadd.f32 0.0, %v2948
      %v2950 = vpop.f32.mrf.mxu0
      %2951 = vmatprep.mubr.bf16.mxu0 0
      %2952 = vmatmul.mubr.bf16.gmra.mxu0 %v2823
      %v2953 = vpop.f32.mrf.mxu0
      %v2954 = vadd.f32 0.0, %v2953
      %v2955 = vpop.f32.mrf.mxu0
      %v2956 = vpop.f32.mrf.mxu0
      %v2957 = vadd.f32 0.0, %v2956
      %v2958 = vpop.f32.mrf.mxu0
      %2959 = vmatprep.mubr.bf16.mxu0 0
      %2960 = vmatmul.mubr.bf16.gmra.mxu0 %v2826
      %v2961 = vpop.f32.mrf.mxu0
      %v2962 = vadd.f32 0.0, %v2961
      %v2963 = vpop.f32.mrf.mxu0
      %v2964 = vpop.f32.mrf.mxu0
      %v2965 = vadd.f32 0.0, %v2964
      %v2966 = vpop.f32.mrf.mxu0
      %2967 = vmatprep.mubr.bf16.mxu0 0
      %2968 = vmatmul.mubr.bf16.gmra.mxu0 %v2829
      %v2969 = vpop.f32.mrf.mxu0
      %v2970 = vadd.f32 0.0, %v2969
      %v2971 = vpop.f32.mrf.mxu0
      %v2972 = vpop.f32.mrf.mxu0
      %v2973 = vadd.f32 0.0, %v2972
      %v2974 = vpop.f32.mrf.mxu0
      %2975 = vmatprep.mubr.bf16.mxu0 0
      %2976 = vmatmul.mubr.bf16.gmra.mxu0 %v2832
      %v2977 = vpop.f32.mrf.mxu0
      %v2978 = vadd.f32 0.0, %v2977
      %v2979 = vpop.f32.mrf.mxu0
      %v2980 = vpop.f32.mrf.mxu0
      %v2981 = vadd.f32 0.0, %v2980
      %v2982 = vpop.f32.mrf.mxu0
      %2983 = vmatprep.mubr.bf16.mxu0 0
      %2984 = vmatmul.mubr.bf16.gmra.mxu0 %v2835
      %v2985 = vpop.f32.mrf.mxu0
      %v2986 = vadd.f32 0.0, %v2985
      %v2987 = vpop.f32.mrf.mxu0
      %v2988 = vpop.f32.mrf.mxu0
      %v2989 = vadd.f32 0.0, %v2988
      %v2990 = vpop.f32.mrf.mxu0
      %2991 = vmatprep.mubr.bf16.mxu0 0
      %2992 = vmatmul.mubr.bf16.gmra.mxu0 %v2838
      %v2993 = vpop.f32.mrf.mxu0
      %v2994 = vadd.f32 0.0, %v2993
      %v2995 = vpop.f32.mrf.mxu0
      %v2996 = vpop.f32.mrf.mxu0
      %v2997 = vadd.f32 0.0, %v2996
      %v2998 = vpop.f32.mrf.mxu0
      %2999 = vmatprep.mubr.bf16.mxu0 0
      %3000 = vmatmul.mubr.bf16.gmra.mxu0 %v2841
      %v3001 = vpop.f32.mrf.mxu0
      %v3002 = vadd.f32 0.0, %v3001
      %v3003 = vpop.f32.mrf.mxu0
      %v3004 = vpop.f32.mrf.mxu0
      %v3005 = vadd.f32 0.0, %v3004
      %v3006 = vpop.f32.mrf.mxu0
      %3007 = vmatprep.mubr.bf16.mxu0 0
      %3008 = vmatmul.mubr.bf16.gmra.mxu0 %v2844
      %v3009 = vpop.f32.mrf.mxu0
      %v3010 = vadd.f32 0.0, %v3009
      %v3011 = vpop.f32.mrf.mxu0
      %v3012 = vpop.f32.mrf.mxu0
      %v3013 = vadd.f32 0.0, %v3012
      %v3014 = vpop.f32.mrf.mxu0
      %3015 = vmatprep.mubr.bf16.mxu0 0
      %3016 = vmatmul.mubr.bf16.gmra.mxu0 %v2847
      %v3017 = vpop.f32.mrf.mxu0
      %v3018 = vadd.f32 0.0, %v3017
      %v3019 = vpop.f32.mrf.mxu0
      %v3020 = vpop.f32.mrf.mxu0
      %v3021 = vadd.f32 0.0, %v3020
      %v3022 = vpop.f32.mrf.mxu0
      %3023 = vmatprep.mubr.bf16.mxu0 0
      %3024 = vmatmul.mubr.bf16.gmra.mxu0 %v2850
      %v3025 = vpop.f32.mrf.mxu0
      %v3026 = vadd.f32 0.0, %v3025
      %v3027 = vpop.f32.mrf.mxu0
      %v3028 = vpop.f32.mrf.mxu0
      %v3029 = vadd.f32 0.0, %v3028
      %v3030 = vpop.f32.mrf.mxu0
      %3031 = vdwg.mxu0
      %v3032 = vadd.f32 %v2706, %v2890
      %v3033 = vadd.f32 %v2707, %v2893
      %v3034 = vadd.f32 %v2708, %v2898
      %v3035 = vadd.f32 %v2709, %v2901
      %v3036 = vadd.f32 %v2710, %v2906
      %v3037 = vadd.f32 %v2711, %v2909
      %v3038 = vadd.f32 %v2712, %v2914
      %v3039 = vadd.f32 %v2713, %v2917
      %v3040 = vadd.f32 %v2714, %v2922
      %v3041 = vadd.f32 %v2715, %v2925
      %v3042 = vadd.f32 %v2716, %v2930
      %v3043 = vadd.f32 %v2717, %v2933
      %v3044 = vadd.f32 %v2718, %v2938
      %v3045 = vadd.f32 %v2719, %v2941
      %v3046 = vadd.f32 %v2720, %v2946
      %v3047 = vadd.f32 %v2721, %v2949
      %v3048 = vadd.f32 %v2722, %v2954
      %v3049 = vadd.f32 %v2723, %v2957
      %v3050 = vadd.f32 %v2724, %v2962
      %v3051 = vadd.f32 %v2725, %v2965
      %v3052 = vadd.f32 %v2726, %v2970
      %v3053 = vadd.f32 %v2727, %v2973
      %v3054 = vadd.f32 %v2728, %v2978
      %v3055 = vadd.f32 %v2729, %v2981
      %v3056 = vadd.f32 %v2730, %v2986
      %v3057 = vadd.f32 %v2731, %v2989
      %v3058 = vadd.f32 %v2732, %v2994
      %v3059 = vadd.f32 %v2733, %v2997
      %v3060 = vadd.f32 %v2734, %v3002
      %v3061 = vadd.f32 %v2735, %v3005
      %v3062 = vadd.f32 %v2736, %v3010
      %v3063 = vadd.f32 %v2737, %v3013
      %v3064 = vadd.f32 %v2738, %v3018
      %v3065 = vadd.f32 %v2739, %v3021
      %v3066 = vadd.f32 %v2740, %v3026
      %v3067 = vadd.f32 %v2741, %v3029
      %v3068 = vld [vmem:[#allocation2 + $0x24] sm:$0xff]
      %v3069 = vld [vmem:[#allocation2 + $0x2c] sm:$0xff]
      %v3070 = vld [vmem:[#allocation2 + $0x34] sm:$0xff]
      %v3071 = vld [vmem:[#allocation2 + $0x3c] sm:$0xff]
      %v3072 = vld [vmem:[#allocation2 + $0x44] sm:$0xff]
      %v3073 = vld [vmem:[#allocation2 + $0x4c] sm:$0xff]
      %v3074 = vld [vmem:[#allocation2 + $0x54] sm:$0xff]
      %v3075 = vld [vmem:[#allocation2 + $0x5c] sm:$0xff]
      %v3076 = vld [vmem:[#allocation2 + $0x64] sm:$0xff]
      %v3077 = vld [vmem:[#allocation2 + $0x6c] sm:$0xff]
      %v3078 = vld [vmem:[#allocation2 + $0x74] sm:$0xff]
      %v3079 = vld [vmem:[#allocation2 + $0x7c] sm:$0xff]
      %v3080 = vld [vmem:[#allocation2 + $0x84] sm:$0xff]
      %v3081 = vld [vmem:[#allocation2 + $0x8c] sm:$0xff]
      %v3082 = vld [vmem:[#allocation2 + $0x94] sm:$0xff]
      %v3083 = vld [vmem:[#allocation2 + $0x9c] sm:$0xff]
      %v3084 = vld [vmem:[#allocation2 + $0xa4] sm:$0xff]
      %v3085 = vld [vmem:[#allocation2 + $0xac] sm:$0xff]
      %v3086 = vld [vmem:[#allocation2 + $0xb4] sm:$0xff]
      %v3087 = vld [vmem:[#allocation2 + $0xbc] sm:$0xff]
      %v3088 = vld [vmem:[#allocation2 + $0xc4] sm:$0xff]
      %v3089 = vld [vmem:[#allocation2 + $0xcc] sm:$0xff]
      %v3090 = vld [vmem:[#allocation2 + $0xd4] sm:$0xff]
      %v3091 = vld [vmem:[#allocation2 + $0xdc] sm:$0xff]
      %v3092 = vld [vmem:[#allocation2 + $0xe4] sm:$0xff]
      %v3093 = vld [vmem:[#allocation2 + $0xec] sm:$0xff]
      %v3094 = vld [vmem:[#allocation2 + $0xf4] sm:$0xff]
      %v3095 = vld [vmem:[#allocation2 + $0xfc] sm:$0xff]
      %v3096 = vld [vmem:[#allocation2 + $0x104] sm:$0xff]
      %v3097 = vld [vmem:[#allocation2 + $0x10c] sm:$0xff]
      %v3098 = vld [vmem:[#allocation2 + $0x114] sm:$0xff]
      %v3099 = vld [vmem:[#allocation2 + $0x11c] sm:$0xff]
      %v3100 = vld [vmem:[#allocation2 + $0x124] sm:$0xff]
      %v3101 = vld [vmem:[#allocation2 + $0x12c] sm:$0xff]
      %v3102 = vld [vmem:[#allocation2 + $0x134] sm:$0xff]
      %v3103 = vld [vmem:[#allocation2 + $0x13c] sm:$0xff]
      %v3104 = vpack.c.bf16 %v3069, %v3068
      %v3105 = vpack.c.bf16 %v3071, %v3070
      %v3106 = vpack.c.bf16 %v3073, %v3072
      %v3107 = vpack.c.bf16 %v3075, %v3074
      %v3108 = vpack.c.bf16 %v3077, %v3076
      %v3109 = vpack.c.bf16 %v3079, %v3078
      %v3110 = vpack.c.bf16 %v3081, %v3080
      %v3111 = vpack.c.bf16 %v3083, %v3082
      %v3112 = vpack.c.bf16 %v3085, %v3084
      %v3113 = vpack.c.bf16 %v3087, %v3086
      %v3114 = vpack.c.bf16 %v3089, %v3088
      %v3115 = vpack.c.bf16 %v3091, %v3090
      %v3116 = vpack.c.bf16 %v3093, %v3092
      %v3117 = vpack.c.bf16 %v3095, %v3094
      %v3118 = vpack.c.bf16 %v3097, %v3096
      %v3119 = vpack.c.bf16 %v3099, %v3098
      %v3120 = vpack.c.bf16 %v3101, %v3100
      %v3121 = vpack.c.bf16 %v3103, %v3102
      %s3122 = scalar_lea.vmem %s5, 12
      %v3123 = vld [vmem:[%s3122] sm:$0x3]
      %v3125 = vsel %vm1139, %v3104, 0
      %v3128 = vsel %vm1139, %v3105, 0
      %v3131 = vsel %vm1139, %v3106, 0
      %v3134 = vsel %vm1139, %v3107, 0
      %v3137 = vsel %vm1139, %v3108, 0
      %v3140 = vsel %vm1139, %v3109, 0
      %v3143 = vsel %vm1139, %v3110, 0
      %v3146 = vsel %vm1139, %v3111, 0
      %v3149 = vsel %vm1139, %v3112, 0
      %v3152 = vsel %vm1139, %v3113, 0
      %v3155 = vsel %vm1139, %v3114, 0
      %v3158 = vsel %vm1139, %v3115, 0
      %v3161 = vsel %vm1139, %v3116, 0
      %v3164 = vsel %vm1139, %v3117, 0
      %v3167 = vsel %vm1139, %v3118, 0
      %v3170 = vsel %vm1139, %v3119, 0
      %v3173 = vsel %vm1139, %v3120, 0
      %v3176 = vsel %vm1139, %v3121, 0
      %v3179 = vsel %vm1349, %v3123, 0
      %3181 = vmatprep.subr.bf16.mxu0 0
      %3182 = vmatpush1.bf16.msra.mxu0 0
      %3183 = vmatprep.subr.bf16.mxu0 0
      %3184 = vmatpush1.bf16.msra.mxu0 0
      %3185 = vmatprep.subr.bf16.mxu0 0
      %3186 = vmatpush1.bf16.msra.mxu0 0
      %3187 = vmatprep.subr.bf16.mxu0 0
      %3188 = vmatpush1.bf16.msra.mxu0 0
      %3189 = vmatprep.subr.bf16.mxu0 0
      %3190 = vmatpush1.bf16.msra.mxu0 0
      %3191 = vmatprep.subr.bf16.mxu0 0
      %3192 = vmatpush1.bf16.msra.mxu0 0
      %3193 = vmatprep.subr.bf16.mxu0 0
      %3194 = vmatpush1.bf16.msra.mxu0 0
      %3195 = vmatprep.subr.bf16.mxu0 0
      %3196 = vmatpush1.bf16.msra.mxu0 %v3179
      %3197 = vmatprep.subr.bf16.mxu0 0
      %3198 = vmatpush2.bf16.msra.mxu0 0
      %3199 = vmatprep.subr.bf16.mxu0 0
      %3200 = vmatpush2.bf16.msra.mxu0 0
      %3201 = vmatprep.subr.bf16.mxu0 0
      %3202 = vmatpush2.bf16.msra.mxu0 0
      %3203 = vmatprep.subr.bf16.mxu0 0
      %3204 = vmatpush2.bf16.msra.mxu0 0
      %3205 = vmatprep.subr.bf16.mxu0 0
      %3206 = vmatpush2.bf16.msra.mxu0 0
      %3207 = vmatprep.subr.bf16.mxu0 0
      %3208 = vmatpush2.bf16.msra.mxu0 0
      %3209 = vmatprep.subr.bf16.mxu0 0
      %3210 = vmatpush2.bf16.msra.mxu0 0
      %3211 = vmatprep.subr.bf16.mxu0 0
      %3212 = vmatpush2.bf16.msra.mxu0 0
      %3213 = vmatprep.mubr.bf16.mxu0 0
      %3214 = vmatmul.mubr.bf16.gmra.mxu0 %v3125
      %v3215 = vpop.f32.mrf.mxu0
      %v3216 = vadd.f32 0.0, %v3215
      %v3217 = vpop.f32.mrf.mxu0
      %v3218 = vpop.f32.mrf.mxu0
      %v3219 = vadd.f32 0.0, %v3218
      %v3220 = vpop.f32.mrf.mxu0
      %3221 = vmatprep.mubr.bf16.mxu0 0
      %3222 = vmatmul.mubr.bf16.gmra.mxu0 %v3128
      %v3223 = vpop.f32.mrf.mxu0
      %v3224 = vadd.f32 0.0, %v3223
      %v3225 = vpop.f32.mrf.mxu0
      %v3226 = vpop.f32.mrf.mxu0
      %v3227 = vadd.f32 0.0, %v3226
      %v3228 = vpop.f32.mrf.mxu0
      %3229 = vmatprep.mubr.bf16.mxu0 0
      %3230 = vmatmul.mubr.bf16.gmra.mxu0 %v3131
      %v3231 = vpop.f32.mrf.mxu0
      %v3232 = vadd.f32 0.0, %v3231
      %v3233 = vpop.f32.mrf.mxu0
      %v3234 = vpop.f32.mrf.mxu0
      %v3235 = vadd.f32 0.0, %v3234
      %v3236 = vpop.f32.mrf.mxu0
      %3237 = vmatprep.mubr.bf16.mxu0 0
      %3238 = vmatmul.mubr.bf16.gmra.mxu0 %v3134
      %v3239 = vpop.f32.mrf.mxu0
      %v3240 = vadd.f32 0.0, %v3239
      %v3241 = vpop.f32.mrf.mxu0
      %v3242 = vpop.f32.mrf.mxu0
      %v3243 = vadd.f32 0.0, %v3242
      %v3244 = vpop.f32.mrf.mxu0
      %3245 = vmatprep.mubr.bf16.mxu0 0
      %3246 = vmatmul.mubr.bf16.gmra.mxu0 %v3137
      %v3247 = vpop.f32.mrf.mxu0
      %v3248 = vadd.f32 0.0, %v3247
      %v3249 = vpop.f32.mrf.mxu0
      %v3250 = vpop.f32.mrf.mxu0
      %v3251 = vadd.f32 0.0, %v3250
      %v3252 = vpop.f32.mrf.mxu0
      %3253 = vmatprep.mubr.bf16.mxu0 0
      %3254 = vmatmul.mubr.bf16.gmra.mxu0 %v3140
      %v3255 = vpop.f32.mrf.mxu0
      %v3256 = vadd.f32 0.0, %v3255
      %v3257 = vpop.f32.mrf.mxu0
      %v3258 = vpop.f32.mrf.mxu0
      %v3259 = vadd.f32 0.0, %v3258
      %v3260 = vpop.f32.mrf.mxu0
      %3261 = vmatprep.mubr.bf16.mxu0 0
      %3262 = vmatmul.mubr.bf16.gmra.mxu0 %v3143
      %v3263 = vpop.f32.mrf.mxu0
      %v3264 = vadd.f32 0.0, %v3263
      %v3265 = vpop.f32.mrf.mxu0
      %v3266 = vpop.f32.mrf.mxu0
      %v3267 = vadd.f32 0.0, %v3266
      %v3268 = vpop.f32.mrf.mxu0
      %3269 = vmatprep.mubr.bf16.mxu0 0
      %3270 = vmatmul.mubr.bf16.gmra.mxu0 %v3146
      %v3271 = vpop.f32.mrf.mxu0
      %v3272 = vadd.f32 0.0, %v3271
      %v3273 = vpop.f32.mrf.mxu0
      %v3274 = vpop.f32.mrf.mxu0
      %v3275 = vadd.f32 0.0, %v3274
      %v3276 = vpop.f32.mrf.mxu0
      %3277 = vmatprep.mubr.bf16.mxu0 0
      %3278 = vmatmul.mubr.bf16.gmra.mxu0 %v3149
      %v3279 = vpop.f32.mrf.mxu0
      %v3280 = vadd.f32 0.0, %v3279
      %v3281 = vpop.f32.mrf.mxu0
      %v3282 = vpop.f32.mrf.mxu0
      %v3283 = vadd.f32 0.0, %v3282
      %v3284 = vpop.f32.mrf.mxu0
      %3285 = vmatprep.mubr.bf16.mxu0 0
      %3286 = vmatmul.mubr.bf16.gmra.mxu0 %v3152
      %v3287 = vpop.f32.mrf.mxu0
      %v3288 = vadd.f32 0.0, %v3287
      %v3289 = vpop.f32.mrf.mxu0
      %v3290 = vpop.f32.mrf.mxu0
      %v3291 = vadd.f32 0.0, %v3290
      %v3292 = vpop.f32.mrf.mxu0
      %3293 = vmatprep.mubr.bf16.mxu0 0
      %3294 = vmatmul.mubr.bf16.gmra.mxu0 %v3155
      %v3295 = vpop.f32.mrf.mxu0
      %v3296 = vadd.f32 0.0, %v3295
      %v3297 = vpop.f32.mrf.mxu0
      %v3298 = vpop.f32.mrf.mxu0
      %v3299 = vadd.f32 0.0, %v3298
      %v3300 = vpop.f32.mrf.mxu0
      %3301 = vmatprep.mubr.bf16.mxu0 0
      %3302 = vmatmul.mubr.bf16.gmra.mxu0 %v3158
      %v3303 = vpop.f32.mrf.mxu0
      %v3304 = vadd.f32 0.0, %v3303
      %v3305 = vpop.f32.mrf.mxu0
      %v3306 = vpop.f32.mrf.mxu0
      %v3307 = vadd.f32 0.0, %v3306
      %v3308 = vpop.f32.mrf.mxu0
      %3309 = vmatprep.mubr.bf16.mxu0 0
      %3310 = vmatmul.mubr.bf16.gmra.mxu0 %v3161
      %v3311 = vpop.f32.mrf.mxu0
      %v3312 = vadd.f32 0.0, %v3311
      %v3313 = vpop.f32.mrf.mxu0
      %v3314 = vpop.f32.mrf.mxu0
      %v3315 = vadd.f32 0.0, %v3314
      %v3316 = vpop.f32.mrf.mxu0
      %3317 = vmatprep.mubr.bf16.mxu0 0
      %3318 = vmatmul.mubr.bf16.gmra.mxu0 %v3164
      %v3319 = vpop.f32.mrf.mxu0
      %v3320 = vadd.f32 0.0, %v3319
      %v3321 = vpop.f32.mrf.mxu0
      %v3322 = vpop.f32.mrf.mxu0
      %v3323 = vadd.f32 0.0, %v3322
      %v3324 = vpop.f32.mrf.mxu0
      %3325 = vmatprep.mubr.bf16.mxu0 0
      %3326 = vmatmul.mubr.bf16.gmra.mxu0 %v3167
      %v3327 = vpop.f32.mrf.mxu0
      %v3328 = vadd.f32 0.0, %v3327
      %v3329 = vpop.f32.mrf.mxu0
      %v3330 = vpop.f32.mrf.mxu0
      %v3331 = vadd.f32 0.0, %v3330
      %v3332 = vpop.f32.mrf.mxu0
      %3333 = vmatprep.mubr.bf16.mxu0 0
      %3334 = vmatmul.mubr.bf16.gmra.mxu0 %v3170
      %v3335 = vpop.f32.mrf.mxu0
      %v3336 = vadd.f32 0.0, %v3335
      %v3337 = vpop.f32.mrf.mxu0
      %v3338 = vpop.f32.mrf.mxu0
      %v3339 = vadd.f32 0.0, %v3338
      %v3340 = vpop.f32.mrf.mxu0
      %3341 = vmatprep.mubr.bf16.mxu0 0
      %3342 = vmatmul.mubr.bf16.gmra.mxu0 %v3173
      %v3343 = vpop.f32.mrf.mxu0
      %v3344 = vadd.f32 0.0, %v3343
      %v3345 = vpop.f32.mrf.mxu0
      %v3346 = vpop.f32.mrf.mxu0
      %v3347 = vadd.f32 0.0, %v3346
      %v3348 = vpop.f32.mrf.mxu0
      %3349 = vmatprep.mubr.bf16.mxu0 0
      %3350 = vmatmul.mubr.bf16.gmra.mxu0 %v3176
      %v3351 = vpop.f32.mrf.mxu0
      %v3352 = vadd.f32 0.0, %v3351
      %v3353 = vpop.f32.mrf.mxu0
      %v3354 = vpop.f32.mrf.mxu0
      %v3355 = vadd.f32 0.0, %v3354
      %v3356 = vpop.f32.mrf.mxu0
      %3357 = vdwg.mxu0
      %v3358 = vadd.f32 %v3032, %v3216
      %v3359 = vadd.f32 %v3033, %v3219
      %v3360 = vadd.f32 %v3034, %v3224
      %v3361 = vadd.f32 %v3035, %v3227
      %v3362 = vadd.f32 %v3036, %v3232
      %v3363 = vadd.f32 %v3037, %v3235
      %v3364 = vadd.f32 %v3038, %v3240
      %v3365 = vadd.f32 %v3039, %v3243
      %v3366 = vadd.f32 %v3040, %v3248
      %v3367 = vadd.f32 %v3041, %v3251
      %v3368 = vadd.f32 %v3042, %v3256
      %v3369 = vadd.f32 %v3043, %v3259
      %v3370 = vadd.f32 %v3044, %v3264
      %v3371 = vadd.f32 %v3045, %v3267
      %v3372 = vadd.f32 %v3046, %v3272
      %v3373 = vadd.f32 %v3047, %v3275
      %v3374 = vadd.f32 %v3048, %v3280
      %v3375 = vadd.f32 %v3049, %v3283
      %v3376 = vadd.f32 %v3050, %v3288
      %v3377 = vadd.f32 %v3051, %v3291
      %v3378 = vadd.f32 %v3052, %v3296
      %v3379 = vadd.f32 %v3053, %v3299
      %v3380 = vadd.f32 %v3054, %v3304
      %v3381 = vadd.f32 %v3055, %v3307
      %v3382 = vadd.f32 %v3056, %v3312
      %v3383 = vadd.f32 %v3057, %v3315
      %v3384 = vadd.f32 %v3058, %v3320
      %v3385 = vadd.f32 %v3059, %v3323
      %v3386 = vadd.f32 %v3060, %v3328
      %v3387 = vadd.f32 %v3061, %v3331
      %v3388 = vadd.f32 %v3062, %v3336
      %v3389 = vadd.f32 %v3063, %v3339
      %v3390 = vadd.f32 %v3064, %v3344
      %v3391 = vadd.f32 %v3065, %v3347
      %v3392 = vadd.f32 %v3066, %v3352
      %v3393 = vadd.f32 %v3067, %v3355
      %v3394 = vld [vmem:[#allocation2 + $0x25] sm:$0xff]
      %v3395 = vld [vmem:[#allocation2 + $0x2d] sm:$0xff]
      %v3396 = vld [vmem:[#allocation2 + $0x35] sm:$0xff]
      %v3397 = vld [vmem:[#allocation2 + $0x3d] sm:$0xff]
      %v3398 = vld [vmem:[#allocation2 + $0x45] sm:$0xff]
      %v3399 = vld [vmem:[#allocation2 + $0x4d] sm:$0xff]
      %v3400 = vld [vmem:[#allocation2 + $0x55] sm:$0xff]
      %v3401 = vld [vmem:[#allocation2 + $0x5d] sm:$0xff]
      %v3402 = vld [vmem:[#allocation2 + $0x65] sm:$0xff]
      %v3403 = vld [vmem:[#allocation2 + $0x6d] sm:$0xff]
      %v3404 = vld [vmem:[#allocation2 + $0x75] sm:$0xff]
      %v3405 = vld [vmem:[#allocation2 + $0x7d] sm:$0xff]
      %v3406 = vld [vmem:[#allocation2 + $0x85] sm:$0xff]
      %v3407 = vld [vmem:[#allocation2 + $0x8d] sm:$0xff]
      %v3408 = vld [vmem:[#allocation2 + $0x95] sm:$0xff]
      %v3409 = vld [vmem:[#allocation2 + $0x9d] sm:$0xff]
      %v3410 = vld [vmem:[#allocation2 + $0xa5] sm:$0xff]
      %v3411 = vld [vmem:[#allocation2 + $0xad] sm:$0xff]
      %v3412 = vld [vmem:[#allocation2 + $0xb5] sm:$0xff]
      %v3413 = vld [vmem:[#allocation2 + $0xbd] sm:$0xff]
      %v3414 = vld [vmem:[#allocation2 + $0xc5] sm:$0xff]
      %v3415 = vld [vmem:[#allocation2 + $0xcd] sm:$0xff]
      %v3416 = vld [vmem:[#allocation2 + $0xd5] sm:$0xff]
      %v3417 = vld [vmem:[#allocation2 + $0xdd] sm:$0xff]
      %v3418 = vld [vmem:[#allocation2 + $0xe5] sm:$0xff]
      %v3419 = vld [vmem:[#allocation2 + $0xed] sm:$0xff]
      %v3420 = vld [vmem:[#allocation2 + $0xf5] sm:$0xff]
      %v3421 = vld [vmem:[#allocation2 + $0xfd] sm:$0xff]
      %v3422 = vld [vmem:[#allocation2 + $0x105] sm:$0xff]
      %v3423 = vld [vmem:[#allocation2 + $0x10d] sm:$0xff]
      %v3424 = vld [vmem:[#allocation2 + $0x115] sm:$0xff]
      %v3425 = vld [vmem:[#allocation2 + $0x11d] sm:$0xff]
      %v3426 = vld [vmem:[#allocation2 + $0x125] sm:$0xff]
      %v3427 = vld [vmem:[#allocation2 + $0x12d] sm:$0xff]
      %v3428 = vld [vmem:[#allocation2 + $0x135] sm:$0xff]
      %v3429 = vld [vmem:[#allocation2 + $0x13d] sm:$0xff]
      %v3430 = vpack.c.bf16 %v3395, %v3394
      %v3431 = vpack.c.bf16 %v3397, %v3396
      %v3432 = vpack.c.bf16 %v3399, %v3398
      %v3433 = vpack.c.bf16 %v3401, %v3400
      %v3434 = vpack.c.bf16 %v3403, %v3402
      %v3435 = vpack.c.bf16 %v3405, %v3404
      %v3436 = vpack.c.bf16 %v3407, %v3406
      %v3437 = vpack.c.bf16 %v3409, %v3408
      %v3438 = vpack.c.bf16 %v3411, %v3410
      %v3439 = vpack.c.bf16 %v3413, %v3412
      %v3440 = vpack.c.bf16 %v3415, %v3414
      %v3441 = vpack.c.bf16 %v3417, %v3416
      %v3442 = vpack.c.bf16 %v3419, %v3418
      %v3443 = vpack.c.bf16 %v3421, %v3420
      %v3444 = vpack.c.bf16 %v3423, %v3422
      %v3445 = vpack.c.bf16 %v3425, %v3424
      %v3446 = vpack.c.bf16 %v3427, %v3426
      %v3447 = vpack.c.bf16 %v3429, %v3428
      %s3448 = scalar_lea.vmem %s5, 14
      %v3449 = vld [vmem:[%s3448] sm:$0x3]
      %v3451 = vsel %vm1139, %v3430, 0
      %v3454 = vsel %vm1139, %v3431, 0
      %v3457 = vsel %vm1139, %v3432, 0
      %v3460 = vsel %vm1139, %v3433, 0
      %v3463 = vsel %vm1139, %v3434, 0
      %v3466 = vsel %vm1139, %v3435, 0
      %v3469 = vsel %vm1139, %v3436, 0
      %v3472 = vsel %vm1139, %v3437, 0
      %v3475 = vsel %vm1139, %v3438, 0
      %v3478 = vsel %vm1139, %v3439, 0
      %v3481 = vsel %vm1139, %v3440, 0
      %v3484 = vsel %vm1139, %v3441, 0
      %v3487 = vsel %vm1139, %v3442, 0
      %v3490 = vsel %vm1139, %v3443, 0
      %v3493 = vsel %vm1139, %v3444, 0
      %v3496 = vsel %vm1139, %v3445, 0
      %v3499 = vsel %vm1139, %v3446, 0
      %v3502 = vsel %vm1139, %v3447, 0
      %v3505 = vsel %vm1349, %v3449, 0
      %3507 = vmatprep.subr.bf16.mxu0 0
      %3508 = vmatpush1.bf16.msra.mxu0 0
      %3509 = vmatprep.subr.bf16.mxu0 0
      %3510 = vmatpush1.bf16.msra.mxu0 0
      %3511 = vmatprep.subr.bf16.mxu0 0
      %3512 = vmatpush1.bf16.msra.mxu0 0
      %3513 = vmatprep.subr.bf16.mxu0 0
      %3514 = vmatpush1.bf16.msra.mxu0 0
      %3515 = vmatprep.subr.bf16.mxu0 0
      %3516 = vmatpush1.bf16.msra.mxu0 0
      %3517 = vmatprep.subr.bf16.mxu0 0
      %3518 = vmatpush1.bf16.msra.mxu0 0
      %3519 = vmatprep.subr.bf16.mxu0 0
      %3520 = vmatpush1.bf16.msra.mxu0 0
      %3521 = vmatprep.subr.bf16.mxu0 0
      %3522 = vmatpush1.bf16.msra.mxu0 %v3505
      %3523 = vmatprep.subr.bf16.mxu0 0
      %3524 = vmatpush2.bf16.msra.mxu0 0
      %3525 = vmatprep.subr.bf16.mxu0 0
      %3526 = vmatpush2.bf16.msra.mxu0 0
      %3527 = vmatprep.subr.bf16.mxu0 0
      %3528 = vmatpush2.bf16.msra.mxu0 0
      %3529 = vmatprep.subr.bf16.mxu0 0
      %3530 = vmatpush2.bf16.msra.mxu0 0
      %3531 = vmatprep.subr.bf16.mxu0 0
      %3532 = vmatpush2.bf16.msra.mxu0 0
      %3533 = vmatprep.subr.bf16.mxu0 0
      %3534 = vmatpush2.bf16.msra.mxu0 0
      %3535 = vmatprep.subr.bf16.mxu0 0
      %3536 = vmatpush2.bf16.msra.mxu0 0
      %3537 = vmatprep.subr.bf16.mxu0 0
      %3538 = vmatpush2.bf16.msra.mxu0 0
      %3539 = vmatprep.mubr.bf16.mxu0 0
      %3540 = vmatmul.mubr.bf16.gmra.mxu0 %v3451
      %v3541 = vpop.f32.mrf.mxu0
      %v3542 = vadd.f32 0.0, %v3541
      %v3543 = vpop.f32.mrf.mxu0
      %v3544 = vpop.f32.mrf.mxu0
      %v3545 = vadd.f32 0.0, %v3544
      %v3546 = vpop.f32.mrf.mxu0
      %3547 = vmatprep.mubr.bf16.mxu0 0
      %3548 = vmatmul.mubr.bf16.gmra.mxu0 %v3454
      %v3549 = vpop.f32.mrf.mxu0
      %v3550 = vadd.f32 0.0, %v3549
      %v3551 = vpop.f32.mrf.mxu0
      %v3552 = vpop.f32.mrf.mxu0
      %v3553 = vadd.f32 0.0, %v3552
      %v3554 = vpop.f32.mrf.mxu0
      %3555 = vmatprep.mubr.bf16.mxu0 0
      %3556 = vmatmul.mubr.bf16.gmra.mxu0 %v3457
      %v3557 = vpop.f32.mrf.mxu0
      %v3558 = vadd.f32 0.0, %v3557
      %v3559 = vpop.f32.mrf.mxu0
      %v3560 = vpop.f32.mrf.mxu0
      %v3561 = vadd.f32 0.0, %v3560
      %v3562 = vpop.f32.mrf.mxu0
      %3563 = vmatprep.mubr.bf16.mxu0 0
      %3564 = vmatmul.mubr.bf16.gmra.mxu0 %v3460
      %v3565 = vpop.f32.mrf.mxu0
      %v3566 = vadd.f32 0.0, %v3565
      %v3567 = vpop.f32.mrf.mxu0
      %v3568 = vpop.f32.mrf.mxu0
      %v3569 = vadd.f32 0.0, %v3568
      %v3570 = vpop.f32.mrf.mxu0
      %3571 = vmatprep.mubr.bf16.mxu0 0
      %3572 = vmatmul.mubr.bf16.gmra.mxu0 %v3463
      %v3573 = vpop.f32.mrf.mxu0
      %v3574 = vadd.f32 0.0, %v3573
      %v3575 = vpop.f32.mrf.mxu0
      %v3576 = vpop.f32.mrf.mxu0
      %v3577 = vadd.f32 0.0, %v3576
      %v3578 = vpop.f32.mrf.mxu0
      %3579 = vmatprep.mubr.bf16.mxu0 0
      %3580 = vmatmul.mubr.bf16.gmra.mxu0 %v3466
      %v3581 = vpop.f32.mrf.mxu0
      %v3582 = vadd.f32 0.0, %v3581
      %v3583 = vpop.f32.mrf.mxu0
      %v3584 = vpop.f32.mrf.mxu0
      %v3585 = vadd.f32 0.0, %v3584
      %v3586 = vpop.f32.mrf.mxu0
      %3587 = vmatprep.mubr.bf16.mxu0 0
      %3588 = vmatmul.mubr.bf16.gmra.mxu0 %v3469
      %v3589 = vpop.f32.mrf.mxu0
      %v3590 = vadd.f32 0.0, %v3589
      %v3591 = vpop.f32.mrf.mxu0
      %v3592 = vpop.f32.mrf.mxu0
      %v3593 = vadd.f32 0.0, %v3592
      %v3594 = vpop.f32.mrf.mxu0
      %3595 = vmatprep.mubr.bf16.mxu0 0
      %3596 = vmatmul.mubr.bf16.gmra.mxu0 %v3472
      %v3597 = vpop.f32.mrf.mxu0
      %v3598 = vadd.f32 0.0, %v3597
      %v3599 = vpop.f32.mrf.mxu0
      %v3600 = vpop.f32.mrf.mxu0
      %v3601 = vadd.f32 0.0, %v3600
      %v3602 = vpop.f32.mrf.mxu0
      %3603 = vmatprep.mubr.bf16.mxu0 0
      %3604 = vmatmul.mubr.bf16.gmra.mxu0 %v3475
      %v3605 = vpop.f32.mrf.mxu0
      %v3606 = vadd.f32 0.0, %v3605
      %v3607 = vpop.f32.mrf.mxu0
      %v3608 = vpop.f32.mrf.mxu0
      %v3609 = vadd.f32 0.0, %v3608
      %v3610 = vpop.f32.mrf.mxu0
      %3611 = vmatprep.mubr.bf16.mxu0 0
      %3612 = vmatmul.mubr.bf16.gmra.mxu0 %v3478
      %v3613 = vpop.f32.mrf.mxu0
      %v3614 = vadd.f32 0.0, %v3613
      %v3615 = vpop.f32.mrf.mxu0
      %v3616 = vpop.f32.mrf.mxu0
      %v3617 = vadd.f32 0.0, %v3616
      %v3618 = vpop.f32.mrf.mxu0
      %3619 = vmatprep.mubr.bf16.mxu0 0
      %3620 = vmatmul.mubr.bf16.gmra.mxu0 %v3481
      %v3621 = vpop.f32.mrf.mxu0
      %v3622 = vadd.f32 0.0, %v3621
      %v3623 = vpop.f32.mrf.mxu0
      %v3624 = vpop.f32.mrf.mxu0
      %v3625 = vadd.f32 0.0, %v3624
      %v3626 = vpop.f32.mrf.mxu0
      %3627 = vmatprep.mubr.bf16.mxu0 0
      %3628 = vmatmul.mubr.bf16.gmra.mxu0 %v3484
      %v3629 = vpop.f32.mrf.mxu0
      %v3630 = vadd.f32 0.0, %v3629
      %v3631 = vpop.f32.mrf.mxu0
      %v3632 = vpop.f32.mrf.mxu0
      %v3633 = vadd.f32 0.0, %v3632
      %v3634 = vpop.f32.mrf.mxu0
      %3635 = vmatprep.mubr.bf16.mxu0 0
      %3636 = vmatmul.mubr.bf16.gmra.mxu0 %v3487
      %v3637 = vpop.f32.mrf.mxu0
      %v3638 = vadd.f32 0.0, %v3637
      %v3639 = vpop.f32.mrf.mxu0
      %v3640 = vpop.f32.mrf.mxu0
      %v3641 = vadd.f32 0.0, %v3640
      %v3642 = vpop.f32.mrf.mxu0
      %3643 = vmatprep.mubr.bf16.mxu0 0
      %3644 = vmatmul.mubr.bf16.gmra.mxu0 %v3490
      %v3645 = vpop.f32.mrf.mxu0
      %v3646 = vadd.f32 0.0, %v3645
      %v3647 = vpop.f32.mrf.mxu0
      %v3648 = vpop.f32.mrf.mxu0
      %v3649 = vadd.f32 0.0, %v3648
      %v3650 = vpop.f32.mrf.mxu0
      %3651 = vmatprep.mubr.bf16.mxu0 0
      %3652 = vmatmul.mubr.bf16.gmra.mxu0 %v3493
      %v3653 = vpop.f32.mrf.mxu0
      %v3654 = vadd.f32 0.0, %v3653
      %v3655 = vpop.f32.mrf.mxu0
      %v3656 = vpop.f32.mrf.mxu0
      %v3657 = vadd.f32 0.0, %v3656
      %v3658 = vpop.f32.mrf.mxu0
      %3659 = vmatprep.mubr.bf16.mxu0 0
      %3660 = vmatmul.mubr.bf16.gmra.mxu0 %v3496
      %v3661 = vpop.f32.mrf.mxu0
      %v3662 = vadd.f32 0.0, %v3661
      %v3663 = vpop.f32.mrf.mxu0
      %v3664 = vpop.f32.mrf.mxu0
      %v3665 = vadd.f32 0.0, %v3664
      %v3666 = vpop.f32.mrf.mxu0
      %3667 = vmatprep.mubr.bf16.mxu0 0
      %3668 = vmatmul.mubr.bf16.gmra.mxu0 %v3499
      %v3669 = vpop.f32.mrf.mxu0
      %v3670 = vadd.f32 0.0, %v3669
      %v3671 = vpop.f32.mrf.mxu0
      %v3672 = vpop.f32.mrf.mxu0
      %v3673 = vadd.f32 0.0, %v3672
      %v3674 = vpop.f32.mrf.mxu0
      %3675 = vmatprep.mubr.bf16.mxu0 0
      %3676 = vmatmul.mubr.bf16.gmra.mxu0 %v3502
      %v3677 = vpop.f32.mrf.mxu0
      %v3678 = vadd.f32 0.0, %v3677
      %v3679 = vpop.f32.mrf.mxu0
      %v3680 = vpop.f32.mrf.mxu0
      %v3681 = vadd.f32 0.0, %v3680
      %v3682 = vpop.f32.mrf.mxu0
      %3683 = vdwg.mxu0
      %v3684 = vadd.f32 %v3358, %v3542
      %v3685 = vadd.f32 %v3359, %v3545
      %v3686 = vadd.f32 %v3360, %v3550
      %v3687 = vadd.f32 %v3361, %v3553
      %v3688 = vadd.f32 %v3362, %v3558
      %v3689 = vadd.f32 %v3363, %v3561
      %v3690 = vadd.f32 %v3364, %v3566
      %v3691 = vadd.f32 %v3365, %v3569
      %v3692 = vadd.f32 %v3366, %v3574
      %v3693 = vadd.f32 %v3367, %v3577
      %v3694 = vadd.f32 %v3368, %v3582
      %v3695 = vadd.f32 %v3369, %v3585
      %v3696 = vadd.f32 %v3370, %v3590
      %v3697 = vadd.f32 %v3371, %v3593
      %v3698 = vadd.f32 %v3372, %v3598
      %v3699 = vadd.f32 %v3373, %v3601
      %v3700 = vadd.f32 %v3374, %v3606
      %v3701 = vadd.f32 %v3375, %v3609
      %v3702 = vadd.f32 %v3376, %v3614
      %v3703 = vadd.f32 %v3377, %v3617
      %v3704 = vadd.f32 %v3378, %v3622
      %v3705 = vadd.f32 %v3379, %v3625
      %v3706 = vadd.f32 %v3380, %v3630
      %v3707 = vadd.f32 %v3381, %v3633
      %v3708 = vadd.f32 %v3382, %v3638
      %v3709 = vadd.f32 %v3383, %v3641
      %v3710 = vadd.f32 %v3384, %v3646
      %v3711 = vadd.f32 %v3385, %v3649
      %v3712 = vadd.f32 %v3386, %v3654
      %v3713 = vadd.f32 %v3387, %v3657
      %v3714 = vadd.f32 %v3388, %v3662
      %v3715 = vadd.f32 %v3389, %v3665
      %v3716 = vadd.f32 %v3390, %v3670
      %v3717 = vadd.f32 %v3391, %v3673
      %v3718 = vadd.f32 %v3392, %v3678
      %v3719 = vadd.f32 %v3393, %v3681
      %v3720 = vld [vmem:[#allocation2 + $0x26] sm:$0xff]
      %v3721 = vld [vmem:[#allocation2 + $0x2e] sm:$0xff]
      %v3722 = vld [vmem:[#allocation2 + $0x36] sm:$0xff]
      %v3723 = vld [vmem:[#allocation2 + $0x3e] sm:$0xff]
      %v3724 = vld [vmem:[#allocation2 + $0x46] sm:$0xff]
      %v3725 = vld [vmem:[#allocation2 + $0x4e] sm:$0xff]
      %v3726 = vld [vmem:[#allocation2 + $0x56] sm:$0xff]
      %v3727 = vld [vmem:[#allocation2 + $0x5e] sm:$0xff]
      %v3728 = vld [vmem:[#allocation2 + $0x66] sm:$0xff]
      %v3729 = vld [vmem:[#allocation2 + $0x6e] sm:$0xff]
      %v3730 = vld [vmem:[#allocation2 + $0x76] sm:$0xff]
      %v3731 = vld [vmem:[#allocation2 + $0x7e] sm:$0xff]
      %v3732 = vld [vmem:[#allocation2 + $0x86] sm:$0xff]
      %v3733 = vld [vmem:[#allocation2 + $0x8e] sm:$0xff]
      %v3734 = vld [vmem:[#allocation2 + $0x96] sm:$0xff]
      %v3735 = vld [vmem:[#allocation2 + $0x9e] sm:$0xff]
      %v3736 = vld [vmem:[#allocation2 + $0xa6] sm:$0xff]
      %v3737 = vld [vmem:[#allocation2 + $0xae] sm:$0xff]
      %v3738 = vld [vmem:[#allocation2 + $0xb6] sm:$0xff]
      %v3739 = vld [vmem:[#allocation2 + $0xbe] sm:$0xff]
      %v3740 = vld [vmem:[#allocation2 + $0xc6] sm:$0xff]
      %v3741 = vld [vmem:[#allocation2 + $0xce] sm:$0xff]
      %v3742 = vld [vmem:[#allocation2 + $0xd6] sm:$0xff]
      %v3743 = vld [vmem:[#allocation2 + $0xde] sm:$0xff]
      %v3744 = vld [vmem:[#allocation2 + $0xe6] sm:$0xff]
      %v3745 = vld [vmem:[#allocation2 + $0xee] sm:$0xff]
      %v3746 = vld [vmem:[#allocation2 + $0xf6] sm:$0xff]
      %v3747 = vld [vmem:[#allocation2 + $0xfe] sm:$0xff]
      %v3748 = vld [vmem:[#allocation2 + $0x106] sm:$0xff]
      %v3749 = vld [vmem:[#allocation2 + $0x10e] sm:$0xff]
      %v3750 = vld [vmem:[#allocation2 + $0x116] sm:$0xff]
      %v3751 = vld [vmem:[#allocation2 + $0x11e] sm:$0xff]
      %v3752 = vld [vmem:[#allocation2 + $0x126] sm:$0xff]
      %v3753 = vld [vmem:[#allocation2 + $0x12e] sm:$0xff]
      %v3754 = vld [vmem:[#allocation2 + $0x136] sm:$0xff]
      %v3755 = vld [vmem:[#allocation2 + $0x13e] sm:$0xff]
      %v3756 = vpack.c.bf16 %v3721, %v3720
      %v3757 = vpack.c.bf16 %v3723, %v3722
      %v3758 = vpack.c.bf16 %v3725, %v3724
      %v3759 = vpack.c.bf16 %v3727, %v3726
      %v3760 = vpack.c.bf16 %v3729, %v3728
      %v3761 = vpack.c.bf16 %v3731, %v3730
      %v3762 = vpack.c.bf16 %v3733, %v3732
      %v3763 = vpack.c.bf16 %v3735, %v3734
      %v3764 = vpack.c.bf16 %v3737, %v3736
      %v3765 = vpack.c.bf16 %v3739, %v3738
      %v3766 = vpack.c.bf16 %v3741, %v3740
      %v3767 = vpack.c.bf16 %v3743, %v3742
      %v3768 = vpack.c.bf16 %v3745, %v3744
      %v3769 = vpack.c.bf16 %v3747, %v3746
      %v3770 = vpack.c.bf16 %v3749, %v3748
      %v3771 = vpack.c.bf16 %v3751, %v3750
      %v3772 = vpack.c.bf16 %v3753, %v3752
      %v3773 = vpack.c.bf16 %v3755, %v3754
      %s3774 = scalar_lea.vmem %s5, 16
      %v3775 = vld [vmem:[%s3774] sm:$0x3]
      %v3777 = vsel %vm1139, %v3756, 0
      %v3780 = vsel %vm1139, %v3757, 0
      %v3783 = vsel %vm1139, %v3758, 0
      %v3786 = vsel %vm1139, %v3759, 0
      %v3789 = vsel %vm1139, %v3760, 0
      %v3792 = vsel %vm1139, %v3761, 0
      %v3795 = vsel %vm1139, %v3762, 0
      %v3798 = vsel %vm1139, %v3763, 0
      %v3801 = vsel %vm1139, %v3764, 0
      %v3804 = vsel %vm1139, %v3765, 0
      %v3807 = vsel %vm1139, %v3766, 0
      %v3810 = vsel %vm1139, %v3767, 0
      %v3813 = vsel %vm1139, %v3768, 0
      %v3816 = vsel %vm1139, %v3769, 0
      %v3819 = vsel %vm1139, %v3770, 0
      %v3822 = vsel %vm1139, %v3771, 0
      %v3825 = vsel %vm1139, %v3772, 0
      %v3828 = vsel %vm1139, %v3773, 0
      %v3831 = vsel %vm1349, %v3775, 0
      %3833 = vmatprep.subr.bf16.mxu0 0
      %3834 = vmatpush1.bf16.msra.mxu0 0
      %3835 = vmatprep.subr.bf16.mxu0 0
      %3836 = vmatpush1.bf16.msra.mxu0 0
      %3837 = vmatprep.subr.bf16.mxu0 0
      %3838 = vmatpush1.bf16.msra.mxu0 0
      %3839 = vmatprep.subr.bf16.mxu0 0
      %3840 = vmatpush1.bf16.msra.mxu0 0
      %3841 = vmatprep.subr.bf16.mxu0 0
      %3842 = vmatpush1.bf16.msra.mxu0 0
      %3843 = vmatprep.subr.bf16.mxu0 0
      %3844 = vmatpush1.bf16.msra.mxu0 0
      %3845 = vmatprep.subr.bf16.mxu0 0
      %3846 = vmatpush1.bf16.msra.mxu0 0
      %3847 = vmatprep.subr.bf16.mxu0 0
      %3848 = vmatpush1.bf16.msra.mxu0 %v3831
      %3849 = vmatprep.subr.bf16.mxu0 0
      %3850 = vmatpush2.bf16.msra.mxu0 0
      %3851 = vmatprep.subr.bf16.mxu0 0
      %3852 = vmatpush2.bf16.msra.mxu0 0
      %3853 = vmatprep.subr.bf16.mxu0 0
      %3854 = vmatpush2.bf16.msra.mxu0 0
      %3855 = vmatprep.subr.bf16.mxu0 0
      %3856 = vmatpush2.bf16.msra.mxu0 0
      %3857 = vmatprep.subr.bf16.mxu0 0
      %3858 = vmatpush2.bf16.msra.mxu0 0
      %3859 = vmatprep.subr.bf16.mxu0 0
      %3860 = vmatpush2.bf16.msra.mxu0 0
      %3861 = vmatprep.subr.bf16.mxu0 0
      %3862 = vmatpush2.bf16.msra.mxu0 0
      %3863 = vmatprep.subr.bf16.mxu0 0
      %3864 = vmatpush2.bf16.msra.mxu0 0
      %3865 = vmatprep.mubr.bf16.mxu0 0
      %3866 = vmatmul.mubr.bf16.gmra.mxu0 %v3777
      %v3867 = vpop.f32.mrf.mxu0
      %v3868 = vadd.f32 0.0, %v3867
      %v3869 = vpop.f32.mrf.mxu0
      %v3870 = vpop.f32.mrf.mxu0
      %v3871 = vadd.f32 0.0, %v3870
      %v3872 = vpop.f32.mrf.mxu0
      %3873 = vmatprep.mubr.bf16.mxu0 0
      %3874 = vmatmul.mubr.bf16.gmra.mxu0 %v3780
      %v3875 = vpop.f32.mrf.mxu0
      %v3876 = vadd.f32 0.0, %v3875
      %v3877 = vpop.f32.mrf.mxu0
      %v3878 = vpop.f32.mrf.mxu0
      %v3879 = vadd.f32 0.0, %v3878
      %v3880 = vpop.f32.mrf.mxu0
      %3881 = vmatprep.mubr.bf16.mxu0 0
      %3882 = vmatmul.mubr.bf16.gmra.mxu0 %v3783
      %v3883 = vpop.f32.mrf.mxu0
      %v3884 = vadd.f32 0.0, %v3883
      %v3885 = vpop.f32.mrf.mxu0
      %v3886 = vpop.f32.mrf.mxu0
      %v3887 = vadd.f32 0.0, %v3886
      %v3888 = vpop.f32.mrf.mxu0
      %3889 = vmatprep.mubr.bf16.mxu0 0
      %3890 = vmatmul.mubr.bf16.gmra.mxu0 %v3786
      %v3891 = vpop.f32.mrf.mxu0
      %v3892 = vadd.f32 0.0, %v3891
      %v3893 = vpop.f32.mrf.mxu0
      %v3894 = vpop.f32.mrf.mxu0
      %v3895 = vadd.f32 0.0, %v3894
      %v3896 = vpop.f32.mrf.mxu0
      %3897 = vmatprep.mubr.bf16.mxu0 0
      %3898 = vmatmul.mubr.bf16.gmra.mxu0 %v3789
      %v3899 = vpop.f32.mrf.mxu0
      %v3900 = vadd.f32 0.0, %v3899
      %v3901 = vpop.f32.mrf.mxu0
      %v3902 = vpop.f32.mrf.mxu0
      %v3903 = vadd.f32 0.0, %v3902
      %v3904 = vpop.f32.mrf.mxu0
      %3905 = vmatprep.mubr.bf16.mxu0 0
      %3906 = vmatmul.mubr.bf16.gmra.mxu0 %v3792
      %v3907 = vpop.f32.mrf.mxu0
      %v3908 = vadd.f32 0.0, %v3907
      %v3909 = vpop.f32.mrf.mxu0
      %v3910 = vpop.f32.mrf.mxu0
      %v3911 = vadd.f32 0.0, %v3910
      %v3912 = vpop.f32.mrf.mxu0
      %3913 = vmatprep.mubr.bf16.mxu0 0
      %3914 = vmatmul.mubr.bf16.gmra.mxu0 %v3795
      %v3915 = vpop.f32.mrf.mxu0
      %v3916 = vadd.f32 0.0, %v3915
      %v3917 = vpop.f32.mrf.mxu0
      %v3918 = vpop.f32.mrf.mxu0
      %v3919 = vadd.f32 0.0, %v3918
      %v3920 = vpop.f32.mrf.mxu0
      %3921 = vmatprep.mubr.bf16.mxu0 0
      %3922 = vmatmul.mubr.bf16.gmra.mxu0 %v3798
      %v3923 = vpop.f32.mrf.mxu0
      %v3924 = vadd.f32 0.0, %v3923
      %v3925 = vpop.f32.mrf.mxu0
      %v3926 = vpop.f32.mrf.mxu0
      %v3927 = vadd.f32 0.0, %v3926
      %v3928 = vpop.f32.mrf.mxu0
      %3929 = vmatprep.mubr.bf16.mxu0 0
      %3930 = vmatmul.mubr.bf16.gmra.mxu0 %v3801
      %v3931 = vpop.f32.mrf.mxu0
      %v3932 = vadd.f32 0.0, %v3931
      %v3933 = vpop.f32.mrf.mxu0
      %v3934 = vpop.f32.mrf.mxu0
      %v3935 = vadd.f32 0.0, %v3934
      %v3936 = vpop.f32.mrf.mxu0
      %3937 = vmatprep.mubr.bf16.mxu0 0
      %3938 = vmatmul.mubr.bf16.gmra.mxu0 %v3804
      %v3939 = vpop.f32.mrf.mxu0
      %v3940 = vadd.f32 0.0, %v3939
      %v3941 = vpop.f32.mrf.mxu0
      %v3942 = vpop.f32.mrf.mxu0
      %v3943 = vadd.f32 0.0, %v3942
      %v3944 = vpop.f32.mrf.mxu0
      %3945 = vmatprep.mubr.bf16.mxu0 0
      %3946 = vmatmul.mubr.bf16.gmra.mxu0 %v3807
      %v3947 = vpop.f32.mrf.mxu0
      %v3948 = vadd.f32 0.0, %v3947
      %v3949 = vpop.f32.mrf.mxu0
      %v3950 = vpop.f32.mrf.mxu0
      %v3951 = vadd.f32 0.0, %v3950
      %v3952 = vpop.f32.mrf.mxu0
      %3953 = vmatprep.mubr.bf16.mxu0 0
      %3954 = vmatmul.mubr.bf16.gmra.mxu0 %v3810
      %v3955 = vpop.f32.mrf.mxu0
      %v3956 = vadd.f32 0.0, %v3955
      %v3957 = vpop.f32.mrf.mxu0
      %v3958 = vpop.f32.mrf.mxu0
      %v3959 = vadd.f32 0.0, %v3958
      %v3960 = vpop.f32.mrf.mxu0
      %3961 = vmatprep.mubr.bf16.mxu0 0
      %3962 = vmatmul.mubr.bf16.gmra.mxu0 %v3813
      %v3963 = vpop.f32.mrf.mxu0
      %v3964 = vadd.f32 0.0, %v3963
      %v3965 = vpop.f32.mrf.mxu0
      %v3966 = vpop.f32.mrf.mxu0
      %v3967 = vadd.f32 0.0, %v3966
      %v3968 = vpop.f32.mrf.mxu0
      %3969 = vmatprep.mubr.bf16.mxu0 0
      %3970 = vmatmul.mubr.bf16.gmra.mxu0 %v3816
      %v3971 = vpop.f32.mrf.mxu0
      %v3972 = vadd.f32 0.0, %v3971
      %v3973 = vpop.f32.mrf.mxu0
      %v3974 = vpop.f32.mrf.mxu0
      %v3975 = vadd.f32 0.0, %v3974
      %v3976 = vpop.f32.mrf.mxu0
      %3977 = vmatprep.mubr.bf16.mxu0 0
      %3978 = vmatmul.mubr.bf16.gmra.mxu0 %v3819
      %v3979 = vpop.f32.mrf.mxu0
      %v3980 = vadd.f32 0.0, %v3979
      %v3981 = vpop.f32.mrf.mxu0
      %v3982 = vpop.f32.mrf.mxu0
      %v3983 = vadd.f32 0.0, %v3982
      %v3984 = vpop.f32.mrf.mxu0
      %3985 = vmatprep.mubr.bf16.mxu0 0
      %3986 = vmatmul.mubr.bf16.gmra.mxu0 %v3822
      %v3987 = vpop.f32.mrf.mxu0
      %v3988 = vadd.f32 0.0, %v3987
      %v3989 = vpop.f32.mrf.mxu0
      %v3990 = vpop.f32.mrf.mxu0
      %v3991 = vadd.f32 0.0, %v3990
      %v3992 = vpop.f32.mrf.mxu0
      %3993 = vmatprep.mubr.bf16.mxu0 0
      %3994 = vmatmul.mubr.bf16.gmra.mxu0 %v3825
      %v3995 = vpop.f32.mrf.mxu0
      %v3996 = vadd.f32 0.0, %v3995
      %v3997 = vpop.f32.mrf.mxu0
      %v3998 = vpop.f32.mrf.mxu0
      %v3999 = vadd.f32 0.0, %v3998
      %v4000 = vpop.f32.mrf.mxu0
      %4001 = vmatprep.mubr.bf16.mxu0 0
      %4002 = vmatmul.mubr.bf16.gmra.mxu0 %v3828
      %v4003 = vpop.f32.mrf.mxu0
      %v4004 = vadd.f32 0.0, %v4003
      %v4005 = vpop.f32.mrf.mxu0
      %v4006 = vpop.f32.mrf.mxu0
      %v4007 = vadd.f32 0.0, %v4006
      %v4008 = vpop.f32.mrf.mxu0
      %4009 = vdwg.mxu0
      %v4010 = vadd.f32 %v3684, %v3868
      %v4011 = vadd.f32 %v3685, %v3871
      %v4012 = vadd.f32 %v3686, %v3876
      %v4013 = vadd.f32 %v3687, %v3879
      %v4014 = vadd.f32 %v3688, %v3884
      %v4015 = vadd.f32 %v3689, %v3887
      %v4016 = vadd.f32 %v3690, %v3892
      %v4017 = vadd.f32 %v3691, %v3895
      %v4018 = vadd.f32 %v3692, %v3900
      %v4019 = vadd.f32 %v3693, %v3903
      %v4020 = vadd.f32 %v3694, %v3908
      %v4021 = vadd.f32 %v3695, %v3911
      %v4022 = vadd.f32 %v3696, %v3916
      %v4023 = vadd.f32 %v3697, %v3919
      %v4024 = vadd.f32 %v3698, %v3924
      %v4025 = vadd.f32 %v3699, %v3927
      %v4026 = vadd.f32 %v3700, %v3932
      %v4027 = vadd.f32 %v3701, %v3935
      %v4028 = vadd.f32 %v3702, %v3940
      %v4029 = vadd.f32 %v3703, %v3943
      %v4030 = vadd.f32 %v3704, %v3948
      %v4031 = vadd.f32 %v3705, %v3951
      %v4032 = vadd.f32 %v3706, %v3956
      %v4033 = vadd.f32 %v3707, %v3959
      %v4034 = vadd.f32 %v3708, %v3964
      %v4035 = vadd.f32 %v3709, %v3967
      %v4036 = vadd.f32 %v3710, %v3972
      %v4037 = vadd.f32 %v3711, %v3975
      %v4038 = vadd.f32 %v3712, %v3980
      %v4039 = vadd.f32 %v3713, %v3983
      %v4040 = vadd.f32 %v3714, %v3988
      %v4041 = vadd.f32 %v3715, %v3991
      %v4042 = vadd.f32 %v3716, %v3996
      %v4043 = vadd.f32 %v3717, %v3999
      %v4044 = vadd.f32 %v3718, %v4004
      %v4045 = vadd.f32 %v3719, %v4007
      %v4046 = vld [vmem:[%s6] sm:$0x1]
      %v4048 = vlaneseq
      %v4049 = vshrl.u32 %v4048, 7
      %v4050 = vsub.s32 0, %v4049
      %v4051 = vrot.slane %v4046, %v4050
      %v4053 = vadd.f32 %v4010, %v4051
      %v4054 = vadd.f32 %v4011, %v4051
      %v4055 = vadd.f32 %v4012, %v4051
      %v4056 = vadd.f32 %v4013, %v4051
      %v4057 = vadd.f32 %v4014, %v4051
      %v4058 = vadd.f32 %v4015, %v4051
      %v4059 = vadd.f32 %v4016, %v4051
      %v4060 = vadd.f32 %v4017, %v4051
      %v4061 = vadd.f32 %v4018, %v4051
      %v4062 = vadd.f32 %v4019, %v4051
      %v4063 = vadd.f32 %v4020, %v4051
      %v4064 = vadd.f32 %v4021, %v4051
      %v4065 = vadd.f32 %v4022, %v4051
      %v4066 = vadd.f32 %v4023, %v4051
      %v4067 = vadd.f32 %v4024, %v4051
      %v4068 = vadd.f32 %v4025, %v4051
      %v4069 = vadd.f32 %v4026, %v4051
      %v4070 = vadd.f32 %v4027, %v4051
      %v4071 = vadd.f32 %v4028, %v4051
      %v4072 = vadd.f32 %v4029, %v4051
      %v4073 = vadd.f32 %v4030, %v4051
      %v4074 = vadd.f32 %v4031, %v4051
      %v4075 = vadd.f32 %v4032, %v4051
      %v4076 = vadd.f32 %v4033, %v4051
      %v4077 = vadd.f32 %v4034, %v4051
      %v4078 = vadd.f32 %v4035, %v4051
      %v4079 = vadd.f32 %v4036, %v4051
      %v4080 = vadd.f32 %v4037, %v4051
      %v4081 = vadd.f32 %v4038, %v4051
      %v4082 = vadd.f32 %v4039, %v4051
      %v4083 = vadd.f32 %v4040, %v4051
      %v4084 = vadd.f32 %v4041, %v4051
      %v4085 = vadd.f32 %v4042, %v4051
      %v4086 = vadd.f32 %v4043, %v4051
      %v4087 = vadd.f32 %v4044, %v4051
      %v4088 = vadd.f32 %v4045, %v4051
      %v4089 = vmax.f32 %v4053, 0.0
      %v4090 = vmax.f32 %v4054, 0.0
      %v4091 = vmax.f32 %v4055, 0.0
      %v4092 = vmax.f32 %v4056, 0.0
      %v4093 = vmax.f32 %v4057, 0.0
      %v4094 = vmax.f32 %v4058, 0.0
      %v4095 = vmax.f32 %v4059, 0.0
      %v4096 = vmax.f32 %v4060, 0.0
      %v4097 = vmax.f32 %v4061, 0.0
      %v4098 = vmax.f32 %v4062, 0.0
      %v4099 = vmax.f32 %v4063, 0.0
      %v4100 = vmax.f32 %v4064, 0.0
      %v4101 = vmax.f32 %v4065, 0.0
      %v4102 = vmax.f32 %v4066, 0.0
      %v4103 = vmax.f32 %v4067, 0.0
      %v4104 = vmax.f32 %v4068, 0.0
      %v4105 = vmax.f32 %v4069, 0.0
      %v4106 = vmax.f32 %v4070, 0.0
      %v4107 = vmax.f32 %v4071, 0.0
      %v4108 = vmax.f32 %v4072, 0.0
      %v4109 = vmax.f32 %v4073, 0.0
      %v4110 = vmax.f32 %v4074, 0.0
      %v4111 = vmax.f32 %v4075, 0.0
      %v4112 = vmax.f32 %v4076, 0.0
      %v4113 = vmax.f32 %v4077, 0.0
      %v4114 = vmax.f32 %v4078, 0.0
      %v4115 = vmax.f32 %v4079, 0.0
      %v4116 = vmax.f32 %v4080, 0.0
      %v4117 = vmax.f32 %v4081, 0.0
      %v4118 = vmax.f32 %v4082, 0.0
      %v4119 = vmax.f32 %v4083, 0.0
      %v4120 = vmax.f32 %v4084, 0.0
      %v4121 = vmax.f32 %v4085, 0.0
      %v4122 = vmax.f32 %v4086, 0.0
      %v4123 = vmax.f32 %v4087, 0.0
      %v4124 = vmax.f32 %v4088, 0.0
      %v4125 = vpack.c.bf16 %v4090, %v4089
      %v4126 = vpack.c.bf16 %v4092, %v4091
      %v4127 = vpack.c.bf16 %v4094, %v4093
      %v4128 = vpack.c.bf16 %v4096, %v4095
      %v4129 = vpack.c.bf16 %v4098, %v4097
      %v4130 = vpack.c.bf16 %v4100, %v4099
      %v4131 = vpack.c.bf16 %v4102, %v4101
      %v4132 = vpack.c.bf16 %v4104, %v4103
      %v4133 = vpack.c.bf16 %v4106, %v4105
      %v4134 = vpack.c.bf16 %v4108, %v4107
      %v4135 = vpack.c.bf16 %v4110, %v4109
      %v4136 = vpack.c.bf16 %v4112, %v4111
      %v4137 = vpack.c.bf16 %v4114, %v4113
      %v4138 = vpack.c.bf16 %v4116, %v4115
      %v4139 = vpack.c.bf16 %v4118, %v4117
      %v4140 = vpack.c.bf16 %v4120, %v4119
      %v4141 = vpack.c.bf16 %v4122, %v4121
      %v4142 = vpack.c.bf16 %v4124, %v4123
      %v4143 = vld [vmem:[%s7] sm:$0x3]
      %v4144 = vld [vmem:[%s8] sm:$0x1]
      %v4146 = vlaneseq
      %v4147 = vshrl.u32 %v4146, 7
      %v4148 = vsub.s32 0, %v4147
      %v4149 = vrot.slane %v4144, %v4148
      %v4152 = vsel %vm1139, %v4125, 0
      %v4155 = vsel %vm1139, %v4126, 0
      %v4158 = vsel %vm1139, %v4127, 0
      %v4161 = vsel %vm1139, %v4128, 0
      %v4164 = vsel %vm1139, %v4129, 0
      %v4167 = vsel %vm1139, %v4130, 0
      %v4170 = vsel %vm1139, %v4131, 0
      %v4173 = vsel %vm1139, %v4132, 0
      %v4176 = vsel %vm1139, %v4133, 0
      %v4179 = vsel %vm1139, %v4134, 0
      %v4182 = vsel %vm1139, %v4135, 0
      %v4185 = vsel %vm1139, %v4136, 0
      %v4188 = vsel %vm1139, %v4137, 0
      %v4191 = vsel %vm1139, %v4138, 0
      %v4194 = vsel %vm1139, %v4139, 0
      %v4197 = vsel %vm1139, %v4140, 0
      %v4200 = vsel %vm1139, %v4141, 0
      %v4203 = vsel %vm1139, %v4142, 0
      %v4206 = vsel %vm1349, %v4143, 0
      %4208 = vmatprep.subr.bf16.mxu0 0
      %4209 = vmatpush1.bf16.msra.mxu0 0
      %4210 = vmatprep.subr.bf16.mxu0 0
      %4211 = vmatpush1.bf16.msra.mxu0 0
      %4212 = vmatprep.subr.bf16.mxu0 0
      %4213 = vmatpush1.bf16.msra.mxu0 0
      %4214 = vmatprep.subr.bf16.mxu0 0
      %4215 = vmatpush1.bf16.msra.mxu0 0
      %4216 = vmatprep.subr.bf16.mxu0 0
      %4217 = vmatpush1.bf16.msra.mxu0 0
      %4218 = vmatprep.subr.bf16.mxu0 0
      %4219 = vmatpush1.bf16.msra.mxu0 0
      %4220 = vmatprep.subr.bf16.mxu0 0
      %4221 = vmatpush1.bf16.msra.mxu0 0
      %4222 = vmatprep.subr.bf16.mxu0 0
      %4223 = vmatpush1.bf16.msra.mxu0 %v4206
      %4224 = vmatprep.subr.bf16.mxu0 0
      %4225 = vmatpush2.bf16.msra.mxu0 0
      %4226 = vmatprep.subr.bf16.mxu0 0
      %4227 = vmatpush2.bf16.msra.mxu0 0
      %4228 = vmatprep.subr.bf16.mxu0 0
      %4229 = vmatpush2.bf16.msra.mxu0 0
      %4230 = vmatprep.subr.bf16.mxu0 0
      %4231 = vmatpush2.bf16.msra.mxu0 0
      %4232 = vmatprep.subr.bf16.mxu0 0
      %4233 = vmatpush2.bf16.msra.mxu0 0
      %4234 = vmatprep.subr.bf16.mxu0 0
      %4235 = vmatpush2.bf16.msra.mxu0 0
      %4236 = vmatprep.subr.bf16.mxu0 0
      %4237 = vmatpush2.bf16.msra.mxu0 0
      %4238 = vmatprep.subr.bf16.mxu0 0
      %4239 = vmatpush2.bf16.msra.mxu0 0
      %4240 = vmatprep.mubr.bf16.mxu0 0
      %4241 = vmatmul.mubr.bf16.gmra.mxu0 %v4152
      %v4242 = vpop.f32.mrf.mxu0
      %v4243 = vadd.f32 %v4149, %v4242
      %v4244 = vpop.f32.mrf.mxu0
      %v4245 = vpop.f32.mrf.mxu0
      %v4246 = vadd.f32 %v4149, %v4245
      %v4247 = vpop.f32.mrf.mxu0
      %4248 = vmatprep.mubr.bf16.mxu0 0
      %4249 = vmatmul.mubr.bf16.gmra.mxu0 %v4155
      %v4250 = vpop.f32.mrf.mxu0
      %v4251 = vadd.f32 %v4149, %v4250
      %v4252 = vpop.f32.mrf.mxu0
      %v4253 = vpop.f32.mrf.mxu0
      %v4254 = vadd.f32 %v4149, %v4253
      %v4255 = vpop.f32.mrf.mxu0
      %4256 = vmatprep.mubr.bf16.mxu0 0
      %4257 = vmatmul.mubr.bf16.gmra.mxu0 %v4158
      %v4258 = vpop.f32.mrf.mxu0
      %v4259 = vadd.f32 %v4149, %v4258
      %v4260 = vpop.f32.mrf.mxu0
      %v4261 = vpop.f32.mrf.mxu0
      %v4262 = vadd.f32 %v4149, %v4261
      %v4263 = vpop.f32.mrf.mxu0
      %4264 = vmatprep.mubr.bf16.mxu0 0
      %4265 = vmatmul.mubr.bf16.gmra.mxu0 %v4161
      %v4266 = vpop.f32.mrf.mxu0
      %v4267 = vadd.f32 %v4149, %v4266
      %v4268 = vpop.f32.mrf.mxu0
      %v4269 = vpop.f32.mrf.mxu0
      %v4270 = vadd.f32 %v4149, %v4269
      %v4271 = vpop.f32.mrf.mxu0
      %4272 = vmatprep.mubr.bf16.mxu0 0
      %4273 = vmatmul.mubr.bf16.gmra.mxu0 %v4164
      %v4274 = vpop.f32.mrf.mxu0
      %v4275 = vadd.f32 %v4149, %v4274
      %v4276 = vpop.f32.mrf.mxu0
      %v4277 = vpop.f32.mrf.mxu0
      %v4278 = vadd.f32 %v4149, %v4277
      %v4279 = vpop.f32.mrf.mxu0
      %4280 = vmatprep.mubr.bf16.mxu0 0
      %4281 = vmatmul.mubr.bf16.gmra.mxu0 %v4167
      %v4282 = vpop.f32.mrf.mxu0
      %v4283 = vadd.f32 %v4149, %v4282
      %v4284 = vpop.f32.mrf.mxu0
      %v4285 = vpop.f32.mrf.mxu0
      %v4286 = vadd.f32 %v4149, %v4285
      %v4287 = vpop.f32.mrf.mxu0
      %4288 = vmatprep.mubr.bf16.mxu0 0
      %4289 = vmatmul.mubr.bf16.gmra.mxu0 %v4170
      %v4290 = vpop.f32.mrf.mxu0
      %v4291 = vadd.f32 %v4149, %v4290
      %v4292 = vpop.f32.mrf.mxu0
      %v4293 = vpop.f32.mrf.mxu0
      %v4294 = vadd.f32 %v4149, %v4293
      %v4295 = vpop.f32.mrf.mxu0
      %4296 = vmatprep.mubr.bf16.mxu0 0
      %4297 = vmatmul.mubr.bf16.gmra.mxu0 %v4173
      %v4298 = vpop.f32.mrf.mxu0
      %v4299 = vadd.f32 %v4149, %v4298
      %v4300 = vpop.f32.mrf.mxu0
      %v4301 = vpop.f32.mrf.mxu0
      %v4302 = vadd.f32 %v4149, %v4301
      %v4303 = vpop.f32.mrf.mxu0
      %4304 = vmatprep.mubr.bf16.mxu0 0
      %4305 = vmatmul.mubr.bf16.gmra.mxu0 %v4176
      %v4306 = vpop.f32.mrf.mxu0
      %v4307 = vadd.f32 %v4149, %v4306
      %v4308 = vpop.f32.mrf.mxu0
      %v4309 = vpop.f32.mrf.mxu0
      %v4310 = vadd.f32 %v4149, %v4309
      %v4311 = vpop.f32.mrf.mxu0
      %4312 = vmatprep.mubr.bf16.mxu0 0
      %4313 = vmatmul.mubr.bf16.gmra.mxu0 %v4179
      %v4314 = vpop.f32.mrf.mxu0
      %v4315 = vadd.f32 %v4149, %v4314
      %v4316 = vpop.f32.mrf.mxu0
      %v4317 = vpop.f32.mrf.mxu0
      %v4318 = vadd.f32 %v4149, %v4317
      %v4319 = vpop.f32.mrf.mxu0
      %4320 = vmatprep.mubr.bf16.mxu0 0
      %4321 = vmatmul.mubr.bf16.gmra.mxu0 %v4182
      %v4322 = vpop.f32.mrf.mxu0
      %v4323 = vadd.f32 %v4149, %v4322
      %v4324 = vpop.f32.mrf.mxu0
      %v4325 = vpop.f32.mrf.mxu0
      %v4326 = vadd.f32 %v4149, %v4325
      %v4327 = vpop.f32.mrf.mxu0
      %4328 = vmatprep.mubr.bf16.mxu0 0
      %4329 = vmatmul.mubr.bf16.gmra.mxu0 %v4185
      %v4330 = vpop.f32.mrf.mxu0
      %v4331 = vadd.f32 %v4149, %v4330
      %v4332 = vpop.f32.mrf.mxu0
      %v4333 = vpop.f32.mrf.mxu0
      %v4334 = vadd.f32 %v4149, %v4333
      %v4335 = vpop.f32.mrf.mxu0
      %4336 = vmatprep.mubr.bf16.mxu0 0
      %4337 = vmatmul.mubr.bf16.gmra.mxu0 %v4188
      %v4338 = vpop.f32.mrf.mxu0
      %v4339 = vadd.f32 %v4149, %v4338
      %v4340 = vpop.f32.mrf.mxu0
      %v4341 = vpop.f32.mrf.mxu0
      %v4342 = vadd.f32 %v4149, %v4341
      %v4343 = vpop.f32.mrf.mxu0
      %4344 = vmatprep.mubr.bf16.mxu0 0
      %4345 = vmatmul.mubr.bf16.gmra.mxu0 %v4191
      %v4346 = vpop.f32.mrf.mxu0
      %v4347 = vadd.f32 %v4149, %v4346
      %v4348 = vpop.f32.mrf.mxu0
      %v4349 = vpop.f32.mrf.mxu0
      %v4350 = vadd.f32 %v4149, %v4349
      %v4351 = vpop.f32.mrf.mxu0
      %4352 = vmatprep.mubr.bf16.mxu0 0
      %4353 = vmatmul.mubr.bf16.gmra.mxu0 %v4194
      %v4354 = vpop.f32.mrf.mxu0
      %v4355 = vadd.f32 %v4149, %v4354
      %v4356 = vpop.f32.mrf.mxu0
      %v4357 = vpop.f32.mrf.mxu0
      %v4358 = vadd.f32 %v4149, %v4357
      %v4359 = vpop.f32.mrf.mxu0
      %4360 = vmatprep.mubr.bf16.mxu0 0
      %4361 = vmatmul.mubr.bf16.gmra.mxu0 %v4197
      %v4362 = vpop.f32.mrf.mxu0
      %v4363 = vadd.f32 %v4149, %v4362
      %v4364 = vpop.f32.mrf.mxu0
      %v4365 = vpop.f32.mrf.mxu0
      %v4366 = vadd.f32 %v4149, %v4365
      %v4367 = vpop.f32.mrf.mxu0
      %4368 = vmatprep.mubr.bf16.mxu0 0
      %4369 = vmatmul.mubr.bf16.gmra.mxu0 %v4200
      %v4370 = vpop.f32.mrf.mxu0
      %v4371 = vadd.f32 %v4149, %v4370
      %v4372 = vpop.f32.mrf.mxu0
      %v4373 = vpop.f32.mrf.mxu0
      %v4374 = vadd.f32 %v4149, %v4373
      %v4375 = vpop.f32.mrf.mxu0
      %4376 = vmatprep.mubr.bf16.mxu0 0
      %4377 = vmatmul.mubr.bf16.gmra.mxu0 %v4203
      %v4378 = vpop.f32.mrf.mxu0
      %v4379 = vadd.f32 %v4149, %v4378
      %v4380 = vpop.f32.mrf.mxu0
      %v4381 = vpop.f32.mrf.mxu0
      %v4382 = vadd.f32 %v4149, %v4381
      %v4383 = vpop.f32.mrf.mxu0
      %4384 = vdwg.mxu0
      %v4385 = vld [vmem:[%s347] sm:$0xff]
      %v4386 = vld [vmem:[%s347 + $0x8] sm:$0xff]
      %v4387 = vld [vmem:[%s347 + $0x10] sm:$0xff]
      %v4388 = vld [vmem:[%s347 + $0x18] sm:$0xff]
      %v4389 = vld [vmem:[%s347 + $0x20] sm:$0xff]
      %v4390 = vld [vmem:[%s347 + $0x28] sm:$0xff]
      %v4391 = vld [vmem:[%s347 + $0x30] sm:$0xff]
      %v4392 = vld [vmem:[%s347 + $0x38] sm:$0xff]
      %v4393 = vld [vmem:[%s347 + $0x40] sm:$0xff]
      %v4394 = vld [vmem:[%s347 + $0x48] sm:$0xff]
      %v4395 = vld [vmem:[%s347 + $0x50] sm:$0xff]
      %v4396 = vld [vmem:[%s347 + $0x58] sm:$0xff]
      %v4397 = vld [vmem:[%s347 + $0x60] sm:$0xff]
      %v4398 = vld [vmem:[%s347 + $0x68] sm:$0xff]
      %v4399 = vld [vmem:[%s347 + $0x70] sm:$0xff]
      %v4400 = vld [vmem:[%s347 + $0x78] sm:$0xff]
      %v4401 = vld [vmem:[%s347 + $0x80] sm:$0xff]
      %v4402 = vld [vmem:[%s347 + $0x88] sm:$0xff]
      %v4403 = vld [vmem:[%s347 + $0x90] sm:$0xff]
      %v4404 = vld [vmem:[%s347 + $0x98] sm:$0xff]
      %v4405 = vld [vmem:[%s347 + $0xa0] sm:$0xff]
      %v4406 = vld [vmem:[%s347 + $0xa8] sm:$0xff]
      %v4407 = vld [vmem:[%s347 + $0xb0] sm:$0xff]
      %v4408 = vld [vmem:[%s347 + $0xb8] sm:$0xff]
      %v4409 = vld [vmem:[%s347 + $0xc0] sm:$0xff]
      %v4410 = vld [vmem:[%s347 + $0xc8] sm:$0xff]
      %v4411 = vld [vmem:[%s347 + $0xd0] sm:$0xff]
      %v4412 = vld [vmem:[%s347 + $0xd8] sm:$0xff]
      %v4413 = vld [vmem:[%s347 + $0xe0] sm:$0xff]
      %v4414 = vld [vmem:[%s347 + $0xe8] sm:$0xff]
      %v4415 = vld [vmem:[%s347 + $0xf0] sm:$0xff]
      %v4416 = vld [vmem:[%s347 + $0xf8] sm:$0xff]
      %v4417 = vld [vmem:[%s347 + $0x100] sm:$0xff]
      %v4418 = vld [vmem:[%s347 + $0x108] sm:$0xff]
      %v4419 = vld [vmem:[%s347 + $0x110] sm:$0xff]
      %v4420 = vld [vmem:[%s347 + $0x118] sm:$0xff]
      %v4421 = vadd.f32 %v4243, %v4385
      %v4422 = vadd.f32 %v4246, %v4386
      %v4423 = vadd.f32 %v4251, %v4387
      %v4424 = vadd.f32 %v4254, %v4388
      %v4425 = vadd.f32 %v4259, %v4389
      %v4426 = vadd.f32 %v4262, %v4390
      %v4427 = vadd.f32 %v4267, %v4391
      %v4428 = vadd.f32 %v4270, %v4392
      %v4429 = vadd.f32 %v4275, %v4393
      %v4430 = vadd.f32 %v4278, %v4394
      %v4431 = vadd.f32 %v4283, %v4395
      %v4432 = vadd.f32 %v4286, %v4396
      %v4433 = vadd.f32 %v4291, %v4397
      %v4434 = vadd.f32 %v4294, %v4398
      %v4435 = vadd.f32 %v4299, %v4399
      %v4436 = vadd.f32 %v4302, %v4400
      %v4437 = vadd.f32 %v4307, %v4401
      %v4438 = vadd.f32 %v4310, %v4402
      %v4439 = vadd.f32 %v4315, %v4403
      %v4440 = vadd.f32 %v4318, %v4404
      %v4441 = vadd.f32 %v4323, %v4405
      %v4442 = vadd.f32 %v4326, %v4406
      %v4443 = vadd.f32 %v4331, %v4407
      %v4444 = vadd.f32 %v4334, %v4408
      %v4445 = vadd.f32 %v4339, %v4409
      %v4446 = vadd.f32 %v4342, %v4410
      %v4447 = vadd.f32 %v4347, %v4411
      %v4448 = vadd.f32 %v4350, %v4412
      %v4449 = vadd.f32 %v4355, %v4413
      %v4450 = vadd.f32 %v4358, %v4414
      %v4451 = vadd.f32 %v4363, %v4415
      %v4452 = vadd.f32 %v4366, %v4416
      %v4453 = vadd.f32 %v4371, %v4417
      %v4454 = vadd.f32 %v4374, %v4418
      %v4455 = vadd.f32 %v4379, %v4419
      %v4456 = vadd.f32 %v4382, %v4420
      %v4457 = vmax.f32 %v4421, 0.0
      %v4458 = vmax.f32 %v4422, 0.0
      %v4459 = vmax.f32 %v4423, 0.0
      %v4460 = vmax.f32 %v4424, 0.0
      %v4461 = vmax.f32 %v4425, 0.0
      %v4462 = vmax.f32 %v4426, 0.0
      %v4463 = vmax.f32 %v4427, 0.0
      %v4464 = vmax.f32 %v4428, 0.0
      %v4465 = vmax.f32 %v4429, 0.0
      %v4466 = vmax.f32 %v4430, 0.0
      %v4467 = vmax.f32 %v4431, 0.0
      %v4468 = vmax.f32 %v4432, 0.0
      %v4469 = vmax.f32 %v4433, 0.0
      %v4470 = vmax.f32 %v4434, 0.0
      %v4471 = vmax.f32 %v4435, 0.0
      %v4472 = vmax.f32 %v4436, 0.0
      %v4473 = vmax.f32 %v4437, 0.0
      %v4474 = vmax.f32 %v4438, 0.0
      %v4475 = vmax.f32 %v4439, 0.0
      %v4476 = vmax.f32 %v4440, 0.0
      %v4477 = vmax.f32 %v4441, 0.0
      %v4478 = vmax.f32 %v4442, 0.0
      %v4479 = vmax.f32 %v4443, 0.0
      %v4480 = vmax.f32 %v4444, 0.0
      %v4481 = vmax.f32 %v4445, 0.0
      %v4482 = vmax.f32 %v4446, 0.0
      %v4483 = vmax.f32 %v4447, 0.0
      %v4484 = vmax.f32 %v4448, 0.0
      %v4485 = vmax.f32 %v4449, 0.0
      %v4486 = vmax.f32 %v4450, 0.0
      %v4487 = vmax.f32 %v4451, 0.0
      %v4488 = vmax.f32 %v4452, 0.0
      %v4489 = vmax.f32 %v4453, 0.0
      %v4490 = vmax.f32 %v4454, 0.0
      %v4491 = vmax.f32 %v4455, 0.0
      %v4492 = vmax.f32 %v4456, 0.0
      %4493 = vst.msk [vmem:[%s352] sm:$0xff] %vm520, %v4457
      %4494 = vst.msk [vmem:[%s352 + $0x8] sm:$0xff] %vm520, %v4458
      %4495 = vst.msk [vmem:[%s352 + $0x10] sm:$0xff] %vm520, %v4459
      %4496 = vst.msk [vmem:[%s352 + $0x18] sm:$0xff] %vm520, %v4460
      %4497 = vst.msk [vmem:[%s352 + $0x20] sm:$0xff] %vm520, %v4461
      %4498 = vst.msk [vmem:[%s352 + $0x28] sm:$0xff] %vm520, %v4462
      %4499 = vst.msk [vmem:[%s352 + $0x30] sm:$0xff] %vm520, %v4463
      %4500 = vst.msk [vmem:[%s352 + $0x38] sm:$0xff] %vm520, %v4464
      %4501 = vst.msk [vmem:[%s352 + $0x40] sm:$0xff] %vm520, %v4465
      %4502 = vst.msk [vmem:[%s352 + $0x48] sm:$0xff] %vm520, %v4466
      %4503 = vst.msk [vmem:[%s352 + $0x50] sm:$0xff] %vm520, %v4467
      %4504 = vst.msk [vmem:[%s352 + $0x58] sm:$0xff] %vm520, %v4468
      %4505 = vst.msk [vmem:[%s352 + $0x60] sm:$0xff] %vm520, %v4469
      %4506 = vst.msk [vmem:[%s352 + $0x68] sm:$0xff] %vm520, %v4470
      %4507 = vst.msk [vmem:[%s352 + $0x70] sm:$0xff] %vm520, %v4471
      %4508 = vst.msk [vmem:[%s352 + $0x78] sm:$0xff] %vm520, %v4472
      %4509 = vst.msk [vmem:[%s352 + $0x80] sm:$0xff] %vm520, %v4473
      %4510 = vst.msk [vmem:[%s352 + $0x88] sm:$0xff] %vm520, %v4474
      %4511 = vst.msk [vmem:[%s352 + $0x90] sm:$0xff] %vm520, %v4475
      %4512 = vst.msk [vmem:[%s352 + $0x98] sm:$0xff] %vm520, %v4476
      %4513 = vst.msk [vmem:[%s352 + $0xa0] sm:$0xff] %vm520, %v4477
      %4514 = vst.msk [vmem:[%s352 + $0xa8] sm:$0xff] %vm520, %v4478
      %4515 = vst.msk [vmem:[%s352 + $0xb0] sm:$0xff] %vm520, %v4479
      %4516 = vst.msk [vmem:[%s352 + $0xb8] sm:$0xff] %vm520, %v4480
      %4517 = vst.msk [vmem:[%s352 + $0xc0] sm:$0xff] %vm520, %v4481
      %4518 = vst.msk [vmem:[%s352 + $0xc8] sm:$0xff] %vm520, %v4482
      %4519 = vst.msk [vmem:[%s352 + $0xd0] sm:$0xff] %vm520, %v4483
      %4520 = vst.msk [vmem:[%s352 + $0xd8] sm:$0xff] %vm520, %v4484
      %4521 = vst.msk [vmem:[%s352 + $0xe0] sm:$0xff] %vm520, %v4485
      %4522 = vst.msk [vmem:[%s352 + $0xe8] sm:$0xff] %vm520, %v4486
      %4523 = vst.msk [vmem:[%s352 + $0xf0] sm:$0xff] %vm520, %v4487
      %4524 = vst.msk [vmem:[%s352 + $0xf8] sm:$0xff] %vm520, %v4488
      %4525 = vst.msk [vmem:[%s352 + $0x100] sm:$0xff] %vm520, %v4489
      %4526 = vst.msk [vmem:[%s352 + $0x108] sm:$0xff] %vm520, %v4490
      %4527 = vst.msk [vmem:[%s352 + $0x110] sm:$0xff] %vm520, %v4491
      %4528 = vst.msk [vmem:[%s352 + $0x118] sm:$0xff] %vm520, %v4492
      %p4529 = scmp.lt.s32.totalorder %s20, 1
      %s4530 = scalar_select %p4529, %s20, 1
      %s4531 = smul.addr %s4530, 36
      %s4532 = smul.addr %s4531, 8
      %s4533 = scalar_lea.vmem %s9, %s4532
      // Predicated region
      $region57: #{bottleneck_forward.1} parent=55 // pred_check
        %p4534 = pneg %p237
      $region58: #{bottleneck_forward.1} parent=55 // pred_check_branch
        %4536 = sbr.rel (%p4534) target = $region60
      $region59: #{bottleneck_forward.1} parent=55 // pred_region
        _
      $region60: #{bottleneck_forward.1} parent=55 // pred_fallthru
        _
    $region56: #{bottleneck_forward.1} parent=5 // pred_fallthru
      _
    %p4537 = scmp.le.s32.totalorder 2, %s15
    // Predicated region
    $region61: #{bottleneck_forward.1} parent=5 // pred_check
      %p4538 = pneg %p4537
    $region62: #{bottleneck_forward.1} parent=5 // pred_check_branch
      %4540 = sbr.rel (%p4538) target = $region64
    $region63: #{bottleneck_forward.1} parent=5 // pred_region
      %s4541 = ssub.s32 %s15, 2
      // Predicated region
      $region65: #{bottleneck_forward.1} parent=63 // pred_check
        %p4542 = pneg %p243
      $region66: #{bottleneck_forward.1} parent=63 // pred_check_branch
        %4544 = sbr.rel (%p4542) target = $region68
      $region67: #{bottleneck_forward.1} parent=63 // pred_region
        %p4545 = scmp.lt.s32.totalorder %s21, 1
        %s4546 = scalar_select %p4545, %s21, 1
        %s4547 = smul.addr %s4546, 36
        %s4548 = smul.addr %s4547, 8
        %s4549 = scalar_lea.vmem %s9, %s4548
      $region68: #{bottleneck_forward.1} parent=63 // pred_fallthru
        _
    $region64: #{bottleneck_forward.1} parent=5 // pred_fallthru
      _
  $region6: #{bottleneck_forward.1} parent=0 // loop_footer
    %s19 = sadd.s32 1, %s15
  $region7: #{bottleneck_forward.1} parent=0 // loop_footer_branch
    %14 = sbr.rel target = $region3
  $region8: #{bottleneck_forward.1} parent=0 // loop_exit
    _

</llo_original>
